<compile_context>
chip_gen: v7x
topology: tpu7x:2x2x1
jax: 0.10.0
libtpu: 0.0.40
codegen_flags: <defaults>
</compile_context>

<pallas_src>
import jax
import jax.numpy as jnp
from jax.experimental import pallas as pl
from jax.experimental.pallas import tpu as pltpu

IN_DIM = 28 * 28      # 784 (== full array dim, so no K padding of x is needed)
FC1 = 1024
FC2 = 128
OUT_DIM = 10
OUT_PAD = 128         # lane-dense output block (zero-padded fc3 columns)


def _round_up(x, m):
    return (x + m - 1) // m * m


def _pick_tile_b(B):
    """Batch tile: multiples of 8/16, >=2 grid steps when B allows (v7x: 2 TCs)."""
    if B <= 16:
        return _round_up(B, 8)                     # tiny batch: single small tile
    return min(512, _round_up(pl.cdiv(B, 2), 16))  # >=2 tiles, capped for VMEM/MXU


def mnist_mlp_kernel(x_ref, w1_ref, b1_ref, w2_ref, b2_ref, w3_ref, b3_ref, o_ref):
    # fc1 + bias + ReLU (dropout = identity in eval mode).
    # x arrives f32; cast to bf16 in-kernel (free under MXU slack), f32 accumulate.
    x = x_ref[...].astype(jnp.bfloat16)
    h1 = jnp.dot(x, w1_ref[...], preferred_element_type=jnp.float32)
    h1 = jnp.maximum(h1 + b1_ref[...], 0.0)

    # fc2 + bias + ReLU (dropout = identity in eval mode).
    h2 = jnp.dot(h1.astype(jnp.bfloat16), w2_ref[...],
                 preferred_element_type=jnp.float32)
    h2 = jnp.maximum(h2 + b2_ref[...], 0.0)

    # fc3 logits, stored lane-dense into the 128-wide padded bf16 output block.
    out = jnp.dot(h2.astype(jnp.bfloat16), w3_ref[...],
                  preferred_element_type=jnp.float32)
    o_ref[...] = (out + b3_ref[...]).astype(o_ref.dtype)


def prepare_params(w1, b1, w2, b2, w3, b3):
    """One-time weight prep (bf16 cast + fc3 lane padding). Call once, not per step."""
    w1_p = w1.astype(jnp.bfloat16)                                    # (784, 1024)
    w2_p = w2.astype(jnp.bfloat16)                                    # (1024, 128)
    w3_p = jnp.zeros((FC2, OUT_PAD), jnp.bfloat16).at[:, :OUT_DIM].set(
        w3.astype(jnp.bfloat16))                                      # (128, 128)
    b1_p = b1.reshape(1, FC1).astype(jnp.float32)
    b2_p = b2.reshape(1, FC2).astype(jnp.float32)
    b3_p = jnp.zeros((1, OUT_PAD), jnp.float32).at[:, :OUT_DIM].set(
        b3.reshape(1, OUT_DIM).astype(jnp.float32))
    return (w1_p, b1_p, w2_p, b2_p, w3_p, b3_p)


@jax.jit
def mnist_forward(x, params):
    w1_p, b1_p, w2_p, b2_p, w3_p, b3_p = params
    B = x.shape[0]
    tile_b = _pick_tile_b(B)
    n_tiles = pl.cdiv(B, tile_b)          # overhanging last block; stores are masked

    const2d = lambda shape: pl.BlockSpec(shape, lambda i: (0, 0))

    flops = 2 * n_tiles * tile_b * (IN_DIM * FC1 + FC1 * FC2 + FC2 * OUT_PAD)
    bytes_accessed = (
        x.size * 4
        + (w1_p.size + w2_p.size + w3_p.size) * 2
        + (b1_p.size + b2_p.size + b3_p.size) * 4
        + B * OUT_PAD * 2)

    out = pl.pallas_call(
        mnist_mlp_kernel,
        out_shape=jax.ShapeDtypeStruct((B, OUT_PAD), jnp.bfloat16),
        grid=(n_tiles,),
        in_specs=[
            pl.BlockSpec((tile_b, IN_DIM), lambda i: (i, 0)),  # x: streamed f32 tiles
            const2d((IN_DIM, FC1)),                            # w1: VMEM-resident
            const2d((1, FC1)),                                 # b1
            const2d((FC1, FC2)),                               # w2
            const2d((1, FC2)),                                 # b2
            const2d((FC2, OUT_PAD)),                           # w3 (padded to 128)
            const2d((1, OUT_PAD)),                             # b3 (padded to 128)
        ],
        out_specs=pl.BlockSpec((tile_b, OUT_PAD), lambda i: (i, 0)),
        compiler_params=pltpu.CompilerParams(
            dimension_semantics=("parallel",)),
        cost_estimate=pl.CostEstimate(
            flops=flops, transcendentals=0, bytes_accessed=bytes_accessed),
    )(x, w1_p, b1_p, w2_p, b2_p, w3_p, b3_p)

    return out[:, :OUT_DIM].astype(jnp.float32)


def init_linear(key, fan_in, fan_out):
    # Matches PyTorch nn.Linear default init: U(-1/sqrt(fan_in), 1/sqrt(fan_in)).
    kw, kb = jax.random.split(key)
    bound = 1.0 / jnp.sqrt(fan_in)
    w = jax.random.uniform(kw, (fan_in, fan_out), jnp.float32, -bound, bound)
    b = jax.random.uniform(kb, (fan_out,), jnp.float32, -bound, bound)
    return w, b


def reference_forward(x, w1, b1, w2, b2, w3, b3):
    # f32 reference mirroring the kernel's bf16 quantization of matmul inputs.
    q = lambda a: a.astype(jnp.bfloat16).astype(jnp.float32)
    h1 = q(jnp.maximum(q(x) @ q(w1) + b1, 0.0))
    h2 = q(jnp.maximum(h1 @ q(w2) + b2, 0.0))
    return h2 @ q(w3) + b3


if __name__ == "__main__":
    key = jax.random.PRNGKey(0)
    kx, kx2, k1, k2, k3 = jax.random.split(key, 5)

    w1, b1 = init_linear(k1, IN_DIM, FC1)
    w2, b2 = init_linear(k2, FC1, FC2)
    w3, b3 = init_linear(k3, FC2, OUT_DIM)
    params = prepare_params(w1, b1, w2, b2, w3, b3)   # one-time prep, outside forward

    # Small demo batch (single grid tile, block == full batch dim).
    x = jax.random.normal(kx, (8, IN_DIM), jnp.float32)
    out = jax.block_until_ready(mnist_forward(x, params))
    ref = reference_forward(x, w1, b1, w2, b2, w3, b3)
    assert out.shape == (8, OUT_DIM)
    assert jnp.allclose(out, ref, atol=2e-2, rtol=2e-2), "mismatch vs JAX reference (B=8)"

    # Ragged batch: exercises the multi-tile grid + overhanging (masked) last block.
    x2 = jax.random.normal(kx2, (300, IN_DIM), jnp.float32)
    out2 = jax.block_until_ready(mnist_forward(x2, params))
    ref2 = reference_forward(x2, w1, b1, w2, b2, w3, b3)
    assert out2.shape == (300, OUT_DIM)
    assert jnp.allclose(out2, ref2, atol=2e-2, rtol=2e-2), "mismatch vs JAX reference (B=300)"

    print("KERNEL_OK")
</pallas_src>

<mosaic_0001>
module attributes {stable_mosaic.version = 11 : i64} {
  func.func @mnist_mlp_kernel(%arg0: i32, %arg1: memref<8x784xf32, #tpu.memory_space<vmem>>, %arg2: memref<784x1024xbf16, #tpu.memory_space<vmem>>, %arg3: memref<1x1024xf32, #tpu.memory_space<vmem>>, %arg4: memref<1024x128xbf16, #tpu.memory_space<vmem>>, %arg5: memref<1x128xf32, #tpu.memory_space<vmem>>, %arg6: memref<128x128xbf16, #tpu.memory_space<vmem>>, %arg7: memref<1x128xf32, #tpu.memory_space<vmem>>, %arg8: memref<8x128xbf16, #tpu.memory_space<vmem>>) attributes {dimension_semantics = [#tpu.dimension_semantics<parallel>], iteration_bounds = array<i64: 1>, scalar_prefetch = 0 : i64, scratch_operands = 0 : i64, tpu.core_type = #tpu.core_type<tc>, window_params = [{transform_indices = @transform_0, window_bounds = array<i64: 8, 784>}, {pipeline_mode = #tpu.pipeline_mode<synchronous>, transform_indices = @transform_1, window_bounds = array<i64: 784, 1024>}, {pipeline_mode = #tpu.pipeline_mode<synchronous>, transform_indices = @transform_2, window_bounds = array<i64: 1, 1024>}, {pipeline_mode = #tpu.pipeline_mode<synchronous>, transform_indices = @transform_3, window_bounds = array<i64: 1024, 128>}, {pipeline_mode = #tpu.pipeline_mode<synchronous>, transform_indices = @transform_4, window_bounds = array<i64: 1, 128>}, {pipeline_mode = #tpu.pipeline_mode<synchronous>, transform_indices = @transform_5, window_bounds = array<i64: 128, 128>}, {pipeline_mode = #tpu.pipeline_mode<synchronous>, transform_indices = @transform_6, window_bounds = array<i64: 1, 128>}, {transform_indices = @transform_7, window_bounds = array<i64: 8, 128>}]} {
    %c0 = arith.constant 0 : index
    %c0_0 = arith.constant 0 : index
    %0 = vector.load %arg1[%c0, %c0_0] : memref<8x784xf32, #tpu.memory_space<vmem>>, vector<8x784xf32>
    %1 = arith.truncf %0 : vector<8x784xf32> to vector<8x784xbf16>
    %c0_1 = arith.constant 0 : index
    %c0_2 = arith.constant 0 : index
    %2 = vector.load %arg2[%c0_1, %c0_2] : memref<784x1024xbf16, #tpu.memory_space<vmem>>, vector<784x1024xbf16>
    %cst = arith.constant dense<0.000000e+00> : vector<8x1024xf32>
    %3 = tpu.matmul %1, %2, %cst {dimension_numbers = #tpu.dot_dimension_numbers<[1], [0], [0], [1], [0, 0, 1, 1], [], []>} : vector<8x784xbf16>, vector<784x1024xbf16>, vector<8x1024xf32> -> vector<8x1024xf32>
    %c0_3 = arith.constant 0 : index
    %c0_4 = arith.constant 0 : index
    %4 = vector.load %arg3[%c0_3, %c0_4] : memref<1x1024xf32, #tpu.memory_space<vmem>>, vector<1x1024xf32>
    %5 = vector.broadcast %4 : vector<1x1024xf32> to vector<8x1024xf32>
    %6 = arith.addf %3, %5 : vector<8x1024xf32>
    %cst_5 = arith.constant 0.000000e+00 : f32
    %7 = vector.broadcast %cst_5 : f32 to vector<8x1024xf32>
    %8 = arith.maximumf %6, %7 : vector<8x1024xf32>
    %9 = arith.truncf %8 : vector<8x1024xf32> to vector<8x1024xbf16>
    %c0_6 = arith.constant 0 : index
    %c0_7 = arith.constant 0 : index
    %10 = vector.load %arg4[%c0_6, %c0_7] : memref<1024x128xbf16, #tpu.memory_space<vmem>>, vector<1024x128xbf16>
    %cst_8 = arith.constant dense<0.000000e+00> : vector<8x128xf32>
    %11 = tpu.matmul %9, %10, %cst_8 {dimension_numbers = #tpu.dot_dimension_numbers<[1], [0], [0], [1], [0, 0, 1, 1], [], []>} : vector<8x1024xbf16>, vector<1024x128xbf16>, vector<8x128xf32> -> vector<8x128xf32>
    %c0_9 = arith.constant 0 : index
    %c0_10 = arith.constant 0 : index
    %12 = vector.load %arg5[%c0_9, %c0_10] : memref<1x128xf32, #tpu.memory_space<vmem>>, vector<1x128xf32>
    %13 = vector.broadcast %12 : vector<1x128xf32> to vector<8x128xf32>
    %14 = arith.addf %11, %13 : vector<8x128xf32>
    %cst_11 = arith.constant 0.000000e+00 : f32
    %15 = vector.broadcast %cst_11 : f32 to vector<8x128xf32>
    %16 = arith.maximumf %14, %15 : vector<8x128xf32>
    %17 = arith.truncf %16 : vector<8x128xf32> to vector<8x128xbf16>
    %c0_12 = arith.constant 0 : index
    %c0_13 = arith.constant 0 : index
    %18 = vector.load %arg6[%c0_12, %c0_13] : memref<128x128xbf16, #tpu.memory_space<vmem>>, vector<128x128xbf16>
    %cst_14 = arith.constant dense<0.000000e+00> : vector<8x128xf32>
    %19 = tpu.matmul %17, %18, %cst_14 {dimension_numbers = #tpu.dot_dimension_numbers<[1], [0], [0], [1], [0, 0, 1, 1], [], []>} : vector<8x128xbf16>, vector<128x128xbf16>, vector<8x128xf32> -> vector<8x128xf32>
    %c0_15 = arith.constant 0 : index
    %c0_16 = arith.constant 0 : index
    %20 = vector.load %arg7[%c0_15, %c0_16] : memref<1x128xf32, #tpu.memory_space<vmem>>, vector<1x128xf32>
    %21 = vector.broadcast %20 : vector<1x128xf32> to vector<8x128xf32>
    %22 = arith.addf %19, %21 : vector<8x128xf32>
    %23 = arith.truncf %22 : vector<8x128xf32> to vector<8x128xbf16>
    %c0_17 = arith.constant 0 : index
    %c0_18 = arith.constant 0 : index
    %24 = vector.load %arg8[%c0_17, %c0_18] : memref<8x128xbf16, #tpu.memory_space<vmem>>, vector<8x128xbf16>
    tpu.vector_store %arg8[%c0_17, %c0_18], %23 {strides = array<i32>} : memref<8x128xbf16, #tpu.memory_space<vmem>>, vector<8x128xbf16>,
    return
  }
  func.func @transform_0(%arg0: i32) -> (i32, i32) {
    %c0_i32 = arith.constant 0 : i32
    %c0_i32_0 = arith.constant 0 : i32
    return %arg0, %c0_i32 : i32, i32
  }
  func.func @transform_1(%arg0: i32) -> (i32, i32) {
    %c0_i32 = arith.constant 0 : i32
    %c0_i32_0 = arith.constant 0 : i32
    %c0_i32_1 = arith.constant 0 : i32
    return %c0_i32, %c0_i32_0 : i32, i32
  }
  func.func @transform_2(%arg0: i32) -> (i32, i32) {
    %c0_i32 = arith.constant 0 : i32
    %c0_i32_0 = arith.constant 0 : i32
    %c0_i32_1 = arith.constant 0 : i32
    return %c0_i32, %c0_i32_0 : i32, i32
  }
  func.func @transform_3(%arg0: i32) -> (i32, i32) {
    %c0_i32 = arith.constant 0 : i32
    %c0_i32_0 = arith.constant 0 : i32
    %c0_i32_1 = arith.constant 0 : i32
    return %c0_i32, %c0_i32_0 : i32, i32
  }
  func.func @transform_4(%arg0: i32) -> (i32, i32) {
    %c0_i32 = arith.constant 0 : i32
    %c0_i32_0 = arith.constant 0 : i32
    %c0_i32_1 = arith.constant 0 : i32
    return %c0_i32, %c0_i32_0 : i32, i32
  }
  func.func @transform_5(%arg0: i32) -> (i32, i32) {
    %c0_i32 = arith.constant 0 : i32
    %c0_i32_0 = arith.constant 0 : i32
    %c0_i32_1 = arith.constant 0 : i32
    return %c0_i32, %c0_i32_0 : i32, i32
  }
  func.func @transform_6(%arg0: i32) -> (i32, i32) {
    %c0_i32 = arith.constant 0 : i32
    %c0_i32_0 = arith.constant 0 : i32
    %c0_i32_1 = arith.constant 0 : i32
    return %c0_i32, %c0_i32_0 : i32, i32
  }
  func.func @transform_7(%arg0: i32) -> (i32, i32) {
    %c0_i32 = arith.constant 0 : i32
    %c0_i32_0 = arith.constant 0 : i32
    return %arg0, %c0_i32 : i32, i32
  }
}

</mosaic_0001>

<llo_original>
// kernel: mnist_forward.1
$region0: #{mnist_forward.1}
  #allocation0 [shape = 'u32[]', space=smem, size = 0x4, offset = 0x4, fixed_abs, tag = 'smem constant byte address 0x4 - core index']
  #allocation1 [shape = 'u32[144,128]{1,0:T(1,128)}', space=vmem, size = 0x12000, scoped, tag = 'internal scratch']
  %s0 = inlined_call_operand.hbm [shape: f32[8,784], index: 0, kind: input, shape index: {}]
  %s1 = inlined_call_operand.hbm [shape: bf16[784,1024], index: 1, kind: input, shape index: {}]
  %s2 = inlined_call_operand.hbm [shape: f32[1,1024], index: 2, kind: input, shape index: {}]
  %s3 = inlined_call_operand.hbm [shape: bf16[1024,128], index: 3, kind: input, shape index: {}]
  %s4 = inlined_call_operand.hbm [shape: f32[1,128], index: 4, kind: input, shape index: {}]
  %s5 = inlined_call_operand.hbm [shape: bf16[128,128], index: 5, kind: input, shape index: {}]
  %s6 = inlined_call_operand.hbm [shape: f32[1,128], index: 6, kind: input, shape index: {}]
  %s7 = inlined_call_operand.vmem [shape: bf16[8,128], index: 7, kind: output, shape index: {}]
  %s8 = sld [smem:[#allocation0]]
  $region66: #{mnist_forward.1} parent=0
    _
  %s10 = ssub.s32 1, %s8
  %s11 = scalar_select 0, %s10, %s8
  $region1: #{mnist_forward.1} parent=0
    #allocation2 [shape = 'u8[28672]{0}', space=vmem, size = 0x7000, scoped, tag = 'input window, operand 0, single buffered']
    #allocation3 [shape = 's32[1]{0}', space=sflag, size = 0x4, scoped, tag = 'scoped memory for mnist_forward.1']
    #allocation4 [shape = 'u8[1605632]{0}', space=vmem, size = 0x188000, scoped, tag = 'input window, operand 1, single buffered']
    #allocation5 [shape = 's32[1]{0}', space=sflag, size = 0x4, scoped, tag = 'scoped memory for mnist_forward.1']
    #allocation6 [shape = 'u8[4096]{0}', space=vmem, size = 0x1000, scoped, tag = 'input window, operand 2, single buffered']
    #allocation7 [shape = 'u8[262144]{0}', space=vmem, size = 0x40000, scoped, tag = 'input window, operand 3, single buffered']
    #allocation8 [shape = 's32[1]{0}', space=sflag, size = 0x4, scoped, tag = 'scoped memory for mnist_forward.1']
    #allocation9 [shape = 'u8[512]{0}', space=vmem, size = 0x400, scoped, tag = 'input window, operand 4, single buffered']
    #allocation10 [shape = 'u8[32768]{0}', space=vmem, size = 0x8000, scoped, tag = 'input window, operand 5, single buffered']
    #allocation11 [shape = 's32[1]{0}', space=sflag, size = 0x4, scoped, tag = 'scoped memory for mnist_forward.1']
    #allocation12 [shape = 'u8[512]{0}', space=vmem, size = 0x400, scoped, tag = 'input window, operand 6, single buffered']
    %12 = vsyncpa [#allocation3], 0
    %13 = vsyncpa [#allocation5], 0
    %14 = vsyncpa [#allocation8], 0
    %15 = vsyncpa [#allocation11], 0
    // Predicated region
    $region2: #{mnist_forward.1} parent=1 // pred_check
      _
    $region3: #{mnist_forward.1} parent=1 // pred_check_branch
      %17 = sbr.rel (0) target = $region5
    $region4: #{mnist_forward.1} parent=1 // pred_region
      %s19 = ssub.s32 896, 896
      %20 = vsyncadd [#allocation3], %s19
      %s22 = sshll.u32 [#allocation2], 4
      %s23 = int_to_ptr.vmem [resolvable:$true] %s22
      %25 = dma.hbm_to_vmem [thread:$0]  %s0, 896, %s23, [#allocation3]
    $region5: #{mnist_forward.1} parent=1 // pred_fallthru
      _
    // Predicated region
    $region6: #{mnist_forward.1} parent=1 // pred_check
      _
    $region7: #{mnist_forward.1} parent=1 // pred_check_branch
      %27 = sbr.rel (0) target = $region9
    $region8: #{mnist_forward.1} parent=1 // pred_region
      %s29 = ssub.s32 50176, 50176
      %30 = vsyncadd [#allocation5], %s29
      %s31 = sshll.u32 [#allocation4], 4
      %s32 = int_to_ptr.vmem [resolvable:$true] %s31
      %37 = dma.hbm_to_vmem [thread:$0]  %s1, 50176, %s32, [#allocation5], 512, 512, 32
    $region9: #{mnist_forward.1} parent=1 // pred_fallthru
      _
    // Predicated region
    $region10: #{mnist_forward.1} parent=1 // pred_check
      _
    $region11: #{mnist_forward.1} parent=1 // pred_check_branch
      %39 = sbr.rel (0) target = $region13
    $region12: #{mnist_forward.1} parent=1 // pred_region
      %s41 = ssub.s32 128, 128
      %42 = vsyncadd [#allocation5], %s41
      %s44 = sshll.u32 [#allocation6], 4
      %s45 = int_to_ptr.vmem [resolvable:$true] %s44
      %47 = dma.hbm_to_vmem [thread:$0]  %s2, 128, %s45, [#allocation5]
    $region13: #{mnist_forward.1} parent=1 // pred_fallthru
      _
    // Predicated region
    $region14: #{mnist_forward.1} parent=1 // pred_check
      _
    $region15: #{mnist_forward.1} parent=1 // pred_check_branch
      %49 = sbr.rel (0) target = $region17
    $region16: #{mnist_forward.1} parent=1 // pred_region
      %s51 = ssub.s32 8192, 8192
      %52 = vsyncadd [#allocation8], %s51
      %s53 = sshll.u32 [#allocation7], 4
      %s54 = int_to_ptr.vmem [resolvable:$true] %s53
      %59 = dma.hbm_to_vmem [thread:$0]  %s3, 8192, %s54, [#allocation8], 64, 64, 4
    $region17: #{mnist_forward.1} parent=1 // pred_fallthru
      _
    // Predicated region
    $region18: #{mnist_forward.1} parent=1 // pred_check
      _
    $region19: #{mnist_forward.1} parent=1 // pred_check_branch
      %61 = sbr.rel (0) target = $region21
    $region20: #{mnist_forward.1} parent=1 // pred_region
      %s63 = ssub.s32 16, 16
      %64 = vsyncadd [#allocation8], %s63
      %s66 = sshll.u32 [#allocation9], 4
      %s67 = int_to_ptr.vmem [resolvable:$true] %s66
      %69 = dma.hbm_to_vmem [thread:$0]  %s4, 16, %s67, [#allocation8]
    $region21: #{mnist_forward.1} parent=1 // pred_fallthru
      _
    // Predicated region
    $region22: #{mnist_forward.1} parent=1 // pred_check
      _
    $region23: #{mnist_forward.1} parent=1 // pred_check_branch
      %71 = sbr.rel (0) target = $region25
    $region24: #{mnist_forward.1} parent=1 // pred_region
      %s73 = ssub.s32 1024, 1024
      %74 = vsyncadd [#allocation11], %s73
      %s75 = sshll.u32 [#allocation10], 4
      %s76 = int_to_ptr.vmem [resolvable:$true] %s75
      %81 = dma.hbm_to_vmem [thread:$0]  %s5, 1024, %s76, [#allocation11], 64, 64, 4
    $region25: #{mnist_forward.1} parent=1 // pred_fallthru
      _
    // Predicated region
    $region26: #{mnist_forward.1} parent=1 // pred_check
      _
    $region27: #{mnist_forward.1} parent=1 // pred_check_branch
      %83 = sbr.rel (0) target = $region29
    $region28: #{mnist_forward.1} parent=1 // pred_region
      %s85 = ssub.s32 16, 16
      %86 = vsyncadd [#allocation11], %s85
      %s88 = sshll.u32 [#allocation12], 4
      %s89 = int_to_ptr.vmem [resolvable:$true] %s88
      %91 = dma.hbm_to_vmem [thread:$0]  %s6, 16, %s89, [#allocation11]
    $region29: #{mnist_forward.1} parent=1 // pred_fallthru
      _
    // Predicated region
    $region30: #{mnist_forward.1} parent=1 // pred_check
      _
    $region31: #{mnist_forward.1} parent=1 // pred_check_branch
      %93 = sbr.rel (0) target = $region33
    $region32: #{mnist_forward.1} parent=1 // pred_region
      %94 = dma.done [#allocation3], 896
    $region33: #{mnist_forward.1} parent=1 // pred_fallthru
      _
    // Predicated region
    $region34: #{mnist_forward.1} parent=1 // pred_check
      _
    $region35: #{mnist_forward.1} parent=1 // pred_check_branch
      %96 = sbr.rel (0) target = $region37
    $region36: #{mnist_forward.1} parent=1 // pred_region
      %97 = dma.done [#allocation5], 50176
    $region37: #{mnist_forward.1} parent=1 // pred_fallthru
      _
    // Predicated region
    $region38: #{mnist_forward.1} parent=1 // pred_check
      _
    $region39: #{mnist_forward.1} parent=1 // pred_check_branch
      %99 = sbr.rel (0) target = $region41
    $region40: #{mnist_forward.1} parent=1 // pred_region
      %100 = dma.done [#allocation5], 128
    $region41: #{mnist_forward.1} parent=1 // pred_fallthru
      _
    // Predicated region
    $region42: #{mnist_forward.1} parent=1 // pred_check
      _
    $region43: #{mnist_forward.1} parent=1 // pred_check_branch
      %102 = sbr.rel (0) target = $region45
    $region44: #{mnist_forward.1} parent=1 // pred_region
      %103 = dma.done [#allocation8], 8192
    $region45: #{mnist_forward.1} parent=1 // pred_fallthru
      _
    // Predicated region
    $region46: #{mnist_forward.1} parent=1 // pred_check
      _
    $region47: #{mnist_forward.1} parent=1 // pred_check_branch
      %105 = sbr.rel (0) target = $region49
    $region48: #{mnist_forward.1} parent=1 // pred_region
      %106 = dma.done [#allocation8], 16
    $region49: #{mnist_forward.1} parent=1 // pred_fallthru
      _
    // Predicated region
    $region50: #{mnist_forward.1} parent=1 // pred_check
      _
    $region51: #{mnist_forward.1} parent=1 // pred_check_branch
      %108 = sbr.rel (0) target = $region53
    $region52: #{mnist_forward.1} parent=1 // pred_region
      %109 = dma.done [#allocation11], 1024
    $region53: #{mnist_forward.1} parent=1 // pred_fallthru
      _
    // Predicated region
    $region54: #{mnist_forward.1} parent=1 // pred_check
      _
    $region55: #{mnist_forward.1} parent=1 // pred_check_branch
      %111 = sbr.rel (0) target = $region57
    $region56: #{mnist_forward.1} parent=1 // pred_region
      %112 = dma.done [#allocation11], 16
    $region57: #{mnist_forward.1} parent=1 // pred_fallthru
      _
    %v114 = vld [vmem:[#allocation2] sm:$0xff]
    %v115 = vld [vmem:[#allocation2 + $0x8] sm:$0xff]
    %v116 = vld [vmem:[#allocation2 + $0x10] sm:$0xff]
    %v117 = vld [vmem:[#allocation2 + $0x18] sm:$0xff]
    %v118 = vld [vmem:[#allocation2 + $0x20] sm:$0xff]
    %v119 = vld [vmem:[#allocation2 + $0x28] sm:$0xff]
    %v120 = vld [vmem:[#allocation2 + $0x30] sm:$0xff]
    %v121 = vpack.c.bf16 %v114, %v114
    %v122 = vpack.c.bf16 %v115, %v115
    %v123 = vpack.c.bf16 %v116, %v116
    %v124 = vpack.c.bf16 %v117, %v117
    %v125 = vpack.c.bf16 %v118, %v118
    %v126 = vpack.c.bf16 %v119, %v119
    %v127 = vpack.c.bf16 %v120, %v120
    %v128 = vld [vmem:[#allocation4] sm:$0xff]
    %v129 = vld [vmem:[#allocation4 + $0x8] sm:$0xff]
    %v130 = vld [vmem:[#allocation4 + $0x10] sm:$0xff]
    %v131 = vld [vmem:[#allocation4 + $0x18] sm:$0xff]
    %v132 = vld [vmem:[#allocation4 + $0x20] sm:$0xff]
    %v133 = vld [vmem:[#allocation4 + $0x28] sm:$0xff]
    %v134 = vld [vmem:[#allocation4 + $0x30] sm:$0xff]
    %v135 = vld [vmem:[#allocation4 + $0x38] sm:$0xff]
    %v136 = vld [vmem:[#allocation4 + $0x40] sm:$0xff]
    %v137 = vld [vmem:[#allocation4 + $0x48] sm:$0xff]
    %v138 = vld [vmem:[#allocation4 + $0x50] sm:$0xff]
    %v139 = vld [vmem:[#allocation4 + $0x58] sm:$0xff]
    %v140 = vld [vmem:[#allocation4 + $0x60] sm:$0xff]
    %v141 = vld [vmem:[#allocation4 + $0x68] sm:$0xff]
    %v142 = vld [vmem:[#allocation4 + $0x70] sm:$0xff]
    %v143 = vld [vmem:[#allocation4 + $0x78] sm:$0xff]
    %v144 = vld [vmem:[#allocation4 + $0x80] sm:$0xff]
    %v145 = vld [vmem:[#allocation4 + $0x88] sm:$0xff]
    %v146 = vld [vmem:[#allocation4 + $0x90] sm:$0xff]
    %v147 = vld [vmem:[#allocation4 + $0x98] sm:$0xff]
    %v148 = vld [vmem:[#allocation4 + $0xa0] sm:$0xff]
    %v149 = vld [vmem:[#allocation4 + $0xa8] sm:$0xff]
    %v150 = vld [vmem:[#allocation4 + $0xb0] sm:$0xff]
    %v151 = vld [vmem:[#allocation4 + $0xb8] sm:$0xff]
    %v152 = vld [vmem:[#allocation4 + $0xc0] sm:$0xff]
    %v153 = vld [vmem:[#allocation4 + $0xc8] sm:$0xff]
    %v154 = vld [vmem:[#allocation4 + $0xd0] sm:$0xff]
    %v155 = vld [vmem:[#allocation4 + $0xd8] sm:$0xff]
    %v156 = vld [vmem:[#allocation4 + $0xe0] sm:$0xff]
    %v157 = vld [vmem:[#allocation4 + $0xe8] sm:$0xff]
    %v158 = vld [vmem:[#allocation4 + $0xf0] sm:$0xff]
    %v159 = vld [vmem:[#allocation4 + $0xf8] sm:$0xff]
    %v160 = vld [vmem:[#allocation4 + $0x100] sm:$0xff]
    %v161 = vld [vmem:[#allocation4 + $0x108] sm:$0xff]
    %v162 = vld [vmem:[#allocation4 + $0x110] sm:$0xff]
    %v163 = vld [vmem:[#allocation4 + $0x118] sm:$0xff]
    %v164 = vld [vmem:[#allocation4 + $0x120] sm:$0xff]
    %v165 = vld [vmem:[#allocation4 + $0x128] sm:$0xff]
    %v166 = vld [vmem:[#allocation4 + $0x130] sm:$0xff]
    %v167 = vld [vmem:[#allocation4 + $0x138] sm:$0xff]
    %v168 = vld [vmem:[#allocation4 + $0x140] sm:$0xff]
    %v169 = vld [vmem:[#allocation4 + $0x148] sm:$0xff]
    %v170 = vld [vmem:[#allocation4 + $0x150] sm:$0xff]
    %v171 = vld [vmem:[#allocation4 + $0x158] sm:$0xff]
    %v172 = vld [vmem:[#allocation4 + $0x160] sm:$0xff]
    %v173 = vld [vmem:[#allocation4 + $0x168] sm:$0xff]
    %v174 = vld [vmem:[#allocation4 + $0x170] sm:$0xff]
    %v175 = vld [vmem:[#allocation4 + $0x178] sm:$0xff]
    %v176 = vld [vmem:[#allocation4 + $0x180] sm:$0xff]
    %v177 = vld [vmem:[#allocation4 + $0x188] sm:$0xff]
    %v178 = vld [vmem:[#allocation4 + $0x190] sm:$0xff]
    %v179 = vld [vmem:[#allocation4 + $0x198] sm:$0xff]
    %v180 = vld [vmem:[#allocation4 + $0x1a0] sm:$0xff]
    %v181 = vld [vmem:[#allocation4 + $0x1a8] sm:$0xff]
    %v182 = vld [vmem:[#allocation4 + $0x1b0] sm:$0xff]
    %v183 = vld [vmem:[#allocation4 + $0x1b8] sm:$0xff]
    %v184 = vld [vmem:[#allocation4 + $0x1c0] sm:$0xff]
    %v185 = vld [vmem:[#allocation4 + $0x1c8] sm:$0xff]
    %v186 = vld [vmem:[#allocation4 + $0x1d0] sm:$0xff]
    %v187 = vld [vmem:[#allocation4 + $0x1d8] sm:$0xff]
    %v188 = vld [vmem:[#allocation4 + $0x1e0] sm:$0xff]
    %v189 = vld [vmem:[#allocation4 + $0x1e8] sm:$0xff]
    %v190 = vld [vmem:[#allocation4 + $0x1f0] sm:$0xff]
    %v191 = vld [vmem:[#allocation4 + $0x1f8] sm:$0xff]
    %v192 = vld [vmem:[#allocation4 + $0x200] sm:$0xff]
    %v193 = vld [vmem:[#allocation4 + $0x208] sm:$0xff]
    %v194 = vld [vmem:[#allocation4 + $0x210] sm:$0xff]
    %v195 = vld [vmem:[#allocation4 + $0x218] sm:$0xff]
    %v196 = vld [vmem:[#allocation4 + $0x220] sm:$0xff]
    %v197 = vld [vmem:[#allocation4 + $0x228] sm:$0xff]
    %v198 = vld [vmem:[#allocation4 + $0x230] sm:$0xff]
    %v199 = vld [vmem:[#allocation4 + $0x238] sm:$0xff]
    %v200 = vld [vmem:[#allocation4 + $0x240] sm:$0xff]
    %v201 = vld [vmem:[#allocation4 + $0x248] sm:$0xff]
    %v202 = vld [vmem:[#allocation4 + $0x250] sm:$0xff]
    %v203 = vld [vmem:[#allocation4 + $0x258] sm:$0xff]
    %v204 = vld [vmem:[#allocation4 + $0x260] sm:$0xff]
    %v205 = vld [vmem:[#allocation4 + $0x268] sm:$0xff]
    %v206 = vld [vmem:[#allocation4 + $0x270] sm:$0xff]
    %v207 = vld [vmem:[#allocation4 + $0x278] sm:$0xff]
    %v208 = vld [vmem:[#allocation4 + $0x280] sm:$0xff]
    %v209 = vld [vmem:[#allocation4 + $0x288] sm:$0xff]
    %v210 = vld [vmem:[#allocation4 + $0x290] sm:$0xff]
    %v211 = vld [vmem:[#allocation4 + $0x298] sm:$0xff]
    %v212 = vld [vmem:[#allocation4 + $0x2a0] sm:$0xff]
    %v213 = vld [vmem:[#allocation4 + $0x2a8] sm:$0xff]
    %v214 = vld [vmem:[#allocation4 + $0x2b0] sm:$0xff]
    %v215 = vld [vmem:[#allocation4 + $0x2b8] sm:$0xff]
    %v216 = vld [vmem:[#allocation4 + $0x2c0] sm:$0xff]
    %v217 = vld [vmem:[#allocation4 + $0x2c8] sm:$0xff]
    %v218 = vld [vmem:[#allocation4 + $0x2d0] sm:$0xff]
    %v219 = vld [vmem:[#allocation4 + $0x2d8] sm:$0xff]
    %v220 = vld [vmem:[#allocation4 + $0x2e0] sm:$0xff]
    %v221 = vld [vmem:[#allocation4 + $0x2e8] sm:$0xff]
    %v222 = vld [vmem:[#allocation4 + $0x2f0] sm:$0xff]
    %v223 = vld [vmem:[#allocation4 + $0x2f8] sm:$0xff]
    %v224 = vld [vmem:[#allocation4 + $0x300] sm:$0xff]
    %v225 = vld [vmem:[#allocation4 + $0x308] sm:$0xff]
    %v226 = vld [vmem:[#allocation4 + $0x310] sm:$0xff]
    %v227 = vld [vmem:[#allocation4 + $0x318] sm:$0xff]
    %v228 = vld [vmem:[#allocation4 + $0x320] sm:$0xff]
    %v229 = vld [vmem:[#allocation4 + $0x328] sm:$0xff]
    %v230 = vld [vmem:[#allocation4 + $0x330] sm:$0xff]
    %v231 = vld [vmem:[#allocation4 + $0x338] sm:$0xff]
    %v232 = vld [vmem:[#allocation4 + $0x340] sm:$0xff]
    %v233 = vld [vmem:[#allocation4 + $0x348] sm:$0xff]
    %v234 = vld [vmem:[#allocation4 + $0x350] sm:$0xff]
    %v235 = vld [vmem:[#allocation4 + $0x358] sm:$0xff]
    %v236 = vld [vmem:[#allocation4 + $0x360] sm:$0xff]
    %v237 = vld [vmem:[#allocation4 + $0x368] sm:$0xff]
    %v238 = vld [vmem:[#allocation4 + $0x370] sm:$0xff]
    %v239 = vld [vmem:[#allocation4 + $0x378] sm:$0xff]
    %v240 = vld [vmem:[#allocation4 + $0x380] sm:$0xff]
    %v241 = vld [vmem:[#allocation4 + $0x388] sm:$0xff]
    %v242 = vld [vmem:[#allocation4 + $0x390] sm:$0xff]
    %v243 = vld [vmem:[#allocation4 + $0x398] sm:$0xff]
    %v244 = vld [vmem:[#allocation4 + $0x3a0] sm:$0xff]
    %v245 = vld [vmem:[#allocation4 + $0x3a8] sm:$0xff]
    %v246 = vld [vmem:[#allocation4 + $0x3b0] sm:$0xff]
    %v247 = vld [vmem:[#allocation4 + $0x3b8] sm:$0xff]
    %v248 = vld [vmem:[#allocation4 + $0x3c0] sm:$0xff]
    %v249 = vld [vmem:[#allocation4 + $0x3c8] sm:$0xff]
    %v250 = vld [vmem:[#allocation4 + $0x3d0] sm:$0xff]
    %v251 = vld [vmem:[#allocation4 + $0x3d8] sm:$0xff]
    %v252 = vld [vmem:[#allocation4 + $0x3e0] sm:$0xff]
    %v253 = vld [vmem:[#allocation4 + $0x3e8] sm:$0xff]
    %v254 = vld [vmem:[#allocation4 + $0x3f0] sm:$0xff]
    %v255 = vld [vmem:[#allocation4 + $0x3f8] sm:$0xff]
    %v256 = vld [vmem:[#allocation4 + $0x400] sm:$0xff]
    %v257 = vld [vmem:[#allocation4 + $0x408] sm:$0xff]
    %v258 = vld [vmem:[#allocation4 + $0x410] sm:$0xff]
    %v259 = vld [vmem:[#allocation4 + $0x418] sm:$0xff]
    %v260 = vld [vmem:[#allocation4 + $0x420] sm:$0xff]
    %v261 = vld [vmem:[#allocation4 + $0x428] sm:$0xff]
    %v262 = vld [vmem:[#allocation4 + $0x430] sm:$0xff]
    %v263 = vld [vmem:[#allocation4 + $0x438] sm:$0xff]
    %v264 = vld [vmem:[#allocation4 + $0x440] sm:$0xff]
    %v265 = vld [vmem:[#allocation4 + $0x448] sm:$0xff]
    %v266 = vld [vmem:[#allocation4 + $0x450] sm:$0xff]
    %v267 = vld [vmem:[#allocation4 + $0x458] sm:$0xff]
    %v268 = vld [vmem:[#allocation4 + $0x460] sm:$0xff]
    %v269 = vld [vmem:[#allocation4 + $0x468] sm:$0xff]
    %v270 = vld [vmem:[#allocation4 + $0x470] sm:$0xff]
    %v271 = vld [vmem:[#allocation4 + $0x478] sm:$0xff]
    %v272 = vld [vmem:[#allocation4 + $0x480] sm:$0xff]
    %v273 = vld [vmem:[#allocation4 + $0x488] sm:$0xff]
    %v274 = vld [vmem:[#allocation4 + $0x490] sm:$0xff]
    %v275 = vld [vmem:[#allocation4 + $0x498] sm:$0xff]
    %v276 = vld [vmem:[#allocation4 + $0x4a0] sm:$0xff]
    %v277 = vld [vmem:[#allocation4 + $0x4a8] sm:$0xff]
    %v278 = vld [vmem:[#allocation4 + $0x4b0] sm:$0xff]
    %v279 = vld [vmem:[#allocation4 + $0x4b8] sm:$0xff]
    %v280 = vld [vmem:[#allocation4 + $0x4c0] sm:$0xff]
    %v281 = vld [vmem:[#allocation4 + $0x4c8] sm:$0xff]
    %v282 = vld [vmem:[#allocation4 + $0x4d0] sm:$0xff]
    %v283 = vld [vmem:[#allocation4 + $0x4d8] sm:$0xff]
    %v284 = vld [vmem:[#allocation4 + $0x4e0] sm:$0xff]
    %v285 = vld [vmem:[#allocation4 + $0x4e8] sm:$0xff]
    %v286 = vld [vmem:[#allocation4 + $0x4f0] sm:$0xff]
    %v287 = vld [vmem:[#allocation4 + $0x4f8] sm:$0xff]
    %v288 = vld [vmem:[#allocation4 + $0x500] sm:$0xff]
    %v289 = vld [vmem:[#allocation4 + $0x508] sm:$0xff]
    %v290 = vld [vmem:[#allocation4 + $0x510] sm:$0xff]
    %v291 = vld [vmem:[#allocation4 + $0x518] sm:$0xff]
    %v292 = vld [vmem:[#allocation4 + $0x520] sm:$0xff]
    %v293 = vld [vmem:[#allocation4 + $0x528] sm:$0xff]
    %v294 = vld [vmem:[#allocation4 + $0x530] sm:$0xff]
    %v295 = vld [vmem:[#allocation4 + $0x538] sm:$0xff]
    %v296 = vld [vmem:[#allocation4 + $0x540] sm:$0xff]
    %v297 = vld [vmem:[#allocation4 + $0x548] sm:$0xff]
    %v298 = vld [vmem:[#allocation4 + $0x550] sm:$0xff]
    %v299 = vld [vmem:[#allocation4 + $0x558] sm:$0xff]
    %v300 = vld [vmem:[#allocation4 + $0x560] sm:$0xff]
    %v301 = vld [vmem:[#allocation4 + $0x568] sm:$0xff]
    %v302 = vld [vmem:[#allocation4 + $0x570] sm:$0xff]
    %v303 = vld [vmem:[#allocation4 + $0x578] sm:$0xff]
    %v304 = vld [vmem:[#allocation4 + $0x580] sm:$0xff]
    %v305 = vld [vmem:[#allocation4 + $0x588] sm:$0xff]
    %v306 = vld [vmem:[#allocation4 + $0x590] sm:$0xff]
    %v307 = vld [vmem:[#allocation4 + $0x598] sm:$0xff]
    %v308 = vld [vmem:[#allocation4 + $0x5a0] sm:$0xff]
    %v309 = vld [vmem:[#allocation4 + $0x5a8] sm:$0xff]
    %v310 = vld [vmem:[#allocation4 + $0x5b0] sm:$0xff]
    %v311 = vld [vmem:[#allocation4 + $0x5b8] sm:$0xff]
    %v312 = vld [vmem:[#allocation4 + $0x5c0] sm:$0xff]
    %v313 = vld [vmem:[#allocation4 + $0x5c8] sm:$0xff]
    %v314 = vld [vmem:[#allocation4 + $0x5d0] sm:$0xff]
    %v315 = vld [vmem:[#allocation4 + $0x5d8] sm:$0xff]
    %v316 = vld [vmem:[#allocation4 + $0x5e0] sm:$0xff]
    %v317 = vld [vmem:[#allocation4 + $0x5e8] sm:$0xff]
    %v318 = vld [vmem:[#allocation4 + $0x5f0] sm:$0xff]
    %v319 = vld [vmem:[#allocation4 + $0x5f8] sm:$0xff]
    %v320 = vld [vmem:[#allocation4 + $0x600] sm:$0xff]
    %v321 = vld [vmem:[#allocation4 + $0x608] sm:$0xff]
    %v322 = vld [vmem:[#allocation4 + $0x610] sm:$0xff]
    %v323 = vld [vmem:[#allocation4 + $0x618] sm:$0xff]
    %v324 = vld [vmem:[#allocation4 + $0x620] sm:$0xff]
    %v325 = vld [vmem:[#allocation4 + $0x628] sm:$0xff]
    %v326 = vld [vmem:[#allocation4 + $0x630] sm:$0xff]
    %v327 = vld [vmem:[#allocation4 + $0x638] sm:$0xff]
    %v328 = vld [vmem:[#allocation4 + $0x640] sm:$0xff]
    %v329 = vld [vmem:[#allocation4 + $0x648] sm:$0xff]
    %v330 = vld [vmem:[#allocation4 + $0x650] sm:$0xff]
    %v331 = vld [vmem:[#allocation4 + $0x658] sm:$0xff]
    %v332 = vld [vmem:[#allocation4 + $0x660] sm:$0xff]
    %v333 = vld [vmem:[#allocation4 + $0x668] sm:$0xff]
    %v334 = vld [vmem:[#allocation4 + $0x670] sm:$0xff]
    %v335 = vld [vmem:[#allocation4 + $0x678] sm:$0xff]
    %v336 = vld [vmem:[#allocation4 + $0x680] sm:$0xff]
    %v337 = vld [vmem:[#allocation4 + $0x688] sm:$0xff]
    %v338 = vld [vmem:[#allocation4 + $0x690] sm:$0xff]
    %v339 = vld [vmem:[#allocation4 + $0x698] sm:$0xff]
    %v340 = vld [vmem:[#allocation4 + $0x6a0] sm:$0xff]
    %v341 = vld [vmem:[#allocation4 + $0x6a8] sm:$0xff]
    %v342 = vld [vmem:[#allocation4 + $0x6b0] sm:$0xff]
    %v343 = vld [vmem:[#allocation4 + $0x6b8] sm:$0xff]
    %v344 = vld [vmem:[#allocation4 + $0x6c0] sm:$0xff]
    %v345 = vld [vmem:[#allocation4 + $0x6c8] sm:$0xff]
    %v346 = vld [vmem:[#allocation4 + $0x6d0] sm:$0xff]
    %v347 = vld [vmem:[#allocation4 + $0x6d8] sm:$0xff]
    %v348 = vld [vmem:[#allocation4 + $0x6e0] sm:$0xff]
    %v349 = vld [vmem:[#allocation4 + $0x6e8] sm:$0xff]
    %v350 = vld [vmem:[#allocation4 + $0x6f0] sm:$0xff]
    %v351 = vld [vmem:[#allocation4 + $0x6f8] sm:$0xff]
    %v352 = vld [vmem:[#allocation4 + $0x700] sm:$0xff]
    %v353 = vld [vmem:[#allocation4 + $0x708] sm:$0xff]
    %v354 = vld [vmem:[#allocation4 + $0x710] sm:$0xff]
    %v355 = vld [vmem:[#allocation4 + $0x718] sm:$0xff]
    %v356 = vld [vmem:[#allocation4 + $0x720] sm:$0xff]
    %v357 = vld [vmem:[#allocation4 + $0x728] sm:$0xff]
    %v358 = vld [vmem:[#allocation4 + $0x730] sm:$0xff]
    %v359 = vld [vmem:[#allocation4 + $0x738] sm:$0xff]
    %v360 = vld [vmem:[#allocation4 + $0x740] sm:$0xff]
    %v361 = vld [vmem:[#allocation4 + $0x748] sm:$0xff]
    %v362 = vld [vmem:[#allocation4 + $0x750] sm:$0xff]
    %v363 = vld [vmem:[#allocation4 + $0x758] sm:$0xff]
    %v364 = vld [vmem:[#allocation4 + $0x760] sm:$0xff]
    %v365 = vld [vmem:[#allocation4 + $0x768] sm:$0xff]
    %v366 = vld [vmem:[#allocation4 + $0x770] sm:$0xff]
    %v367 = vld [vmem:[#allocation4 + $0x778] sm:$0xff]
    %v368 = vld [vmem:[#allocation4 + $0x780] sm:$0xff]
    %v369 = vld [vmem:[#allocation4 + $0x788] sm:$0xff]
    %v370 = vld [vmem:[#allocation4 + $0x790] sm:$0xff]
    %v371 = vld [vmem:[#allocation4 + $0x798] sm:$0xff]
    %v372 = vld [vmem:[#allocation4 + $0x7a0] sm:$0xff]
    %v373 = vld [vmem:[#allocation4 + $0x7a8] sm:$0xff]
    %v374 = vld [vmem:[#allocation4 + $0x7b0] sm:$0xff]
    %v375 = vld [vmem:[#allocation4 + $0x7b8] sm:$0xff]
    %v376 = vld [vmem:[#allocation4 + $0x7c0] sm:$0xff]
    %v377 = vld [vmem:[#allocation4 + $0x7c8] sm:$0xff]
    %v378 = vld [vmem:[#allocation4 + $0x7d0] sm:$0xff]
    %v379 = vld [vmem:[#allocation4 + $0x7d8] sm:$0xff]
    %v380 = vld [vmem:[#allocation4 + $0x7e0] sm:$0xff]
    %v381 = vld [vmem:[#allocation4 + $0x7e8] sm:$0xff]
    %v382 = vld [vmem:[#allocation4 + $0x7f0] sm:$0xff]
    %v383 = vld [vmem:[#allocation4 + $0x7f8] sm:$0xff]
    %v384 = vld [vmem:[#allocation4 + $0x800] sm:$0xff]
    %v385 = vld [vmem:[#allocation4 + $0x808] sm:$0xff]
    %v386 = vld [vmem:[#allocation4 + $0x810] sm:$0xff]
    %v387 = vld [vmem:[#allocation4 + $0x818] sm:$0xff]
    %v388 = vld [vmem:[#allocation4 + $0x820] sm:$0xff]
    %v389 = vld [vmem:[#allocation4 + $0x828] sm:$0xff]
    %v390 = vld [vmem:[#allocation4 + $0x830] sm:$0xff]
    %v391 = vld [vmem:[#allocation4 + $0x838] sm:$0xff]
    %v392 = vld [vmem:[#allocation4 + $0x840] sm:$0xff]
    %v393 = vld [vmem:[#allocation4 + $0x848] sm:$0xff]
    %v394 = vld [vmem:[#allocation4 + $0x850] sm:$0xff]
    %v395 = vld [vmem:[#allocation4 + $0x858] sm:$0xff]
    %v396 = vld [vmem:[#allocation4 + $0x860] sm:$0xff]
    %v397 = vld [vmem:[#allocation4 + $0x868] sm:$0xff]
    %v398 = vld [vmem:[#allocation4 + $0x870] sm:$0xff]
    %v399 = vld [vmem:[#allocation4 + $0x878] sm:$0xff]
    %v400 = vld [vmem:[#allocation4 + $0x880] sm:$0xff]
    %v401 = vld [vmem:[#allocation4 + $0x888] sm:$0xff]
    %v402 = vld [vmem:[#allocation4 + $0x890] sm:$0xff]
    %v403 = vld [vmem:[#allocation4 + $0x898] sm:$0xff]
    %v404 = vld [vmem:[#allocation4 + $0x8a0] sm:$0xff]
    %v405 = vld [vmem:[#allocation4 + $0x8a8] sm:$0xff]
    %v406 = vld [vmem:[#allocation4 + $0x8b0] sm:$0xff]
    %v407 = vld [vmem:[#allocation4 + $0x8b8] sm:$0xff]
    %v408 = vld [vmem:[#allocation4 + $0x8c0] sm:$0xff]
    %v409 = vld [vmem:[#allocation4 + $0x8c8] sm:$0xff]
    %v410 = vld [vmem:[#allocation4 + $0x8d0] sm:$0xff]
    %v411 = vld [vmem:[#allocation4 + $0x8d8] sm:$0xff]
    %v412 = vld [vmem:[#allocation4 + $0x8e0] sm:$0xff]
    %v413 = vld [vmem:[#allocation4 + $0x8e8] sm:$0xff]
    %v414 = vld [vmem:[#allocation4 + $0x8f0] sm:$0xff]
    %v415 = vld [vmem:[#allocation4 + $0x8f8] sm:$0xff]
    %v416 = vld [vmem:[#allocation4 + $0x900] sm:$0xff]
    %v417 = vld [vmem:[#allocation4 + $0x908] sm:$0xff]
    %v418 = vld [vmem:[#allocation4 + $0x910] sm:$0xff]
    %v419 = vld [vmem:[#allocation4 + $0x918] sm:$0xff]
    %v420 = vld [vmem:[#allocation4 + $0x920] sm:$0xff]
    %v421 = vld [vmem:[#allocation4 + $0x928] sm:$0xff]
    %v422 = vld [vmem:[#allocation4 + $0x930] sm:$0xff]
    %v423 = vld [vmem:[#allocation4 + $0x938] sm:$0xff]
    %v424 = vld [vmem:[#allocation4 + $0x940] sm:$0xff]
    %v425 = vld [vmem:[#allocation4 + $0x948] sm:$0xff]
    %v426 = vld [vmem:[#allocation4 + $0x950] sm:$0xff]
    %v427 = vld [vmem:[#allocation4 + $0x958] sm:$0xff]
    %v428 = vld [vmem:[#allocation4 + $0x960] sm:$0xff]
    %v429 = vld [vmem:[#allocation4 + $0x968] sm:$0xff]
    %v430 = vld [vmem:[#allocation4 + $0x970] sm:$0xff]
    %v431 = vld [vmem:[#allocation4 + $0x978] sm:$0xff]
    %v432 = vld [vmem:[#allocation4 + $0x980] sm:$0xff]
    %v433 = vld [vmem:[#allocation4 + $0x988] sm:$0xff]
    %v434 = vld [vmem:[#allocation4 + $0x990] sm:$0xff]
    %v435 = vld [vmem:[#allocation4 + $0x998] sm:$0xff]
    %v436 = vld [vmem:[#allocation4 + $0x9a0] sm:$0xff]
    %v437 = vld [vmem:[#allocation4 + $0x9a8] sm:$0xff]
    %v438 = vld [vmem:[#allocation4 + $0x9b0] sm:$0xff]
    %v439 = vld [vmem:[#allocation4 + $0x9b8] sm:$0xff]
    %v440 = vld [vmem:[#allocation4 + $0x9c0] sm:$0xff]
    %v441 = vld [vmem:[#allocation4 + $0x9c8] sm:$0xff]
    %v442 = vld [vmem:[#allocation4 + $0x9d0] sm:$0xff]
    %v443 = vld [vmem:[#allocation4 + $0x9d8] sm:$0xff]
    %v444 = vld [vmem:[#allocation4 + $0x9e0] sm:$0xff]
    %v445 = vld [vmem:[#allocation4 + $0x9e8] sm:$0xff]
    %v446 = vld [vmem:[#allocation4 + $0x9f0] sm:$0xff]
    %v447 = vld [vmem:[#allocation4 + $0x9f8] sm:$0xff]
    %v448 = vld [vmem:[#allocation4 + $0xa00] sm:$0xff]
    %v449 = vld [vmem:[#allocation4 + $0xa08] sm:$0xff]
    %v450 = vld [vmem:[#allocation4 + $0xa10] sm:$0xff]
    %v451 = vld [vmem:[#allocation4 + $0xa18] sm:$0xff]
    %v452 = vld [vmem:[#allocation4 + $0xa20] sm:$0xff]
    %v453 = vld [vmem:[#allocation4 + $0xa28] sm:$0xff]
    %v454 = vld [vmem:[#allocation4 + $0xa30] sm:$0xff]
    %v455 = vld [vmem:[#allocation4 + $0xa38] sm:$0xff]
    %v456 = vld [vmem:[#allocation4 + $0xa40] sm:$0xff]
    %v457 = vld [vmem:[#allocation4 + $0xa48] sm:$0xff]
    %v458 = vld [vmem:[#allocation4 + $0xa50] sm:$0xff]
    %v459 = vld [vmem:[#allocation4 + $0xa58] sm:$0xff]
    %v460 = vld [vmem:[#allocation4 + $0xa60] sm:$0xff]
    %v461 = vld [vmem:[#allocation4 + $0xa68] sm:$0xff]
    %v462 = vld [vmem:[#allocation4 + $0xa70] sm:$0xff]
    %v463 = vld [vmem:[#allocation4 + $0xa78] sm:$0xff]
    %v464 = vld [vmem:[#allocation4 + $0xa80] sm:$0xff]
    %v465 = vld [vmem:[#allocation4 + $0xa88] sm:$0xff]
    %v466 = vld [vmem:[#allocation4 + $0xa90] sm:$0xff]
    %v467 = vld [vmem:[#allocation4 + $0xa98] sm:$0xff]
    %v468 = vld [vmem:[#allocation4 + $0xaa0] sm:$0xff]
    %v469 = vld [vmem:[#allocation4 + $0xaa8] sm:$0xff]
    %v470 = vld [vmem:[#allocation4 + $0xab0] sm:$0xff]
    %v471 = vld [vmem:[#allocation4 + $0xab8] sm:$0xff]
    %v472 = vld [vmem:[#allocation4 + $0xac0] sm:$0xff]
    %v473 = vld [vmem:[#allocation4 + $0xac8] sm:$0xff]
    %v474 = vld [vmem:[#allocation4 + $0xad0] sm:$0xff]
    %v475 = vld [vmem:[#allocation4 + $0xad8] sm:$0xff]
    %v476 = vld [vmem:[#allocation4 + $0xae0] sm:$0xff]
    %v477 = vld [vmem:[#allocation4 + $0xae8] sm:$0xff]
    %v478 = vld [vmem:[#allocation4 + $0xaf0] sm:$0xff]
    %v479 = vld [vmem:[#allocation4 + $0xaf8] sm:$0xff]
    %v480 = vld [vmem:[#allocation4 + $0xb00] sm:$0xff]
    %v481 = vld [vmem:[#allocation4 + $0xb08] sm:$0xff]
    %v482 = vld [vmem:[#allocation4 + $0xb10] sm:$0xff]
    %v483 = vld [vmem:[#allocation4 + $0xb18] sm:$0xff]
    %v484 = vld [vmem:[#allocation4 + $0xb20] sm:$0xff]
    %v485 = vld [vmem:[#allocation4 + $0xb28] sm:$0xff]
    %v486 = vld [vmem:[#allocation4 + $0xb30] sm:$0xff]
    %v487 = vld [vmem:[#allocation4 + $0xb38] sm:$0xff]
    %v488 = vld [vmem:[#allocation4 + $0xb40] sm:$0xff]
    %v489 = vld [vmem:[#allocation4 + $0xb48] sm:$0xff]
    %v490 = vld [vmem:[#allocation4 + $0xb50] sm:$0xff]
    %v491 = vld [vmem:[#allocation4 + $0xb58] sm:$0xff]
    %v492 = vld [vmem:[#allocation4 + $0xb60] sm:$0xff]
    %v493 = vld [vmem:[#allocation4 + $0xb68] sm:$0xff]
    %v494 = vld [vmem:[#allocation4 + $0xb70] sm:$0xff]
    %v495 = vld [vmem:[#allocation4 + $0xb78] sm:$0xff]
    %v496 = vld [vmem:[#allocation4 + $0xb80] sm:$0xff]
    %v497 = vld [vmem:[#allocation4 + $0xb88] sm:$0xff]
    %v498 = vld [vmem:[#allocation4 + $0xb90] sm:$0xff]
    %v499 = vld [vmem:[#allocation4 + $0xb98] sm:$0xff]
    %v500 = vld [vmem:[#allocation4 + $0xba0] sm:$0xff]
    %v501 = vld [vmem:[#allocation4 + $0xba8] sm:$0xff]
    %v502 = vld [vmem:[#allocation4 + $0xbb0] sm:$0xff]
    %v503 = vld [vmem:[#allocation4 + $0xbb8] sm:$0xff]
    %v504 = vld [vmem:[#allocation4 + $0xbc0] sm:$0xff]
    %v505 = vld [vmem:[#allocation4 + $0xbc8] sm:$0xff]
    %v506 = vld [vmem:[#allocation4 + $0xbd0] sm:$0xff]
    %v507 = vld [vmem:[#allocation4 + $0xbd8] sm:$0xff]
    %v508 = vld [vmem:[#allocation4 + $0xbe0] sm:$0xff]
    %v509 = vld [vmem:[#allocation4 + $0xbe8] sm:$0xff]
    %v510 = vld [vmem:[#allocation4 + $0xbf0] sm:$0xff]
    %v511 = vld [vmem:[#allocation4 + $0xbf8] sm:$0xff]
    %v512 = vld [vmem:[#allocation4 + $0xc00] sm:$0xff]
    %v513 = vld [vmem:[#allocation4 + $0xc08] sm:$0xff]
    %v514 = vld [vmem:[#allocation4 + $0xc10] sm:$0xff]
    %v515 = vld [vmem:[#allocation4 + $0xc18] sm:$0xff]
    %v516 = vld [vmem:[#allocation4 + $0xc20] sm:$0xff]
    %v517 = vld [vmem:[#allocation4 + $0xc28] sm:$0xff]
    %v518 = vld [vmem:[#allocation4 + $0xc30] sm:$0xff]
    %v519 = vld [vmem:[#allocation4 + $0xc38] sm:$0xff]
    %v520 = vld [vmem:[#allocation6] sm:$0xff]
    %v522 = vlaneseq
    %v523 = vshrl.u32 %v522, 7
    %v524 = vsub.s32 0, %v523
    %v525 = vrot.slane %v520, %v524
    %v526 = vlaneseq
    %v527 = vshrl.u32 %v526, 7
    %v528 = vsub.s32 1, %v527
    %v529 = vrot.slane %v520, %v528
    %v530 = vlaneseq
    %v531 = vshrl.u32 %v530, 7
    %v532 = vsub.s32 2, %v531
    %v533 = vrot.slane %v520, %v532
    %v534 = vlaneseq
    %v535 = vshrl.u32 %v534, 7
    %v536 = vsub.s32 3, %v535
    %v537 = vrot.slane %v520, %v536
    %v538 = vlaneseq
    %v539 = vshrl.u32 %v538, 7
    %v540 = vsub.s32 4, %v539
    %v541 = vrot.slane %v520, %v540
    %v542 = vlaneseq
    %v543 = vshrl.u32 %v542, 7
    %v544 = vsub.s32 5, %v543
    %v545 = vrot.slane %v520, %v544
    %v546 = vlaneseq
    %v547 = vshrl.u32 %v546, 7
    %v548 = vsub.s32 6, %v547
    %v549 = vrot.slane %v520, %v548
    %v550 = vlaneseq
    %v551 = vshrl.u32 %v550, 7
    %v552 = vsub.s32 7, %v551
    %v553 = vrot.slane %v520, %v552
    %v954 = vunpack.c.l.b16 %v128
    %v955 = vunpack.c.h.b16 %v128
    %v956 = vunpack.c.l.b16 %v129
    %v957 = vunpack.c.h.b16 %v129
    %v958 = vunpack.c.l.b16 %v130
    %v959 = vunpack.c.h.b16 %v130
    %v960 = vunpack.c.l.b16 %v131
    %v961 = vunpack.c.h.b16 %v131
    %v962 = vunpack.c.l.b16 %v132
    %v963 = vunpack.c.h.b16 %v132
    %v964 = vunpack.c.l.b16 %v133
    %v965 = vunpack.c.h.b16 %v133
    %v966 = vunpack.c.l.b16 %v134
    %v967 = vunpack.c.h.b16 %v134
    %v968 = vunpack.c.l.b16 %v135
    %v969 = vunpack.c.h.b16 %v135
    %v970 = vunpack.c.l.b16 %v136
    %v971 = vunpack.c.h.b16 %v136
    %v972 = vunpack.c.l.b16 %v137
    %v973 = vunpack.c.h.b16 %v137
    %v974 = vunpack.c.l.b16 %v138
    %v975 = vunpack.c.h.b16 %v138
    %v976 = vunpack.c.l.b16 %v139
    %v977 = vunpack.c.h.b16 %v139
    %v978 = vunpack.c.l.b16 %v140
    %v979 = vunpack.c.h.b16 %v140
    %v980 = vunpack.c.l.b16 %v141
    %v981 = vunpack.c.h.b16 %v141
    %v982 = vunpack.c.l.b16 %v142
    %v983 = vunpack.c.h.b16 %v142
    %v984 = vunpack.c.l.b16 %v143
    %v985 = vunpack.c.h.b16 %v143
    %v986 = vunpack.c.l.b16 %v144
    %v987 = vunpack.c.h.b16 %v144
    %v988 = vunpack.c.l.b16 %v145
    %v989 = vunpack.c.h.b16 %v145
    %v990 = vunpack.c.l.b16 %v146
    %v991 = vunpack.c.h.b16 %v146
    %v992 = vunpack.c.l.b16 %v147
    %v993 = vunpack.c.h.b16 %v147
    %v994 = vunpack.c.l.b16 %v148
    %v995 = vunpack.c.h.b16 %v148
    %v996 = vunpack.c.l.b16 %v149
    %v997 = vunpack.c.h.b16 %v149
    %v998 = vunpack.c.l.b16 %v150
    %v999 = vunpack.c.h.b16 %v150
    %v1000 = vunpack.c.l.b16 %v151
    %v1001 = vunpack.c.h.b16 %v151
    %v1002 = vunpack.c.l.b16 %v152
    %v1003 = vunpack.c.h.b16 %v152
    %v1004 = vunpack.c.l.b16 %v153
    %v1005 = vunpack.c.h.b16 %v153
    %v1006 = vunpack.c.l.b16 %v154
    %v1007 = vunpack.c.h.b16 %v154
    %v1008 = vunpack.c.l.b16 %v155
    %v1009 = vunpack.c.h.b16 %v155
    %v1010 = vunpack.c.l.b16 %v156
    %v1011 = vunpack.c.h.b16 %v156
    %v1012 = vunpack.c.l.b16 %v157
    %v1013 = vunpack.c.h.b16 %v157
    %v1014 = vunpack.c.l.b16 %v158
    %v1015 = vunpack.c.h.b16 %v158
    %v1016 = vunpack.c.l.b16 %v159
    %v1017 = vunpack.c.h.b16 %v159
    %v1018 = vunpack.c.l.b16 %v160
    %v1019 = vunpack.c.h.b16 %v160
    %v1020 = vunpack.c.l.b16 %v161
    %v1021 = vunpack.c.h.b16 %v161
    %v1022 = vunpack.c.l.b16 %v162
    %v1023 = vunpack.c.h.b16 %v162
    %v1024 = vunpack.c.l.b16 %v163
    %v1025 = vunpack.c.h.b16 %v163
    %v1026 = vunpack.c.l.b16 %v164
    %v1027 = vunpack.c.h.b16 %v164
    %v1028 = vunpack.c.l.b16 %v165
    %v1029 = vunpack.c.h.b16 %v165
    %v1030 = vunpack.c.l.b16 %v166
    %v1031 = vunpack.c.h.b16 %v166
    %v1032 = vunpack.c.l.b16 %v167
    %v1033 = vunpack.c.h.b16 %v167
    %v1034 = vunpack.c.l.b16 %v168
    %v1035 = vunpack.c.h.b16 %v168
    %v1036 = vunpack.c.l.b16 %v169
    %v1037 = vunpack.c.h.b16 %v169
    %v1038 = vunpack.c.l.b16 %v170
    %v1039 = vunpack.c.h.b16 %v170
    %v1040 = vunpack.c.l.b16 %v171
    %v1041 = vunpack.c.h.b16 %v171
    %v1042 = vunpack.c.l.b16 %v172
    %v1043 = vunpack.c.h.b16 %v172
    %v1044 = vunpack.c.l.b16 %v173
    %v1045 = vunpack.c.h.b16 %v173
    %v1046 = vunpack.c.l.b16 %v174
    %v1047 = vunpack.c.h.b16 %v174
    %v1048 = vunpack.c.l.b16 %v175
    %v1049 = vunpack.c.h.b16 %v175
    %v1050 = vunpack.c.l.b16 %v176
    %v1051 = vunpack.c.h.b16 %v176
    %v1052 = vunpack.c.l.b16 %v177
    %v1053 = vunpack.c.h.b16 %v177
    %v1054 = vunpack.c.l.b16 %v178
    %v1055 = vunpack.c.h.b16 %v178
    %v1056 = vunpack.c.l.b16 %v179
    %v1057 = vunpack.c.h.b16 %v179
    %v1058 = vunpack.c.l.b16 %v180
    %v1059 = vunpack.c.h.b16 %v180
    %v1060 = vunpack.c.l.b16 %v181
    %v1061 = vunpack.c.h.b16 %v181
    %v1062 = vunpack.c.l.b16 %v182
    %v1063 = vunpack.c.h.b16 %v182
    %v1064 = vunpack.c.l.b16 %v183
    %v1065 = vunpack.c.h.b16 %v183
    %v1066 = vunpack.c.l.b16 %v184
    %v1067 = vunpack.c.h.b16 %v184
    %v1068 = vunpack.c.l.b16 %v185
    %v1069 = vunpack.c.h.b16 %v185
    %v1070 = vunpack.c.l.b16 %v186
    %v1071 = vunpack.c.h.b16 %v186
    %v1072 = vunpack.c.l.b16 %v187
    %v1073 = vunpack.c.h.b16 %v187
    %v1074 = vunpack.c.l.b16 %v188
    %v1075 = vunpack.c.h.b16 %v188
    %v1076 = vunpack.c.l.b16 %v189
    %v1077 = vunpack.c.h.b16 %v189
    %v1078 = vunpack.c.l.b16 %v190
    %v1079 = vunpack.c.h.b16 %v190
    %v1080 = vunpack.c.l.b16 %v191
    %v1081 = vunpack.c.h.b16 %v191
    %v1082 = vunpack.c.l.b16 %v192
    %v1083 = vunpack.c.h.b16 %v192
    %v1084 = vunpack.c.l.b16 %v193
    %v1085 = vunpack.c.h.b16 %v193
    %v1086 = vunpack.c.l.b16 %v194
    %v1087 = vunpack.c.h.b16 %v194
    %v1088 = vunpack.c.l.b16 %v195
    %v1089 = vunpack.c.h.b16 %v195
    %v1090 = vunpack.c.l.b16 %v196
    %v1091 = vunpack.c.h.b16 %v196
    %v1092 = vunpack.c.l.b16 %v197
    %v1093 = vunpack.c.h.b16 %v197
    %v1094 = vunpack.c.l.b16 %v198
    %v1095 = vunpack.c.h.b16 %v198
    %v1096 = vunpack.c.l.b16 %v199
    %v1097 = vunpack.c.h.b16 %v199
    %v1098 = vunpack.c.l.b16 %v200
    %v1099 = vunpack.c.h.b16 %v200
    %v1100 = vunpack.c.l.b16 %v201
    %v1101 = vunpack.c.h.b16 %v201
    %v1102 = vunpack.c.l.b16 %v202
    %v1103 = vunpack.c.h.b16 %v202
    %v1104 = vunpack.c.l.b16 %v203
    %v1105 = vunpack.c.h.b16 %v203
    %v1106 = vunpack.c.l.b16 %v204
    %v1107 = vunpack.c.h.b16 %v204
    %v1108 = vunpack.c.l.b16 %v205
    %v1109 = vunpack.c.h.b16 %v205
    %v1110 = vunpack.c.l.b16 %v206
    %v1111 = vunpack.c.h.b16 %v206
    %v1112 = vunpack.c.l.b16 %v207
    %v1113 = vunpack.c.h.b16 %v207
    %v1114 = vunpack.c.l.b16 %v208
    %v1115 = vunpack.c.h.b16 %v208
    %v1116 = vunpack.c.l.b16 %v209
    %v1117 = vunpack.c.h.b16 %v209
    %v1118 = vunpack.c.l.b16 %v210
    %v1119 = vunpack.c.h.b16 %v210
    %v1120 = vunpack.c.l.b16 %v211
    %v1121 = vunpack.c.h.b16 %v211
    %v1122 = vunpack.c.l.b16 %v212
    %v1123 = vunpack.c.h.b16 %v212
    %v1124 = vunpack.c.l.b16 %v213
    %v1125 = vunpack.c.h.b16 %v213
    %v1126 = vunpack.c.l.b16 %v214
    %v1127 = vunpack.c.h.b16 %v214
    %v1128 = vunpack.c.l.b16 %v215
    %v1129 = vunpack.c.h.b16 %v215
    %v1130 = vunpack.c.l.b16 %v216
    %v1131 = vunpack.c.h.b16 %v216
    %v1132 = vunpack.c.l.b16 %v217
    %v1133 = vunpack.c.h.b16 %v217
    %v1134 = vunpack.c.l.b16 %v218
    %v1135 = vunpack.c.h.b16 %v218
    %v1136 = vunpack.c.l.b16 %v219
    %v1137 = vunpack.c.h.b16 %v219
    %v1138 = vunpack.c.l.b16 %v220
    %v1139 = vunpack.c.h.b16 %v220
    %v1140 = vunpack.c.l.b16 %v221
    %v1141 = vunpack.c.h.b16 %v221
    %v1142 = vunpack.c.l.b16 %v222
    %v1143 = vunpack.c.h.b16 %v222
    %v1144 = vunpack.c.l.b16 %v223
    %v1145 = vunpack.c.h.b16 %v223
    %v1146 = vunpack.c.l.b16 %v224
    %v1147 = vunpack.c.h.b16 %v224
    %v1148 = vunpack.c.l.b16 %v225
    %v1149 = vunpack.c.h.b16 %v225
    %v1150 = vunpack.c.l.b16 %v226
    %v1151 = vunpack.c.h.b16 %v226
    %v1152 = vunpack.c.l.b16 %v227
    %v1153 = vunpack.c.h.b16 %v227
    %v1154 = vunpack.c.l.b16 %v228
    %v1155 = vunpack.c.h.b16 %v228
    %v1156 = vunpack.c.l.b16 %v229
    %v1157 = vunpack.c.h.b16 %v229
    %v1158 = vunpack.c.l.b16 %v230
    %v1159 = vunpack.c.h.b16 %v230
    %v1160 = vunpack.c.l.b16 %v231
    %v1161 = vunpack.c.h.b16 %v231
    %v1162 = vunpack.c.l.b16 %v232
    %v1163 = vunpack.c.h.b16 %v232
    %v1164 = vunpack.c.l.b16 %v233
    %v1165 = vunpack.c.h.b16 %v233
    %v1166 = vunpack.c.l.b16 %v234
    %v1167 = vunpack.c.h.b16 %v234
    %v1168 = vunpack.c.l.b16 %v235
    %v1169 = vunpack.c.h.b16 %v235
    %v1170 = vunpack.c.l.b16 %v236
    %v1171 = vunpack.c.h.b16 %v236
    %v1172 = vunpack.c.l.b16 %v237
    %v1173 = vunpack.c.h.b16 %v237
    %v1174 = vunpack.c.l.b16 %v238
    %v1175 = vunpack.c.h.b16 %v238
    %v1176 = vunpack.c.l.b16 %v239
    %v1177 = vunpack.c.h.b16 %v239
    %v1178 = vunpack.c.l.b16 %v240
    %v1179 = vunpack.c.h.b16 %v240
    %v1180 = vunpack.c.l.b16 %v241
    %v1181 = vunpack.c.h.b16 %v241
    %v1182 = vunpack.c.l.b16 %v242
    %v1183 = vunpack.c.h.b16 %v242
    %v1184 = vunpack.c.l.b16 %v243
    %v1185 = vunpack.c.h.b16 %v243
    %v1186 = vunpack.c.l.b16 %v244
    %v1187 = vunpack.c.h.b16 %v244
    %v1188 = vunpack.c.l.b16 %v245
    %v1189 = vunpack.c.h.b16 %v245
    %v1190 = vunpack.c.l.b16 %v246
    %v1191 = vunpack.c.h.b16 %v246
    %v1192 = vunpack.c.l.b16 %v247
    %v1193 = vunpack.c.h.b16 %v247
    %v1194 = vunpack.c.l.b16 %v248
    %v1195 = vunpack.c.h.b16 %v248
    %v1196 = vunpack.c.l.b16 %v249
    %v1197 = vunpack.c.h.b16 %v249
    %v1198 = vunpack.c.l.b16 %v250
    %v1199 = vunpack.c.h.b16 %v250
    %v1200 = vunpack.c.l.b16 %v251
    %v1201 = vunpack.c.h.b16 %v251
    %v1202 = vunpack.c.l.b16 %v252
    %v1203 = vunpack.c.h.b16 %v252
    %v1204 = vunpack.c.l.b16 %v253
    %v1205 = vunpack.c.h.b16 %v253
    %v1206 = vunpack.c.l.b16 %v254
    %v1207 = vunpack.c.h.b16 %v254
    %v1208 = vunpack.c.l.b16 %v255
    %v1209 = vunpack.c.h.b16 %v255
    %v1210 = vunpack.c.l.b16 %v256
    %v1211 = vunpack.c.h.b16 %v256
    %v1212 = vunpack.c.l.b16 %v257
    %v1213 = vunpack.c.h.b16 %v257
    %v1214 = vunpack.c.l.b16 %v258
    %v1215 = vunpack.c.h.b16 %v258
    %v1216 = vunpack.c.l.b16 %v259
    %v1217 = vunpack.c.h.b16 %v259
    %v1218 = vunpack.c.l.b16 %v260
    %v1219 = vunpack.c.h.b16 %v260
    %v1220 = vunpack.c.l.b16 %v261
    %v1221 = vunpack.c.h.b16 %v261
    %v1222 = vunpack.c.l.b16 %v262
    %v1223 = vunpack.c.h.b16 %v262
    %v1224 = vunpack.c.l.b16 %v263
    %v1225 = vunpack.c.h.b16 %v263
    %v1226 = vunpack.c.l.b16 %v264
    %v1227 = vunpack.c.h.b16 %v264
    %v1228 = vunpack.c.l.b16 %v265
    %v1229 = vunpack.c.h.b16 %v265
    %v1230 = vunpack.c.l.b16 %v266
    %v1231 = vunpack.c.h.b16 %v266
    %v1232 = vunpack.c.l.b16 %v267
    %v1233 = vunpack.c.h.b16 %v267
    %v1234 = vunpack.c.l.b16 %v268
    %v1235 = vunpack.c.h.b16 %v268
    %v1236 = vunpack.c.l.b16 %v269
    %v1237 = vunpack.c.h.b16 %v269
    %v1238 = vunpack.c.l.b16 %v270
    %v1239 = vunpack.c.h.b16 %v270
    %v1240 = vunpack.c.l.b16 %v271
    %v1241 = vunpack.c.h.b16 %v271
    %v1242 = vunpack.c.l.b16 %v272
    %v1243 = vunpack.c.h.b16 %v272
    %v1244 = vunpack.c.l.b16 %v273
    %v1245 = vunpack.c.h.b16 %v273
    %v1246 = vunpack.c.l.b16 %v274
    %v1247 = vunpack.c.h.b16 %v274
    %v1248 = vunpack.c.l.b16 %v275
    %v1249 = vunpack.c.h.b16 %v275
    %v1250 = vunpack.c.l.b16 %v276
    %v1251 = vunpack.c.h.b16 %v276
    %v1252 = vunpack.c.l.b16 %v277
    %v1253 = vunpack.c.h.b16 %v277
    %v1254 = vunpack.c.l.b16 %v278
    %v1255 = vunpack.c.h.b16 %v278
    %v1256 = vunpack.c.l.b16 %v279
    %v1257 = vunpack.c.h.b16 %v279
    %v1258 = vunpack.c.l.b16 %v280
    %v1259 = vunpack.c.h.b16 %v280
    %v1260 = vunpack.c.l.b16 %v281
    %v1261 = vunpack.c.h.b16 %v281
    %v1262 = vunpack.c.l.b16 %v282
    %v1263 = vunpack.c.h.b16 %v282
    %v1264 = vunpack.c.l.b16 %v283
    %v1265 = vunpack.c.h.b16 %v283
    %v1266 = vunpack.c.l.b16 %v284
    %v1267 = vunpack.c.h.b16 %v284
    %v1268 = vunpack.c.l.b16 %v285
    %v1269 = vunpack.c.h.b16 %v285
    %v1270 = vunpack.c.l.b16 %v286
    %v1271 = vunpack.c.h.b16 %v286
    %v1272 = vunpack.c.l.b16 %v287
    %v1273 = vunpack.c.h.b16 %v287
    %v1274 = vunpack.c.l.b16 %v288
    %v1275 = vunpack.c.h.b16 %v288
    %v1276 = vunpack.c.l.b16 %v289
    %v1277 = vunpack.c.h.b16 %v289
    %v1278 = vunpack.c.l.b16 %v290
    %v1279 = vunpack.c.h.b16 %v290
    %v1280 = vunpack.c.l.b16 %v291
    %v1281 = vunpack.c.h.b16 %v291
    %v1282 = vunpack.c.l.b16 %v292
    %v1283 = vunpack.c.h.b16 %v292
    %v1284 = vunpack.c.l.b16 %v293
    %v1285 = vunpack.c.h.b16 %v293
    %v1286 = vunpack.c.l.b16 %v294
    %v1287 = vunpack.c.h.b16 %v294
    %v1288 = vunpack.c.l.b16 %v295
    %v1289 = vunpack.c.h.b16 %v295
    %v1290 = vunpack.c.l.b16 %v296
    %v1291 = vunpack.c.h.b16 %v296
    %v1292 = vunpack.c.l.b16 %v297
    %v1293 = vunpack.c.h.b16 %v297
    %v1294 = vunpack.c.l.b16 %v298
    %v1295 = vunpack.c.h.b16 %v298
    %v1296 = vunpack.c.l.b16 %v299
    %v1297 = vunpack.c.h.b16 %v299
    %v1298 = vunpack.c.l.b16 %v300
    %v1299 = vunpack.c.h.b16 %v300
    %v1300 = vunpack.c.l.b16 %v301
    %v1301 = vunpack.c.h.b16 %v301
    %v1302 = vunpack.c.l.b16 %v302
    %v1303 = vunpack.c.h.b16 %v302
    %v1304 = vunpack.c.l.b16 %v303
    %v1305 = vunpack.c.h.b16 %v303
    %v1306 = vunpack.c.l.b16 %v304
    %v1307 = vunpack.c.h.b16 %v304
    %v1308 = vunpack.c.l.b16 %v305
    %v1309 = vunpack.c.h.b16 %v305
    %v1310 = vunpack.c.l.b16 %v306
    %v1311 = vunpack.c.h.b16 %v306
    %v1312 = vunpack.c.l.b16 %v307
    %v1313 = vunpack.c.h.b16 %v307
    %v1314 = vunpack.c.l.b16 %v308
    %v1315 = vunpack.c.h.b16 %v308
    %v1316 = vunpack.c.l.b16 %v309
    %v1317 = vunpack.c.h.b16 %v309
    %v1318 = vunpack.c.l.b16 %v310
    %v1319 = vunpack.c.h.b16 %v310
    %v1320 = vunpack.c.l.b16 %v311
    %v1321 = vunpack.c.h.b16 %v311
    %v1322 = vunpack.c.l.b16 %v312
    %v1323 = vunpack.c.h.b16 %v312
    %v1324 = vunpack.c.l.b16 %v313
    %v1325 = vunpack.c.h.b16 %v313
    %v1326 = vunpack.c.l.b16 %v314
    %v1327 = vunpack.c.h.b16 %v314
    %v1328 = vunpack.c.l.b16 %v315
    %v1329 = vunpack.c.h.b16 %v315
    %v1330 = vunpack.c.l.b16 %v316
    %v1331 = vunpack.c.h.b16 %v316
    %v1332 = vunpack.c.l.b16 %v317
    %v1333 = vunpack.c.h.b16 %v317
    %v1334 = vunpack.c.l.b16 %v318
    %v1335 = vunpack.c.h.b16 %v318
    %v1336 = vunpack.c.l.b16 %v319
    %v1337 = vunpack.c.h.b16 %v319
    %v1338 = vunpack.c.l.b16 %v320
    %v1339 = vunpack.c.h.b16 %v320
    %v1340 = vunpack.c.l.b16 %v321
    %v1341 = vunpack.c.h.b16 %v321
    %v1342 = vunpack.c.l.b16 %v322
    %v1343 = vunpack.c.h.b16 %v322
    %v1344 = vunpack.c.l.b16 %v323
    %v1345 = vunpack.c.h.b16 %v323
    %v1346 = vunpack.c.l.b16 %v324
    %v1347 = vunpack.c.h.b16 %v324
    %v1348 = vunpack.c.l.b16 %v325
    %v1349 = vunpack.c.h.b16 %v325
    %v1350 = vunpack.c.l.b16 %v326
    %v1351 = vunpack.c.h.b16 %v326
    %v1352 = vunpack.c.l.b16 %v327
    %v1353 = vunpack.c.h.b16 %v327
    %v1354 = vunpack.c.l.b16 %v328
    %v1355 = vunpack.c.h.b16 %v328
    %v1356 = vunpack.c.l.b16 %v329
    %v1357 = vunpack.c.h.b16 %v329
    %v1358 = vunpack.c.l.b16 %v330
    %v1359 = vunpack.c.h.b16 %v330
    %v1360 = vunpack.c.l.b16 %v331
    %v1361 = vunpack.c.h.b16 %v331
    %v1362 = vunpack.c.l.b16 %v332
    %v1363 = vunpack.c.h.b16 %v332
    %v1364 = vunpack.c.l.b16 %v333
    %v1365 = vunpack.c.h.b16 %v333
    %v1366 = vunpack.c.l.b16 %v334
    %v1367 = vunpack.c.h.b16 %v334
    %v1368 = vunpack.c.l.b16 %v335
    %v1369 = vunpack.c.h.b16 %v335
    %v1370 = vunpack.c.l.b16 %v336
    %v1371 = vunpack.c.h.b16 %v336
    %v1372 = vunpack.c.l.b16 %v337
    %v1373 = vunpack.c.h.b16 %v337
    %v1374 = vunpack.c.l.b16 %v338
    %v1375 = vunpack.c.h.b16 %v338
    %v1376 = vunpack.c.l.b16 %v339
    %v1377 = vunpack.c.h.b16 %v339
    %v1378 = vunpack.c.l.b16 %v340
    %v1379 = vunpack.c.h.b16 %v340
    %v1380 = vunpack.c.l.b16 %v341
    %v1381 = vunpack.c.h.b16 %v341
    %v1382 = vunpack.c.l.b16 %v342
    %v1383 = vunpack.c.h.b16 %v342
    %v1384 = vunpack.c.l.b16 %v343
    %v1385 = vunpack.c.h.b16 %v343
    %v1386 = vunpack.c.l.b16 %v344
    %v1387 = vunpack.c.h.b16 %v344
    %v1388 = vunpack.c.l.b16 %v345
    %v1389 = vunpack.c.h.b16 %v345
    %v1390 = vunpack.c.l.b16 %v346
    %v1391 = vunpack.c.h.b16 %v346
    %v1392 = vunpack.c.l.b16 %v347
    %v1393 = vunpack.c.h.b16 %v347
    %v1394 = vunpack.c.l.b16 %v348
    %v1395 = vunpack.c.h.b16 %v348
    %v1396 = vunpack.c.l.b16 %v349
    %v1397 = vunpack.c.h.b16 %v349
    %v1398 = vunpack.c.l.b16 %v350
    %v1399 = vunpack.c.h.b16 %v350
    %v1400 = vunpack.c.l.b16 %v351
    %v1401 = vunpack.c.h.b16 %v351
    %v1402 = vunpack.c.l.b16 %v352
    %v1403 = vunpack.c.h.b16 %v352
    %v1404 = vunpack.c.l.b16 %v353
    %v1405 = vunpack.c.h.b16 %v353
    %v1406 = vunpack.c.l.b16 %v354
    %v1407 = vunpack.c.h.b16 %v354
    %v1408 = vunpack.c.l.b16 %v355
    %v1409 = vunpack.c.h.b16 %v355
    %v1410 = vunpack.c.l.b16 %v356
    %v1411 = vunpack.c.h.b16 %v356
    %v1412 = vunpack.c.l.b16 %v357
    %v1413 = vunpack.c.h.b16 %v357
    %v1414 = vunpack.c.l.b16 %v358
    %v1415 = vunpack.c.h.b16 %v358
    %v1416 = vunpack.c.l.b16 %v359
    %v1417 = vunpack.c.h.b16 %v359
    %v1418 = vunpack.c.l.b16 %v360
    %v1419 = vunpack.c.h.b16 %v360
    %v1420 = vunpack.c.l.b16 %v361
    %v1421 = vunpack.c.h.b16 %v361
    %v1422 = vunpack.c.l.b16 %v362
    %v1423 = vunpack.c.h.b16 %v362
    %v1424 = vunpack.c.l.b16 %v363
    %v1425 = vunpack.c.h.b16 %v363
    %v1426 = vunpack.c.l.b16 %v364
    %v1427 = vunpack.c.h.b16 %v364
    %v1428 = vunpack.c.l.b16 %v365
    %v1429 = vunpack.c.h.b16 %v365
    %v1430 = vunpack.c.l.b16 %v366
    %v1431 = vunpack.c.h.b16 %v366
    %v1432 = vunpack.c.l.b16 %v367
    %v1433 = vunpack.c.h.b16 %v367
    %v1434 = vunpack.c.l.b16 %v368
    %v1435 = vunpack.c.h.b16 %v368
    %v1436 = vunpack.c.l.b16 %v369
    %v1437 = vunpack.c.h.b16 %v369
    %v1438 = vunpack.c.l.b16 %v370
    %v1439 = vunpack.c.h.b16 %v370
    %v1440 = vunpack.c.l.b16 %v371
    %v1441 = vunpack.c.h.b16 %v371
    %v1442 = vunpack.c.l.b16 %v372
    %v1443 = vunpack.c.h.b16 %v372
    %v1444 = vunpack.c.l.b16 %v373
    %v1445 = vunpack.c.h.b16 %v373
    %v1446 = vunpack.c.l.b16 %v374
    %v1447 = vunpack.c.h.b16 %v374
    %v1448 = vunpack.c.l.b16 %v375
    %v1449 = vunpack.c.h.b16 %v375
    %v1450 = vunpack.c.l.b16 %v376
    %v1451 = vunpack.c.h.b16 %v376
    %v1452 = vunpack.c.l.b16 %v377
    %v1453 = vunpack.c.h.b16 %v377
    %v1454 = vunpack.c.l.b16 %v378
    %v1455 = vunpack.c.h.b16 %v378
    %v1456 = vunpack.c.l.b16 %v379
    %v1457 = vunpack.c.h.b16 %v379
    %v1458 = vunpack.c.l.b16 %v380
    %v1459 = vunpack.c.h.b16 %v380
    %v1460 = vunpack.c.l.b16 %v381
    %v1461 = vunpack.c.h.b16 %v381
    %v1462 = vunpack.c.l.b16 %v382
    %v1463 = vunpack.c.h.b16 %v382
    %v1464 = vunpack.c.l.b16 %v383
    %v1465 = vunpack.c.h.b16 %v383
    %v1466 = vunpack.c.l.b16 %v384
    %v1467 = vunpack.c.h.b16 %v384
    %v1468 = vunpack.c.l.b16 %v385
    %v1469 = vunpack.c.h.b16 %v385
    %v1470 = vunpack.c.l.b16 %v386
    %v1471 = vunpack.c.h.b16 %v386
    %v1472 = vunpack.c.l.b16 %v387
    %v1473 = vunpack.c.h.b16 %v387
    %v1474 = vunpack.c.l.b16 %v388
    %v1475 = vunpack.c.h.b16 %v388
    %v1476 = vunpack.c.l.b16 %v389
    %v1477 = vunpack.c.h.b16 %v389
    %v1478 = vunpack.c.l.b16 %v390
    %v1479 = vunpack.c.h.b16 %v390
    %v1480 = vunpack.c.l.b16 %v391
    %v1481 = vunpack.c.h.b16 %v391
    %v1482 = vunpack.c.l.b16 %v392
    %v1483 = vunpack.c.h.b16 %v392
    %v1484 = vunpack.c.l.b16 %v393
    %v1485 = vunpack.c.h.b16 %v393
    %v1486 = vunpack.c.l.b16 %v394
    %v1487 = vunpack.c.h.b16 %v394
    %v1488 = vunpack.c.l.b16 %v395
    %v1489 = vunpack.c.h.b16 %v395
    %v1490 = vunpack.c.l.b16 %v396
    %v1491 = vunpack.c.h.b16 %v396
    %v1492 = vunpack.c.l.b16 %v397
    %v1493 = vunpack.c.h.b16 %v397
    %v1494 = vunpack.c.l.b16 %v398
    %v1495 = vunpack.c.h.b16 %v398
    %v1496 = vunpack.c.l.b16 %v399
    %v1497 = vunpack.c.h.b16 %v399
    %v1498 = vunpack.c.l.b16 %v400
    %v1499 = vunpack.c.h.b16 %v400
    %v1500 = vunpack.c.l.b16 %v401
    %v1501 = vunpack.c.h.b16 %v401
    %v1502 = vunpack.c.l.b16 %v402
    %v1503 = vunpack.c.h.b16 %v402
    %v1504 = vunpack.c.l.b16 %v403
    %v1505 = vunpack.c.h.b16 %v403
    %v1506 = vunpack.c.l.b16 %v404
    %v1507 = vunpack.c.h.b16 %v404
    %v1508 = vunpack.c.l.b16 %v405
    %v1509 = vunpack.c.h.b16 %v405
    %v1510 = vunpack.c.l.b16 %v406
    %v1511 = vunpack.c.h.b16 %v406
    %v1512 = vunpack.c.l.b16 %v407
    %v1513 = vunpack.c.h.b16 %v407
    %v1514 = vunpack.c.l.b16 %v408
    %v1515 = vunpack.c.h.b16 %v408
    %v1516 = vunpack.c.l.b16 %v409
    %v1517 = vunpack.c.h.b16 %v409
    %v1518 = vunpack.c.l.b16 %v410
    %v1519 = vunpack.c.h.b16 %v410
    %v1520 = vunpack.c.l.b16 %v411
    %v1521 = vunpack.c.h.b16 %v411
    %v1522 = vunpack.c.l.b16 %v412
    %v1523 = vunpack.c.h.b16 %v412
    %v1524 = vunpack.c.l.b16 %v413
    %v1525 = vunpack.c.h.b16 %v413
    %v1526 = vunpack.c.l.b16 %v414
    %v1527 = vunpack.c.h.b16 %v414
    %v1528 = vunpack.c.l.b16 %v415
    %v1529 = vunpack.c.h.b16 %v415
    %v1530 = vunpack.c.l.b16 %v416
    %v1531 = vunpack.c.h.b16 %v416
    %v1532 = vunpack.c.l.b16 %v417
    %v1533 = vunpack.c.h.b16 %v417
    %v1534 = vunpack.c.l.b16 %v418
    %v1535 = vunpack.c.h.b16 %v418
    %v1536 = vunpack.c.l.b16 %v419
    %v1537 = vunpack.c.h.b16 %v419
    %v1538 = vunpack.c.l.b16 %v420
    %v1539 = vunpack.c.h.b16 %v420
    %v1540 = vunpack.c.l.b16 %v421
    %v1541 = vunpack.c.h.b16 %v421
    %v1542 = vunpack.c.l.b16 %v422
    %v1543 = vunpack.c.h.b16 %v422
    %v1544 = vunpack.c.l.b16 %v423
    %v1545 = vunpack.c.h.b16 %v423
    %v1546 = vunpack.c.l.b16 %v424
    %v1547 = vunpack.c.h.b16 %v424
    %v1548 = vunpack.c.l.b16 %v425
    %v1549 = vunpack.c.h.b16 %v425
    %v1550 = vunpack.c.l.b16 %v426
    %v1551 = vunpack.c.h.b16 %v426
    %v1552 = vunpack.c.l.b16 %v427
    %v1553 = vunpack.c.h.b16 %v427
    %v1554 = vunpack.c.l.b16 %v428
    %v1555 = vunpack.c.h.b16 %v428
    %v1556 = vunpack.c.l.b16 %v429
    %v1557 = vunpack.c.h.b16 %v429
    %v1558 = vunpack.c.l.b16 %v430
    %v1559 = vunpack.c.h.b16 %v430
    %v1560 = vunpack.c.l.b16 %v431
    %v1561 = vunpack.c.h.b16 %v431
    %v1562 = vunpack.c.l.b16 %v432
    %v1563 = vunpack.c.h.b16 %v432
    %v1564 = vunpack.c.l.b16 %v433
    %v1565 = vunpack.c.h.b16 %v433
    %v1566 = vunpack.c.l.b16 %v434
    %v1567 = vunpack.c.h.b16 %v434
    %v1568 = vunpack.c.l.b16 %v435
    %v1569 = vunpack.c.h.b16 %v435
    %v1570 = vunpack.c.l.b16 %v436
    %v1571 = vunpack.c.h.b16 %v436
    %v1572 = vunpack.c.l.b16 %v437
    %v1573 = vunpack.c.h.b16 %v437
    %v1574 = vunpack.c.l.b16 %v438
    %v1575 = vunpack.c.h.b16 %v438
    %v1576 = vunpack.c.l.b16 %v439
    %v1577 = vunpack.c.h.b16 %v439
    %v1578 = vunpack.c.l.b16 %v440
    %v1579 = vunpack.c.h.b16 %v440
    %v1580 = vunpack.c.l.b16 %v441
    %v1581 = vunpack.c.h.b16 %v441
    %v1582 = vunpack.c.l.b16 %v442
    %v1583 = vunpack.c.h.b16 %v442
    %v1584 = vunpack.c.l.b16 %v443
    %v1585 = vunpack.c.h.b16 %v443
    %v1586 = vunpack.c.l.b16 %v444
    %v1587 = vunpack.c.h.b16 %v444
    %v1588 = vunpack.c.l.b16 %v445
    %v1589 = vunpack.c.h.b16 %v445
    %v1590 = vunpack.c.l.b16 %v446
    %v1591 = vunpack.c.h.b16 %v446
    %v1592 = vunpack.c.l.b16 %v447
    %v1593 = vunpack.c.h.b16 %v447
    %v1594 = vunpack.c.l.b16 %v448
    %v1595 = vunpack.c.h.b16 %v448
    %v1596 = vunpack.c.l.b16 %v449
    %v1597 = vunpack.c.h.b16 %v449
    %v1598 = vunpack.c.l.b16 %v450
    %v1599 = vunpack.c.h.b16 %v450
    %v1600 = vunpack.c.l.b16 %v451
    %v1601 = vunpack.c.h.b16 %v451
    %v1602 = vunpack.c.l.b16 %v452
    %v1603 = vunpack.c.h.b16 %v452
    %v1604 = vunpack.c.l.b16 %v453
    %v1605 = vunpack.c.h.b16 %v453
    %v1606 = vunpack.c.l.b16 %v454
    %v1607 = vunpack.c.h.b16 %v454
    %v1608 = vunpack.c.l.b16 %v455
    %v1609 = vunpack.c.h.b16 %v455
    %v1610 = vunpack.c.l.b16 %v456
    %v1611 = vunpack.c.h.b16 %v456
    %v1612 = vunpack.c.l.b16 %v457
    %v1613 = vunpack.c.h.b16 %v457
    %v1614 = vunpack.c.l.b16 %v458
    %v1615 = vunpack.c.h.b16 %v458
    %v1616 = vunpack.c.l.b16 %v459
    %v1617 = vunpack.c.h.b16 %v459
    %v1618 = vunpack.c.l.b16 %v460
    %v1619 = vunpack.c.h.b16 %v460
    %v1620 = vunpack.c.l.b16 %v461
    %v1621 = vunpack.c.h.b16 %v461
    %v1622 = vunpack.c.l.b16 %v462
    %v1623 = vunpack.c.h.b16 %v462
    %v1624 = vunpack.c.l.b16 %v463
    %v1625 = vunpack.c.h.b16 %v463
    %v1626 = vunpack.c.l.b16 %v464
    %v1627 = vunpack.c.h.b16 %v464
    %v1628 = vunpack.c.l.b16 %v465
    %v1629 = vunpack.c.h.b16 %v465
    %v1630 = vunpack.c.l.b16 %v466
    %v1631 = vunpack.c.h.b16 %v466
    %v1632 = vunpack.c.l.b16 %v467
    %v1633 = vunpack.c.h.b16 %v467
    %v1634 = vunpack.c.l.b16 %v468
    %v1635 = vunpack.c.h.b16 %v468
    %v1636 = vunpack.c.l.b16 %v469
    %v1637 = vunpack.c.h.b16 %v469
    %v1638 = vunpack.c.l.b16 %v470
    %v1639 = vunpack.c.h.b16 %v470
    %v1640 = vunpack.c.l.b16 %v471
    %v1641 = vunpack.c.h.b16 %v471
    %v1642 = vunpack.c.l.b16 %v472
    %v1643 = vunpack.c.h.b16 %v472
    %v1644 = vunpack.c.l.b16 %v473
    %v1645 = vunpack.c.h.b16 %v473
    %v1646 = vunpack.c.l.b16 %v474
    %v1647 = vunpack.c.h.b16 %v474
    %v1648 = vunpack.c.l.b16 %v475
    %v1649 = vunpack.c.h.b16 %v475
    %v1650 = vunpack.c.l.b16 %v476
    %v1651 = vunpack.c.h.b16 %v476
    %v1652 = vunpack.c.l.b16 %v477
    %v1653 = vunpack.c.h.b16 %v477
    %v1654 = vunpack.c.l.b16 %v478
    %v1655 = vunpack.c.h.b16 %v478
    %v1656 = vunpack.c.l.b16 %v479
    %v1657 = vunpack.c.h.b16 %v479
    %v1658 = vunpack.c.l.b16 %v480
    %v1659 = vunpack.c.h.b16 %v480
    %v1660 = vunpack.c.l.b16 %v481
    %v1661 = vunpack.c.h.b16 %v481
    %v1662 = vunpack.c.l.b16 %v482
    %v1663 = vunpack.c.h.b16 %v482
    %v1664 = vunpack.c.l.b16 %v483
    %v1665 = vunpack.c.h.b16 %v483
    %v1666 = vunpack.c.l.b16 %v484
    %v1667 = vunpack.c.h.b16 %v484
    %v1668 = vunpack.c.l.b16 %v485
    %v1669 = vunpack.c.h.b16 %v485
    %v1670 = vunpack.c.l.b16 %v486
    %v1671 = vunpack.c.h.b16 %v486
    %v1672 = vunpack.c.l.b16 %v487
    %v1673 = vunpack.c.h.b16 %v487
    %v1674 = vunpack.c.l.b16 %v488
    %v1675 = vunpack.c.h.b16 %v488
    %v1676 = vunpack.c.l.b16 %v489
    %v1677 = vunpack.c.h.b16 %v489
    %v1678 = vunpack.c.l.b16 %v490
    %v1679 = vunpack.c.h.b16 %v490
    %v1680 = vunpack.c.l.b16 %v491
    %v1681 = vunpack.c.h.b16 %v491
    %v1682 = vunpack.c.l.b16 %v492
    %v1683 = vunpack.c.h.b16 %v492
    %v1684 = vunpack.c.l.b16 %v493
    %v1685 = vunpack.c.h.b16 %v493
    %v1686 = vunpack.c.l.b16 %v494
    %v1687 = vunpack.c.h.b16 %v494
    %v1688 = vunpack.c.l.b16 %v495
    %v1689 = vunpack.c.h.b16 %v495
    %v1690 = vunpack.c.l.b16 %v496
    %v1691 = vunpack.c.h.b16 %v496
    %v1692 = vunpack.c.l.b16 %v497
    %v1693 = vunpack.c.h.b16 %v497
    %v1694 = vunpack.c.l.b16 %v498
    %v1695 = vunpack.c.h.b16 %v498
    %v1696 = vunpack.c.l.b16 %v499
    %v1697 = vunpack.c.h.b16 %v499
    %v1698 = vunpack.c.l.b16 %v500
    %v1699 = vunpack.c.h.b16 %v500
    %v1700 = vunpack.c.l.b16 %v501
    %v1701 = vunpack.c.h.b16 %v501
    %v1702 = vunpack.c.l.b16 %v502
    %v1703 = vunpack.c.h.b16 %v502
    %v1704 = vunpack.c.l.b16 %v503
    %v1705 = vunpack.c.h.b16 %v503
    %v1706 = vunpack.c.l.b16 %v504
    %v1707 = vunpack.c.h.b16 %v504
    %v1708 = vunpack.c.l.b16 %v505
    %v1709 = vunpack.c.h.b16 %v505
    %v1710 = vunpack.c.l.b16 %v506
    %v1711 = vunpack.c.h.b16 %v506
    %v1712 = vunpack.c.l.b16 %v507
    %v1713 = vunpack.c.h.b16 %v507
    %v1714 = vunpack.c.l.b16 %v508
    %v1715 = vunpack.c.h.b16 %v508
    %v1716 = vunpack.c.l.b16 %v509
    %v1717 = vunpack.c.h.b16 %v509
    %v1718 = vunpack.c.l.b16 %v510
    %v1719 = vunpack.c.h.b16 %v510
    %v1720 = vunpack.c.l.b16 %v511
    %v1721 = vunpack.c.h.b16 %v511
    %v1722 = vunpack.c.l.b16 %v512
    %v1723 = vunpack.c.h.b16 %v512
    %v1724 = vunpack.c.l.b16 %v513
    %v1725 = vunpack.c.h.b16 %v513
    %v1726 = vunpack.c.l.b16 %v514
    %v1727 = vunpack.c.h.b16 %v514
    %v1728 = vunpack.c.l.b16 %v515
    %v1729 = vunpack.c.h.b16 %v515
    %v1730 = vunpack.c.l.b16 %v516
    %v1731 = vunpack.c.h.b16 %v516
    %v1732 = vunpack.c.l.b16 %v517
    %v1733 = vunpack.c.h.b16 %v517
    %v1734 = vunpack.c.l.b16 %v518
    %v1735 = vunpack.c.h.b16 %v518
    %v1736 = vunpack.c.l.b16 %v519
    %v1737 = vunpack.c.h.b16 %v519
    %v1738 = vpack.c.b16 %v962, %v954
    %v1739 = vpack.c.b16 %v963, %v955
    %v1740 = vpack.c.b16 %v964, %v956
    %v1741 = vpack.c.b16 %v965, %v957
    %v1742 = vpack.c.b16 %v966, %v958
    %v1743 = vpack.c.b16 %v967, %v959
    %v1744 = vpack.c.b16 %v968, %v960
    %v1745 = vpack.c.b16 %v969, %v961
    %v1746 = vpack.c.b16 %v978, %v970
    %v1747 = vpack.c.b16 %v979, %v971
    %v1748 = vpack.c.b16 %v980, %v972
    %v1749 = vpack.c.b16 %v981, %v973
    %v1750 = vpack.c.b16 %v982, %v974
    %v1751 = vpack.c.b16 %v983, %v975
    %v1752 = vpack.c.b16 %v984, %v976
    %v1753 = vpack.c.b16 %v985, %v977
    %v1754 = vpack.c.b16 %v994, %v986
    %v1755 = vpack.c.b16 %v995, %v987
    %v1756 = vpack.c.b16 %v996, %v988
    %v1757 = vpack.c.b16 %v997, %v989
    %v1758 = vpack.c.b16 %v998, %v990
    %v1759 = vpack.c.b16 %v999, %v991
    %v1760 = vpack.c.b16 %v1000, %v992
    %v1761 = vpack.c.b16 %v1001, %v993
    %v1762 = vpack.c.b16 %v1010, %v1002
    %v1763 = vpack.c.b16 %v1011, %v1003
    %v1764 = vpack.c.b16 %v1012, %v1004
    %v1765 = vpack.c.b16 %v1013, %v1005
    %v1766 = vpack.c.b16 %v1014, %v1006
    %v1767 = vpack.c.b16 %v1015, %v1007
    %v1768 = vpack.c.b16 %v1016, %v1008
    %v1769 = vpack.c.b16 %v1017, %v1009
    %v1770 = vpack.c.b16 %v1026, %v1018
    %v1771 = vpack.c.b16 %v1027, %v1019
    %v1772 = vpack.c.b16 %v1028, %v1020
    %v1773 = vpack.c.b16 %v1029, %v1021
    %v1774 = vpack.c.b16 %v1030, %v1022
    %v1775 = vpack.c.b16 %v1031, %v1023
    %v1776 = vpack.c.b16 %v1032, %v1024
    %v1777 = vpack.c.b16 %v1033, %v1025
    %v1778 = vpack.c.b16 %v1042, %v1034
    %v1779 = vpack.c.b16 %v1043, %v1035
    %v1780 = vpack.c.b16 %v1044, %v1036
    %v1781 = vpack.c.b16 %v1045, %v1037
    %v1782 = vpack.c.b16 %v1046, %v1038
    %v1783 = vpack.c.b16 %v1047, %v1039
    %v1784 = vpack.c.b16 %v1048, %v1040
    %v1785 = vpack.c.b16 %v1049, %v1041
    %v1786 = vpack.c.b16 %v1058, %v1050
    %v1787 = vpack.c.b16 %v1059, %v1051
    %v1788 = vpack.c.b16 %v1060, %v1052
    %v1789 = vpack.c.b16 %v1061, %v1053
    %v1790 = vpack.c.b16 %v1062, %v1054
    %v1791 = vpack.c.b16 %v1063, %v1055
    %v1792 = vpack.c.b16 %v1064, %v1056
    %v1793 = vpack.c.b16 %v1065, %v1057
    %v1794 = vpack.c.b16 %v1074, %v1066
    %v1795 = vpack.c.b16 %v1075, %v1067
    %v1796 = vpack.c.b16 %v1076, %v1068
    %v1797 = vpack.c.b16 %v1077, %v1069
    %v1798 = vpack.c.b16 %v1078, %v1070
    %v1799 = vpack.c.b16 %v1079, %v1071
    %v1800 = vpack.c.b16 %v1080, %v1072
    %v1801 = vpack.c.b16 %v1081, %v1073
    %v1802 = vpack.c.b16 %v1090, %v1082
    %v1803 = vpack.c.b16 %v1091, %v1083
    %v1804 = vpack.c.b16 %v1092, %v1084
    %v1805 = vpack.c.b16 %v1093, %v1085
    %v1806 = vpack.c.b16 %v1094, %v1086
    %v1807 = vpack.c.b16 %v1095, %v1087
    %v1808 = vpack.c.b16 %v1096, %v1088
    %v1809 = vpack.c.b16 %v1097, %v1089
    %v1810 = vpack.c.b16 %v1106, %v1098
    %v1811 = vpack.c.b16 %v1107, %v1099
    %v1812 = vpack.c.b16 %v1108, %v1100
    %v1813 = vpack.c.b16 %v1109, %v1101
    %v1814 = vpack.c.b16 %v1110, %v1102
    %v1815 = vpack.c.b16 %v1111, %v1103
    %v1816 = vpack.c.b16 %v1112, %v1104
    %v1817 = vpack.c.b16 %v1113, %v1105
    %v1818 = vpack.c.b16 %v1122, %v1114
    %v1819 = vpack.c.b16 %v1123, %v1115
    %v1820 = vpack.c.b16 %v1124, %v1116
    %v1821 = vpack.c.b16 %v1125, %v1117
    %v1822 = vpack.c.b16 %v1126, %v1118
    %v1823 = vpack.c.b16 %v1127, %v1119
    %v1824 = vpack.c.b16 %v1128, %v1120
    %v1825 = vpack.c.b16 %v1129, %v1121
    %v1826 = vpack.c.b16 %v1138, %v1130
    %v1827 = vpack.c.b16 %v1139, %v1131
    %v1828 = vpack.c.b16 %v1140, %v1132
    %v1829 = vpack.c.b16 %v1141, %v1133
    %v1830 = vpack.c.b16 %v1142, %v1134
    %v1831 = vpack.c.b16 %v1143, %v1135
    %v1832 = vpack.c.b16 %v1144, %v1136
    %v1833 = vpack.c.b16 %v1145, %v1137
    %v1834 = vpack.c.b16 %v1154, %v1146
    %v1835 = vpack.c.b16 %v1155, %v1147
    %v1836 = vpack.c.b16 %v1156, %v1148
    %v1837 = vpack.c.b16 %v1157, %v1149
    %v1838 = vpack.c.b16 %v1158, %v1150
    %v1839 = vpack.c.b16 %v1159, %v1151
    %v1840 = vpack.c.b16 %v1160, %v1152
    %v1841 = vpack.c.b16 %v1161, %v1153
    %v1842 = vpack.c.b16 %v1170, %v1162
    %v1843 = vpack.c.b16 %v1171, %v1163
    %v1844 = vpack.c.b16 %v1172, %v1164
    %v1845 = vpack.c.b16 %v1173, %v1165
    %v1846 = vpack.c.b16 %v1174, %v1166
    %v1847 = vpack.c.b16 %v1175, %v1167
    %v1848 = vpack.c.b16 %v1176, %v1168
    %v1849 = vpack.c.b16 %v1177, %v1169
    %v1850 = vpack.c.b16 %v1186, %v1178
    %v1851 = vpack.c.b16 %v1187, %v1179
    %v1852 = vpack.c.b16 %v1188, %v1180
    %v1853 = vpack.c.b16 %v1189, %v1181
    %v1854 = vpack.c.b16 %v1190, %v1182
    %v1855 = vpack.c.b16 %v1191, %v1183
    %v1856 = vpack.c.b16 %v1192, %v1184
    %v1857 = vpack.c.b16 %v1193, %v1185
    %v1858 = vpack.c.b16 %v1202, %v1194
    %v1859 = vpack.c.b16 %v1203, %v1195
    %v1860 = vpack.c.b16 %v1204, %v1196
    %v1861 = vpack.c.b16 %v1205, %v1197
    %v1862 = vpack.c.b16 %v1206, %v1198
    %v1863 = vpack.c.b16 %v1207, %v1199
    %v1864 = vpack.c.b16 %v1208, %v1200
    %v1865 = vpack.c.b16 %v1209, %v1201
    %v1866 = vpack.c.b16 %v1218, %v1210
    %v1867 = vpack.c.b16 %v1219, %v1211
    %v1868 = vpack.c.b16 %v1220, %v1212
    %v1869 = vpack.c.b16 %v1221, %v1213
    %v1870 = vpack.c.b16 %v1222, %v1214
    %v1871 = vpack.c.b16 %v1223, %v1215
    %v1872 = vpack.c.b16 %v1224, %v1216
    %v1873 = vpack.c.b16 %v1225, %v1217
    %v1874 = vpack.c.b16 %v1234, %v1226
    %v1875 = vpack.c.b16 %v1235, %v1227
    %v1876 = vpack.c.b16 %v1236, %v1228
    %v1877 = vpack.c.b16 %v1237, %v1229
    %v1878 = vpack.c.b16 %v1238, %v1230
    %v1879 = vpack.c.b16 %v1239, %v1231
    %v1880 = vpack.c.b16 %v1240, %v1232
    %v1881 = vpack.c.b16 %v1241, %v1233
    %v1882 = vpack.c.b16 %v1250, %v1242
    %v1883 = vpack.c.b16 %v1251, %v1243
    %v1884 = vpack.c.b16 %v1252, %v1244
    %v1885 = vpack.c.b16 %v1253, %v1245
    %v1886 = vpack.c.b16 %v1254, %v1246
    %v1887 = vpack.c.b16 %v1255, %v1247
    %v1888 = vpack.c.b16 %v1256, %v1248
    %v1889 = vpack.c.b16 %v1257, %v1249
    %v1890 = vpack.c.b16 %v1266, %v1258
    %v1891 = vpack.c.b16 %v1267, %v1259
    %v1892 = vpack.c.b16 %v1268, %v1260
    %v1893 = vpack.c.b16 %v1269, %v1261
    %v1894 = vpack.c.b16 %v1270, %v1262
    %v1895 = vpack.c.b16 %v1271, %v1263
    %v1896 = vpack.c.b16 %v1272, %v1264
    %v1897 = vpack.c.b16 %v1273, %v1265
    %v1898 = vpack.c.b16 %v1282, %v1274
    %v1899 = vpack.c.b16 %v1283, %v1275
    %v1900 = vpack.c.b16 %v1284, %v1276
    %v1901 = vpack.c.b16 %v1285, %v1277
    %v1902 = vpack.c.b16 %v1286, %v1278
    %v1903 = vpack.c.b16 %v1287, %v1279
    %v1904 = vpack.c.b16 %v1288, %v1280
    %v1905 = vpack.c.b16 %v1289, %v1281
    %v1906 = vpack.c.b16 %v1298, %v1290
    %v1907 = vpack.c.b16 %v1299, %v1291
    %v1908 = vpack.c.b16 %v1300, %v1292
    %v1909 = vpack.c.b16 %v1301, %v1293
    %v1910 = vpack.c.b16 %v1302, %v1294
    %v1911 = vpack.c.b16 %v1303, %v1295
    %v1912 = vpack.c.b16 %v1304, %v1296
    %v1913 = vpack.c.b16 %v1305, %v1297
    %v1914 = vpack.c.b16 %v1314, %v1306
    %v1915 = vpack.c.b16 %v1315, %v1307
    %v1916 = vpack.c.b16 %v1316, %v1308
    %v1917 = vpack.c.b16 %v1317, %v1309
    %v1918 = vpack.c.b16 %v1318, %v1310
    %v1919 = vpack.c.b16 %v1319, %v1311
    %v1920 = vpack.c.b16 %v1320, %v1312
    %v1921 = vpack.c.b16 %v1321, %v1313
    %v1922 = vpack.c.b16 %v1330, %v1322
    %v1923 = vpack.c.b16 %v1331, %v1323
    %v1924 = vpack.c.b16 %v1332, %v1324
    %v1925 = vpack.c.b16 %v1333, %v1325
    %v1926 = vpack.c.b16 %v1334, %v1326
    %v1927 = vpack.c.b16 %v1335, %v1327
    %v1928 = vpack.c.b16 %v1336, %v1328
    %v1929 = vpack.c.b16 %v1337, %v1329
    %v1930 = vpack.c.b16 %v1346, %v1338
    %v1931 = vpack.c.b16 %v1347, %v1339
    %v1932 = vpack.c.b16 %v1348, %v1340
    %v1933 = vpack.c.b16 %v1349, %v1341
    %v1934 = vpack.c.b16 %v1350, %v1342
    %v1935 = vpack.c.b16 %v1351, %v1343
    %v1936 = vpack.c.b16 %v1352, %v1344
    %v1937 = vpack.c.b16 %v1353, %v1345
    %v1938 = vpack.c.b16 %v1362, %v1354
    %v1939 = vpack.c.b16 %v1363, %v1355
    %v1940 = vpack.c.b16 %v1364, %v1356
    %v1941 = vpack.c.b16 %v1365, %v1357
    %v1942 = vpack.c.b16 %v1366, %v1358
    %v1943 = vpack.c.b16 %v1367, %v1359
    %v1944 = vpack.c.b16 %v1368, %v1360
    %v1945 = vpack.c.b16 %v1369, %v1361
    %v1946 = vpack.c.b16 %v1378, %v1370
    %v1947 = vpack.c.b16 %v1379, %v1371
    %v1948 = vpack.c.b16 %v1380, %v1372
    %v1949 = vpack.c.b16 %v1381, %v1373
    %v1950 = vpack.c.b16 %v1382, %v1374
    %v1951 = vpack.c.b16 %v1383, %v1375
    %v1952 = vpack.c.b16 %v1384, %v1376
    %v1953 = vpack.c.b16 %v1385, %v1377
    %v1954 = vpack.c.b16 %v1394, %v1386
    %v1955 = vpack.c.b16 %v1395, %v1387
    %v1956 = vpack.c.b16 %v1396, %v1388
    %v1957 = vpack.c.b16 %v1397, %v1389
    %v1958 = vpack.c.b16 %v1398, %v1390
    %v1959 = vpack.c.b16 %v1399, %v1391
    %v1960 = vpack.c.b16 %v1400, %v1392
    %v1961 = vpack.c.b16 %v1401, %v1393
    %v1962 = vpack.c.b16 %v1410, %v1402
    %v1963 = vpack.c.b16 %v1411, %v1403
    %v1964 = vpack.c.b16 %v1412, %v1404
    %v1965 = vpack.c.b16 %v1413, %v1405
    %v1966 = vpack.c.b16 %v1414, %v1406
    %v1967 = vpack.c.b16 %v1415, %v1407
    %v1968 = vpack.c.b16 %v1416, %v1408
    %v1969 = vpack.c.b16 %v1417, %v1409
    %v1970 = vpack.c.b16 %v1426, %v1418
    %v1971 = vpack.c.b16 %v1427, %v1419
    %v1972 = vpack.c.b16 %v1428, %v1420
    %v1973 = vpack.c.b16 %v1429, %v1421
    %v1974 = vpack.c.b16 %v1430, %v1422
    %v1975 = vpack.c.b16 %v1431, %v1423
    %v1976 = vpack.c.b16 %v1432, %v1424
    %v1977 = vpack.c.b16 %v1433, %v1425
    %v1978 = vpack.c.b16 %v1442, %v1434
    %v1979 = vpack.c.b16 %v1443, %v1435
    %v1980 = vpack.c.b16 %v1444, %v1436
    %v1981 = vpack.c.b16 %v1445, %v1437
    %v1982 = vpack.c.b16 %v1446, %v1438
    %v1983 = vpack.c.b16 %v1447, %v1439
    %v1984 = vpack.c.b16 %v1448, %v1440
    %v1985 = vpack.c.b16 %v1449, %v1441
    %v1986 = vpack.c.b16 %v1458, %v1450
    %v1987 = vpack.c.b16 %v1459, %v1451
    %v1988 = vpack.c.b16 %v1460, %v1452
    %v1989 = vpack.c.b16 %v1461, %v1453
    %v1990 = vpack.c.b16 %v1462, %v1454
    %v1991 = vpack.c.b16 %v1463, %v1455
    %v1992 = vpack.c.b16 %v1464, %v1456
    %v1993 = vpack.c.b16 %v1465, %v1457
    %v1994 = vpack.c.b16 %v1474, %v1466
    %v1995 = vpack.c.b16 %v1475, %v1467
    %v1996 = vpack.c.b16 %v1476, %v1468
    %v1997 = vpack.c.b16 %v1477, %v1469
    %v1998 = vpack.c.b16 %v1478, %v1470
    %v1999 = vpack.c.b16 %v1479, %v1471
    %v2000 = vpack.c.b16 %v1480, %v1472
    %v2001 = vpack.c.b16 %v1481, %v1473
    %v2002 = vpack.c.b16 %v1490, %v1482
    %v2003 = vpack.c.b16 %v1491, %v1483
    %v2004 = vpack.c.b16 %v1492, %v1484
    %v2005 = vpack.c.b16 %v1493, %v1485
    %v2006 = vpack.c.b16 %v1494, %v1486
    %v2007 = vpack.c.b16 %v1495, %v1487
    %v2008 = vpack.c.b16 %v1496, %v1488
    %v2009 = vpack.c.b16 %v1497, %v1489
    %v2010 = vpack.c.b16 %v1506, %v1498
    %v2011 = vpack.c.b16 %v1507, %v1499
    %v2012 = vpack.c.b16 %v1508, %v1500
    %v2013 = vpack.c.b16 %v1509, %v1501
    %v2014 = vpack.c.b16 %v1510, %v1502
    %v2015 = vpack.c.b16 %v1511, %v1503
    %v2016 = vpack.c.b16 %v1512, %v1504
    %v2017 = vpack.c.b16 %v1513, %v1505
    %v2018 = vpack.c.b16 %v1522, %v1514
    %v2019 = vpack.c.b16 %v1523, %v1515
    %v2020 = vpack.c.b16 %v1524, %v1516
    %v2021 = vpack.c.b16 %v1525, %v1517
    %v2022 = vpack.c.b16 %v1526, %v1518
    %v2023 = vpack.c.b16 %v1527, %v1519
    %v2024 = vpack.c.b16 %v1528, %v1520
    %v2025 = vpack.c.b16 %v1529, %v1521
    %v2026 = vpack.c.b16 %v1538, %v1530
    %v2027 = vpack.c.b16 %v1539, %v1531
    %v2028 = vpack.c.b16 %v1540, %v1532
    %v2029 = vpack.c.b16 %v1541, %v1533
    %v2030 = vpack.c.b16 %v1542, %v1534
    %v2031 = vpack.c.b16 %v1543, %v1535
    %v2032 = vpack.c.b16 %v1544, %v1536
    %v2033 = vpack.c.b16 %v1545, %v1537
    %v2034 = vpack.c.b16 %v1554, %v1546
    %v2035 = vpack.c.b16 %v1555, %v1547
    %v2036 = vpack.c.b16 %v1556, %v1548
    %v2037 = vpack.c.b16 %v1557, %v1549
    %v2038 = vpack.c.b16 %v1558, %v1550
    %v2039 = vpack.c.b16 %v1559, %v1551
    %v2040 = vpack.c.b16 %v1560, %v1552
    %v2041 = vpack.c.b16 %v1561, %v1553
    %v2042 = vpack.c.b16 %v1570, %v1562
    %v2043 = vpack.c.b16 %v1571, %v1563
    %v2044 = vpack.c.b16 %v1572, %v1564
    %v2045 = vpack.c.b16 %v1573, %v1565
    %v2046 = vpack.c.b16 %v1574, %v1566
    %v2047 = vpack.c.b16 %v1575, %v1567
    %v2048 = vpack.c.b16 %v1576, %v1568
    %v2049 = vpack.c.b16 %v1577, %v1569
    %v2050 = vpack.c.b16 %v1586, %v1578
    %v2051 = vpack.c.b16 %v1587, %v1579
    %v2052 = vpack.c.b16 %v1588, %v1580
    %v2053 = vpack.c.b16 %v1589, %v1581
    %v2054 = vpack.c.b16 %v1590, %v1582
    %v2055 = vpack.c.b16 %v1591, %v1583
    %v2056 = vpack.c.b16 %v1592, %v1584
    %v2057 = vpack.c.b16 %v1593, %v1585
    %v2058 = vpack.c.b16 %v1602, %v1594
    %v2059 = vpack.c.b16 %v1603, %v1595
    %v2060 = vpack.c.b16 %v1604, %v1596
    %v2061 = vpack.c.b16 %v1605, %v1597
    %v2062 = vpack.c.b16 %v1606, %v1598
    %v2063 = vpack.c.b16 %v1607, %v1599
    %v2064 = vpack.c.b16 %v1608, %v1600
    %v2065 = vpack.c.b16 %v1609, %v1601
    %v2066 = vpack.c.b16 %v1618, %v1610
    %v2067 = vpack.c.b16 %v1619, %v1611
    %v2068 = vpack.c.b16 %v1620, %v1612
    %v2069 = vpack.c.b16 %v1621, %v1613
    %v2070 = vpack.c.b16 %v1622, %v1614
    %v2071 = vpack.c.b16 %v1623, %v1615
    %v2072 = vpack.c.b16 %v1624, %v1616
    %v2073 = vpack.c.b16 %v1625, %v1617
    %v2074 = vpack.c.b16 %v1634, %v1626
    %v2075 = vpack.c.b16 %v1635, %v1627
    %v2076 = vpack.c.b16 %v1636, %v1628
    %v2077 = vpack.c.b16 %v1637, %v1629
    %v2078 = vpack.c.b16 %v1638, %v1630
    %v2079 = vpack.c.b16 %v1639, %v1631
    %v2080 = vpack.c.b16 %v1640, %v1632
    %v2081 = vpack.c.b16 %v1641, %v1633
    %v2082 = vpack.c.b16 %v1650, %v1642
    %v2083 = vpack.c.b16 %v1651, %v1643
    %v2084 = vpack.c.b16 %v1652, %v1644
    %v2085 = vpack.c.b16 %v1653, %v1645
    %v2086 = vpack.c.b16 %v1654, %v1646
    %v2087 = vpack.c.b16 %v1655, %v1647
    %v2088 = vpack.c.b16 %v1656, %v1648
    %v2089 = vpack.c.b16 %v1657, %v1649
    %v2090 = vpack.c.b16 %v1666, %v1658
    %v2091 = vpack.c.b16 %v1667, %v1659
    %v2092 = vpack.c.b16 %v1668, %v1660
    %v2093 = vpack.c.b16 %v1669, %v1661
    %v2094 = vpack.c.b16 %v1670, %v1662
    %v2095 = vpack.c.b16 %v1671, %v1663
    %v2096 = vpack.c.b16 %v1672, %v1664
    %v2097 = vpack.c.b16 %v1673, %v1665
    %v2098 = vpack.c.b16 %v1682, %v1674
    %v2099 = vpack.c.b16 %v1683, %v1675
    %v2100 = vpack.c.b16 %v1684, %v1676
    %v2101 = vpack.c.b16 %v1685, %v1677
    %v2102 = vpack.c.b16 %v1686, %v1678
    %v2103 = vpack.c.b16 %v1687, %v1679
    %v2104 = vpack.c.b16 %v1688, %v1680
    %v2105 = vpack.c.b16 %v1689, %v1681
    %v2106 = vpack.c.b16 %v1698, %v1690
    %v2107 = vpack.c.b16 %v1699, %v1691
    %v2108 = vpack.c.b16 %v1700, %v1692
    %v2109 = vpack.c.b16 %v1701, %v1693
    %v2110 = vpack.c.b16 %v1702, %v1694
    %v2111 = vpack.c.b16 %v1703, %v1695
    %v2112 = vpack.c.b16 %v1704, %v1696
    %v2113 = vpack.c.b16 %v1705, %v1697
    %v2114 = vpack.c.b16 %v1714, %v1706
    %v2115 = vpack.c.b16 %v1715, %v1707
    %v2116 = vpack.c.b16 %v1716, %v1708
    %v2117 = vpack.c.b16 %v1717, %v1709
    %v2118 = vpack.c.b16 %v1718, %v1710
    %v2119 = vpack.c.b16 %v1719, %v1711
    %v2120 = vpack.c.b16 %v1720, %v1712
    %v2121 = vpack.c.b16 %v1721, %v1713
    %v2122 = vpack.c.b16 %v1730, %v1722
    %v2123 = vpack.c.b16 %v1731, %v1723
    %v2124 = vpack.c.b16 %v1732, %v1724
    %v2125 = vpack.c.b16 %v1733, %v1725
    %v2126 = vpack.c.b16 %v1734, %v1726
    %v2127 = vpack.c.b16 %v1735, %v1727
    %v2128 = vpack.c.b16 %v1736, %v1728
    %v2129 = vpack.c.b16 %v1737, %v1729
    %vm2522 = vcmask 130048
    %v2524 = vsel %vm2522, %v127, 0
    %2526 = vmatprep.subr.bf16.mxu0 %v1739
    %2527 = vmatpush1.bf16.msra.mxu0 %v1738
    %2528 = vmatprep.subr.bf16.mxu0 %v1747
    %2529 = vmatpush1.bf16.msra.mxu0 %v1746
    %2530 = vmatprep.subr.bf16.mxu0 %v1755
    %2531 = vmatpush1.bf16.msra.mxu0 %v1754
    %2532 = vmatprep.subr.bf16.mxu0 %v1763
    %2533 = vmatpush1.bf16.msra.mxu0 %v1762
    %2534 = vmatprep.subr.bf16.mxu0 %v1771
    %2535 = vmatpush1.bf16.msra.mxu0 %v1770
    %2536 = vmatprep.subr.bf16.mxu0 %v1779
    %2537 = vmatpush1.bf16.msra.mxu0 %v1778
    %2538 = vmatprep.subr.bf16.mxu0 %v1787
    %2539 = vmatpush1.bf16.msra.mxu0 %v1786
    %2540 = vmatprep.subr.bf16.mxu0 %v1795
    %2541 = vmatpush1.bf16.msra.mxu0 %v1794
    %2542 = vmatprep.subr.bf16.mxu0 %v1803
    %2543 = vmatpush1.bf16.msra.mxu0 %v1802
    %2544 = vmatprep.subr.bf16.mxu0 %v1811
    %2545 = vmatpush1.bf16.msra.mxu0 %v1810
    %2546 = vmatprep.subr.bf16.mxu0 %v1819
    %2547 = vmatpush1.bf16.msra.mxu0 %v1818
    %2548 = vmatprep.subr.bf16.mxu0 %v1827
    %2549 = vmatpush1.bf16.msra.mxu0 %v1826
    %2550 = vmatprep.subr.bf16.mxu0 %v1835
    %2551 = vmatpush1.bf16.msra.mxu0 %v1834
    %2552 = vmatprep.subr.bf16.mxu0 %v1843
    %2553 = vmatpush1.bf16.msra.mxu0 %v1842
    %2554 = vmatprep.subr.bf16.mxu0 %v1851
    %2555 = vmatpush1.bf16.msra.mxu0 %v1850
    %2556 = vmatprep.subr.bf16.mxu0 %v1859
    %2557 = vmatpush1.bf16.msra.mxu0 %v1858
    %2558 = vmatprep.mubr.bf16.mxu0 %v122
    %2559 = vmatmul.mubr.bf16.gmra.mrb[0].mxu0 %v121
    %v2560 = vpop.f32.mrb[0].mxu0
    %v2561 = vadd.f32 %v525, %v2560
    %v2562 = vpop.f32.mrb[0].mxu0
    %v2563 = vadd.f32 %v529, %v2562
    %v2564 = vpop.f32.mrb[0].mxu0
    %v2565 = vpop.f32.mrb[0].mxu0
    %2566 = vdwg.mxu0
    %2567 = vmatprep.subr.bf16.mxu0 %v1867
    %2568 = vmatpush1.bf16.msra.mxu0 %v1866
    %2569 = vmatprep.subr.bf16.mxu0 %v1875
    %2570 = vmatpush1.bf16.msra.mxu0 %v1874
    %2571 = vmatprep.subr.bf16.mxu0 %v1883
    %2572 = vmatpush1.bf16.msra.mxu0 %v1882
    %2573 = vmatprep.subr.bf16.mxu0 %v1891
    %2574 = vmatpush1.bf16.msra.mxu0 %v1890
    %2575 = vmatprep.subr.bf16.mxu0 %v1899
    %2576 = vmatpush1.bf16.msra.mxu0 %v1898
    %2577 = vmatprep.subr.bf16.mxu0 %v1907
    %2578 = vmatpush1.bf16.msra.mxu0 %v1906
    %2579 = vmatprep.subr.bf16.mxu0 %v1915
    %2580 = vmatpush1.bf16.msra.mxu0 %v1914
    %2581 = vmatprep.subr.bf16.mxu0 %v1923
    %2582 = vmatpush1.bf16.msra.mxu0 %v1922
    %2583 = vmatprep.subr.bf16.mxu0 %v1931
    %2584 = vmatpush1.bf16.msra.mxu0 %v1930
    %2585 = vmatprep.subr.bf16.mxu0 %v1939
    %2586 = vmatpush1.bf16.msra.mxu0 %v1938
    %2587 = vmatprep.subr.bf16.mxu0 %v1947
    %2588 = vmatpush1.bf16.msra.mxu0 %v1946
    %2589 = vmatprep.subr.bf16.mxu0 %v1955
    %2590 = vmatpush1.bf16.msra.mxu0 %v1954
    %2591 = vmatprep.subr.bf16.mxu0 %v1963
    %2592 = vmatpush1.bf16.msra.mxu0 %v1962
    %2593 = vmatprep.subr.bf16.mxu0 %v1971
    %2594 = vmatpush1.bf16.msra.mxu0 %v1970
    %2595 = vmatprep.subr.bf16.mxu0 %v1979
    %2596 = vmatpush1.bf16.msra.mxu0 %v1978
    %2597 = vmatprep.subr.bf16.mxu0 %v1987
    %2598 = vmatpush1.bf16.msra.mxu0 %v1986
    %2599 = vmatprep.mubr.bf16.mxu0 %v124
    %2600 = vmatmul.mubr.bf16.gmra.mrb[0].mxu0 %v123
    %v2601 = vpop.f32.mrb[0].mxu0
    %v2602 = vadd.f32 %v2561, %v2601
    %v2603 = vpop.f32.mrb[0].mxu0
    %v2604 = vadd.f32 %v2563, %v2603
    %v2605 = vpop.f32.mrb[0].mxu0
    %v2606 = vpop.f32.mrb[0].mxu0
    %2607 = vdwg.mxu0
    %2608 = vmatprep.subr.bf16.mxu0 %v1995
    %2609 = vmatpush1.bf16.msra.mxu0 %v1994
    %2610 = vmatprep.subr.bf16.mxu0 %v2003
    %2611 = vmatpush1.bf16.msra.mxu0 %v2002
    %2612 = vmatprep.subr.bf16.mxu0 %v2011
    %2613 = vmatpush1.bf16.msra.mxu0 %v2010
    %2614 = vmatprep.subr.bf16.mxu0 %v2019
    %2615 = vmatpush1.bf16.msra.mxu0 %v2018
    %2616 = vmatprep.subr.bf16.mxu0 %v2027
    %2617 = vmatpush1.bf16.msra.mxu0 %v2026
    %2618 = vmatprep.subr.bf16.mxu0 %v2035
    %2619 = vmatpush1.bf16.msra.mxu0 %v2034
    %2620 = vmatprep.subr.bf16.mxu0 %v2043
    %2621 = vmatpush1.bf16.msra.mxu0 %v2042
    %2622 = vmatprep.subr.bf16.mxu0 %v2051
    %2623 = vmatpush1.bf16.msra.mxu0 %v2050
    %2624 = vmatprep.subr.bf16.mxu0 %v2059
    %2625 = vmatpush1.bf16.msra.mxu0 %v2058
    %2626 = vmatprep.subr.bf16.mxu0 %v2067
    %2627 = vmatpush1.bf16.msra.mxu0 %v2066
    %2628 = vmatprep.subr.bf16.mxu0 %v2075
    %2629 = vmatpush1.bf16.msra.mxu0 %v2074
    %2630 = vmatprep.subr.bf16.mxu0 %v2083
    %2631 = vmatpush1.bf16.msra.mxu0 %v2082
    %2632 = vmatprep.subr.bf16.mxu0 %v2091
    %2633 = vmatpush1.bf16.msra.mxu0 %v2090
    %2634 = vmatprep.subr.bf16.mxu0 %v2099
    %2635 = vmatpush1.bf16.msra.mxu0 %v2098
    %2636 = vmatprep.subr.bf16.mxu0 %v2107
    %2637 = vmatpush1.bf16.msra.mxu0 %v2106
    %2638 = vmatprep.subr.bf16.mxu0 %v2115
    %2639 = vmatpush1.bf16.msra.mxu0 %v2114
    %2640 = vmatprep.mubr.bf16.mxu0 %v126
    %2641 = vmatmul.mubr.bf16.gmra.mrb[0].mxu0 %v125
    %v2642 = vpop.f32.mrb[0].mxu0
    %v2643 = vadd.f32 %v2602, %v2642
    %v2644 = vpop.f32.mrb[0].mxu0
    %v2645 = vadd.f32 %v2604, %v2644
    %v2646 = vpop.f32.mrb[0].mxu0
    %v2647 = vpop.f32.mrb[0].mxu0
    %2648 = vdwg.mxu0
    %2649 = vmatprep.subr.bf16.mxu0 %v2123
    %2650 = vmatpush1.bf16.msra.mxu0 %v2122
    %2651 = vmatprep.subr.bf16.mxu0 0
    %2652 = vmatpush1.bf16.msra.mxu0 0
    %2653 = vmatprep.subr.bf16.mxu0 0
    %2654 = vmatpush1.bf16.msra.mxu0 0
    %2655 = vmatprep.subr.bf16.mxu0 0
    %2656 = vmatpush1.bf16.msra.mxu0 0
    %2657 = vmatprep.subr.bf16.mxu0 0
    %2658 = vmatpush1.bf16.msra.mxu0 0
    %2659 = vmatprep.subr.bf16.mxu0 0
    %2660 = vmatpush1.bf16.msra.mxu0 0
    %2661 = vmatprep.subr.bf16.mxu0 0
    %2662 = vmatpush1.bf16.msra.mxu0 0
    %2663 = vmatprep.subr.bf16.mxu0 0
    %2664 = vmatpush1.bf16.msra.mxu0 0
    %2665 = vmatprep.subr.bf16.mxu0 0
    %2666 = vmatpush1.bf16.msra.mxu0 0
    %2667 = vmatprep.subr.bf16.mxu0 0
    %2668 = vmatpush1.bf16.msra.mxu0 0
    %2669 = vmatprep.subr.bf16.mxu0 0
    %2670 = vmatpush1.bf16.msra.mxu0 0
    %2671 = vmatprep.subr.bf16.mxu0 0
    %2672 = vmatpush1.bf16.msra.mxu0 0
    %2673 = vmatprep.subr.bf16.mxu0 0
    %2674 = vmatpush1.bf16.msra.mxu0 0
    %2675 = vmatprep.subr.bf16.mxu0 0
    %2676 = vmatpush1.bf16.msra.mxu0 0
    %2677 = vmatprep.subr.bf16.mxu0 0
    %2678 = vmatpush1.bf16.msra.mxu0 0
    %2679 = vmatprep.subr.bf16.mxu0 0
    %2680 = vmatpush1.bf16.msra.mxu0 0
    %2681 = vmatprep.mubr.bf16.mxu0 0
    %2682 = vmatmul.mubr.bf16.gmra.mrb[0].mxu0 %v2524
    %v2683 = vpop.f32.mrb[0].mxu0
    %v2684 = vadd.f32 %v2643, %v2683
    %v2685 = vpop.f32.mrb[0].mxu0
    %v2686 = vadd.f32 %v2645, %v2685
    %v2687 = vpop.f32.mrb[0].mxu0
    %v2688 = vpop.f32.mrb[0].mxu0
    %2689 = vdwg.mxu0
    %2690 = vmatprep.subr.bf16.mxu0 %v1741
    %2691 = vmatpush1.bf16.msra.mxu0 %v1740
    %2692 = vmatprep.subr.bf16.mxu0 %v1749
    %2693 = vmatpush1.bf16.msra.mxu0 %v1748
    %2694 = vmatprep.subr.bf16.mxu0 %v1757
    %2695 = vmatpush1.bf16.msra.mxu0 %v1756
    %2696 = vmatprep.subr.bf16.mxu0 %v1765
    %2697 = vmatpush1.bf16.msra.mxu0 %v1764
    %2698 = vmatprep.subr.bf16.mxu0 %v1773
    %2699 = vmatpush1.bf16.msra.mxu0 %v1772
    %2700 = vmatprep.subr.bf16.mxu0 %v1781
    %2701 = vmatpush1.bf16.msra.mxu0 %v1780
    %2702 = vmatprep.subr.bf16.mxu0 %v1789
    %2703 = vmatpush1.bf16.msra.mxu0 %v1788
    %2704 = vmatprep.subr.bf16.mxu0 %v1797
    %2705 = vmatpush1.bf16.msra.mxu0 %v1796
    %2706 = vmatprep.subr.bf16.mxu0 %v1805
    %2707 = vmatpush1.bf16.msra.mxu0 %v1804
    %2708 = vmatprep.subr.bf16.mxu0 %v1813
    %2709 = vmatpush1.bf16.msra.mxu0 %v1812
    %2710 = vmatprep.subr.bf16.mxu0 %v1821
    %2711 = vmatpush1.bf16.msra.mxu0 %v1820
    %2712 = vmatprep.subr.bf16.mxu0 %v1829
    %2713 = vmatpush1.bf16.msra.mxu0 %v1828
    %2714 = vmatprep.subr.bf16.mxu0 %v1837
    %2715 = vmatpush1.bf16.msra.mxu0 %v1836
    %2716 = vmatprep.subr.bf16.mxu0 %v1845
    %2717 = vmatpush1.bf16.msra.mxu0 %v1844
    %2718 = vmatprep.subr.bf16.mxu0 %v1853
    %2719 = vmatpush1.bf16.msra.mxu0 %v1852
    %2720 = vmatprep.subr.bf16.mxu0 %v1861
    %2721 = vmatpush1.bf16.msra.mxu0 %v1860
    %2722 = vmatprep.mubr.bf16.mxu0 %v122
    %2723 = vmatmul.mubr.bf16.gmra.mrb[0].mxu0 %v121
    %v2724 = vpop.f32.mrb[0].mxu0
    %v2725 = vadd.f32 %v533, %v2724
    %v2726 = vpop.f32.mrb[0].mxu0
    %v2727 = vadd.f32 %v537, %v2726
    %v2728 = vpop.f32.mrb[0].mxu0
    %v2729 = vpop.f32.mrb[0].mxu0
    %2730 = vdwg.mxu0
    %2731 = vmatprep.subr.bf16.mxu0 %v1869
    %2732 = vmatpush1.bf16.msra.mxu0 %v1868
    %2733 = vmatprep.subr.bf16.mxu0 %v1877
    %2734 = vmatpush1.bf16.msra.mxu0 %v1876
    %2735 = vmatprep.subr.bf16.mxu0 %v1885
    %2736 = vmatpush1.bf16.msra.mxu0 %v1884
    %2737 = vmatprep.subr.bf16.mxu0 %v1893
    %2738 = vmatpush1.bf16.msra.mxu0 %v1892
    %2739 = vmatprep.subr.bf16.mxu0 %v1901
    %2740 = vmatpush1.bf16.msra.mxu0 %v1900
    %2741 = vmatprep.subr.bf16.mxu0 %v1909
    %2742 = vmatpush1.bf16.msra.mxu0 %v1908
    %2743 = vmatprep.subr.bf16.mxu0 %v1917
    %2744 = vmatpush1.bf16.msra.mxu0 %v1916
    %2745 = vmatprep.subr.bf16.mxu0 %v1925
    %2746 = vmatpush1.bf16.msra.mxu0 %v1924
    %2747 = vmatprep.subr.bf16.mxu0 %v1933
    %2748 = vmatpush1.bf16.msra.mxu0 %v1932
    %2749 = vmatprep.subr.bf16.mxu0 %v1941
    %2750 = vmatpush1.bf16.msra.mxu0 %v1940
    %2751 = vmatprep.subr.bf16.mxu0 %v1949
    %2752 = vmatpush1.bf16.msra.mxu0 %v1948
    %2753 = vmatprep.subr.bf16.mxu0 %v1957
    %2754 = vmatpush1.bf16.msra.mxu0 %v1956
    %2755 = vmatprep.subr.bf16.mxu0 %v1965
    %2756 = vmatpush1.bf16.msra.mxu0 %v1964
    %2757 = vmatprep.subr.bf16.mxu0 %v1973
    %2758 = vmatpush1.bf16.msra.mxu0 %v1972
    %2759 = vmatprep.subr.bf16.mxu0 %v1981
    %2760 = vmatpush1.bf16.msra.mxu0 %v1980
    %2761 = vmatprep.subr.bf16.mxu0 %v1989
    %2762 = vmatpush1.bf16.msra.mxu0 %v1988
    %2763 = vmatprep.mubr.bf16.mxu0 %v124
    %2764 = vmatmul.mubr.bf16.gmra.mrb[0].mxu0 %v123
    %v2765 = vpop.f32.mrb[0].mxu0
    %v2766 = vadd.f32 %v2725, %v2765
    %v2767 = vpop.f32.mrb[0].mxu0
    %v2768 = vadd.f32 %v2727, %v2767
    %v2769 = vpop.f32.mrb[0].mxu0
    %v2770 = vpop.f32.mrb[0].mxu0
    %2771 = vdwg.mxu0
    %2772 = vmatprep.subr.bf16.mxu0 %v1997
    %2773 = vmatpush1.bf16.msra.mxu0 %v1996
    %2774 = vmatprep.subr.bf16.mxu0 %v2005
    %2775 = vmatpush1.bf16.msra.mxu0 %v2004
    %2776 = vmatprep.subr.bf16.mxu0 %v2013
    %2777 = vmatpush1.bf16.msra.mxu0 %v2012
    %2778 = vmatprep.subr.bf16.mxu0 %v2021
    %2779 = vmatpush1.bf16.msra.mxu0 %v2020
    %2780 = vmatprep.subr.bf16.mxu0 %v2029
    %2781 = vmatpush1.bf16.msra.mxu0 %v2028
    %2782 = vmatprep.subr.bf16.mxu0 %v2037
    %2783 = vmatpush1.bf16.msra.mxu0 %v2036
    %2784 = vmatprep.subr.bf16.mxu0 %v2045
    %2785 = vmatpush1.bf16.msra.mxu0 %v2044
    %2786 = vmatprep.subr.bf16.mxu0 %v2053
    %2787 = vmatpush1.bf16.msra.mxu0 %v2052
    %2788 = vmatprep.subr.bf16.mxu0 %v2061
    %2789 = vmatpush1.bf16.msra.mxu0 %v2060
    %2790 = vmatprep.subr.bf16.mxu0 %v2069
    %2791 = vmatpush1.bf16.msra.mxu0 %v2068
    %2792 = vmatprep.subr.bf16.mxu0 %v2077
    %2793 = vmatpush1.bf16.msra.mxu0 %v2076
    %2794 = vmatprep.subr.bf16.mxu0 %v2085
    %2795 = vmatpush1.bf16.msra.mxu0 %v2084
    %2796 = vmatprep.subr.bf16.mxu0 %v2093
    %2797 = vmatpush1.bf16.msra.mxu0 %v2092
    %2798 = vmatprep.subr.bf16.mxu0 %v2101
    %2799 = vmatpush1.bf16.msra.mxu0 %v2100
    %2800 = vmatprep.subr.bf16.mxu0 %v2109
    %2801 = vmatpush1.bf16.msra.mxu0 %v2108
    %2802 = vmatprep.subr.bf16.mxu0 %v2117
    %2803 = vmatpush1.bf16.msra.mxu0 %v2116
    %2804 = vmatprep.mubr.bf16.mxu0 %v126
    %2805 = vmatmul.mubr.bf16.gmra.mrb[0].mxu0 %v125
    %v2806 = vpop.f32.mrb[0].mxu0
    %v2807 = vadd.f32 %v2766, %v2806
    %v2808 = vpop.f32.mrb[0].mxu0
    %v2809 = vadd.f32 %v2768, %v2808
    %v2810 = vpop.f32.mrb[0].mxu0
    %v2811 = vpop.f32.mrb[0].mxu0
    %2812 = vdwg.mxu0
    %2813 = vmatprep.subr.bf16.mxu0 %v2125
    %2814 = vmatpush1.bf16.msra.mxu0 %v2124
    %2815 = vmatprep.subr.bf16.mxu0 0
    %2816 = vmatpush1.bf16.msra.mxu0 0
    %2817 = vmatprep.subr.bf16.mxu0 0
    %2818 = vmatpush1.bf16.msra.mxu0 0
    %2819 = vmatprep.subr.bf16.mxu0 0
    %2820 = vmatpush1.bf16.msra.mxu0 0
    %2821 = vmatprep.subr.bf16.mxu0 0
    %2822 = vmatpush1.bf16.msra.mxu0 0
    %2823 = vmatprep.subr.bf16.mxu0 0
    %2824 = vmatpush1.bf16.msra.mxu0 0
    %2825 = vmatprep.subr.bf16.mxu0 0
    %2826 = vmatpush1.bf16.msra.mxu0 0
    %2827 = vmatprep.subr.bf16.mxu0 0
    %2828 = vmatpush1.bf16.msra.mxu0 0
    %2829 = vmatprep.subr.bf16.mxu0 0
    %2830 = vmatpush1.bf16.msra.mxu0 0
    %2831 = vmatprep.subr.bf16.mxu0 0
    %2832 = vmatpush1.bf16.msra.mxu0 0
    %2833 = vmatprep.subr.bf16.mxu0 0
    %2834 = vmatpush1.bf16.msra.mxu0 0
    %2835 = vmatprep.subr.bf16.mxu0 0
    %2836 = vmatpush1.bf16.msra.mxu0 0
    %2837 = vmatprep.subr.bf16.mxu0 0
    %2838 = vmatpush1.bf16.msra.mxu0 0
    %2839 = vmatprep.subr.bf16.mxu0 0
    %2840 = vmatpush1.bf16.msra.mxu0 0
    %2841 = vmatprep.subr.bf16.mxu0 0
    %2842 = vmatpush1.bf16.msra.mxu0 0
    %2843 = vmatprep.subr.bf16.mxu0 0
    %2844 = vmatpush1.bf16.msra.mxu0 0
    %2845 = vmatprep.mubr.bf16.mxu0 0
    %2846 = vmatmul.mubr.bf16.gmra.mrb[0].mxu0 %v2524
    %v2847 = vpop.f32.mrb[0].mxu0
    %v2848 = vadd.f32 %v2807, %v2847
    %v2849 = vpop.f32.mrb[0].mxu0
    %v2850 = vadd.f32 %v2809, %v2849
    %v2851 = vpop.f32.mrb[0].mxu0
    %v2852 = vpop.f32.mrb[0].mxu0
    %2853 = vdwg.mxu0
    %2854 = vmatprep.subr.bf16.mxu0 %v1743
    %2855 = vmatpush1.bf16.msra.mxu0 %v1742
    %2856 = vmatprep.subr.bf16.mxu0 %v1751
    %2857 = vmatpush1.bf16.msra.mxu0 %v1750
    %2858 = vmatprep.subr.bf16.mxu0 %v1759
    %2859 = vmatpush1.bf16.msra.mxu0 %v1758
    %2860 = vmatprep.subr.bf16.mxu0 %v1767
    %2861 = vmatpush1.bf16.msra.mxu0 %v1766
    %2862 = vmatprep.subr.bf16.mxu0 %v1775
    %2863 = vmatpush1.bf16.msra.mxu0 %v1774
    %2864 = vmatprep.subr.bf16.mxu0 %v1783
    %2865 = vmatpush1.bf16.msra.mxu0 %v1782
    %2866 = vmatprep.subr.bf16.mxu0 %v1791
    %2867 = vmatpush1.bf16.msra.mxu0 %v1790
    %2868 = vmatprep.subr.bf16.mxu0 %v1799
    %2869 = vmatpush1.bf16.msra.mxu0 %v1798
    %2870 = vmatprep.subr.bf16.mxu0 %v1807
    %2871 = vmatpush1.bf16.msra.mxu0 %v1806
    %2872 = vmatprep.subr.bf16.mxu0 %v1815
    %2873 = vmatpush1.bf16.msra.mxu0 %v1814
    %2874 = vmatprep.subr.bf16.mxu0 %v1823
    %2875 = vmatpush1.bf16.msra.mxu0 %v1822
    %2876 = vmatprep.subr.bf16.mxu0 %v1831
    %2877 = vmatpush1.bf16.msra.mxu0 %v1830
    %2878 = vmatprep.subr.bf16.mxu0 %v1839
    %2879 = vmatpush1.bf16.msra.mxu0 %v1838
    %2880 = vmatprep.subr.bf16.mxu0 %v1847
    %2881 = vmatpush1.bf16.msra.mxu0 %v1846
    %2882 = vmatprep.subr.bf16.mxu0 %v1855
    %2883 = vmatpush1.bf16.msra.mxu0 %v1854
    %2884 = vmatprep.subr.bf16.mxu0 %v1863
    %2885 = vmatpush1.bf16.msra.mxu0 %v1862
    %2886 = vmatprep.mubr.bf16.mxu0 %v122
    %2887 = vmatmul.mubr.bf16.gmra.mrb[0].mxu0 %v121
    %v2888 = vpop.f32.mrb[0].mxu0
    %v2889 = vadd.f32 %v541, %v2888
    %v2890 = vpop.f32.mrb[0].mxu0
    %v2891 = vadd.f32 %v545, %v2890
    %v2892 = vpop.f32.mrb[0].mxu0
    %v2893 = vpop.f32.mrb[0].mxu0
    %2894 = vdwg.mxu0
    %2895 = vmatprep.subr.bf16.mxu0 %v1871
    %2896 = vmatpush1.bf16.msra.mxu0 %v1870
    %2897 = vmatprep.subr.bf16.mxu0 %v1879
    %2898 = vmatpush1.bf16.msra.mxu0 %v1878
    %2899 = vmatprep.subr.bf16.mxu0 %v1887
    %2900 = vmatpush1.bf16.msra.mxu0 %v1886
    %2901 = vmatprep.subr.bf16.mxu0 %v1895
    %2902 = vmatpush1.bf16.msra.mxu0 %v1894
    %2903 = vmatprep.subr.bf16.mxu0 %v1903
    %2904 = vmatpush1.bf16.msra.mxu0 %v1902
    %2905 = vmatprep.subr.bf16.mxu0 %v1911
    %2906 = vmatpush1.bf16.msra.mxu0 %v1910
    %2907 = vmatprep.subr.bf16.mxu0 %v1919
    %2908 = vmatpush1.bf16.msra.mxu0 %v1918
    %2909 = vmatprep.subr.bf16.mxu0 %v1927
    %2910 = vmatpush1.bf16.msra.mxu0 %v1926
    %2911 = vmatprep.subr.bf16.mxu0 %v1935
    %2912 = vmatpush1.bf16.msra.mxu0 %v1934
    %2913 = vmatprep.subr.bf16.mxu0 %v1943
    %2914 = vmatpush1.bf16.msra.mxu0 %v1942
    %2915 = vmatprep.subr.bf16.mxu0 %v1951
    %2916 = vmatpush1.bf16.msra.mxu0 %v1950
    %2917 = vmatprep.subr.bf16.mxu0 %v1959
    %2918 = vmatpush1.bf16.msra.mxu0 %v1958
    %2919 = vmatprep.subr.bf16.mxu0 %v1967
    %2920 = vmatpush1.bf16.msra.mxu0 %v1966
    %2921 = vmatprep.subr.bf16.mxu0 %v1975
    %2922 = vmatpush1.bf16.msra.mxu0 %v1974
    %2923 = vmatprep.subr.bf16.mxu0 %v1983
    %2924 = vmatpush1.bf16.msra.mxu0 %v1982
    %2925 = vmatprep.subr.bf16.mxu0 %v1991
    %2926 = vmatpush1.bf16.msra.mxu0 %v1990
    %2927 = vmatprep.mubr.bf16.mxu0 %v124
    %2928 = vmatmul.mubr.bf16.gmra.mrb[0].mxu0 %v123
    %v2929 = vpop.f32.mrb[0].mxu0
    %v2930 = vadd.f32 %v2889, %v2929
    %v2931 = vpop.f32.mrb[0].mxu0
    %v2932 = vadd.f32 %v2891, %v2931
    %v2933 = vpop.f32.mrb[0].mxu0
    %v2934 = vpop.f32.mrb[0].mxu0
    %2935 = vdwg.mxu0
    %2936 = vmatprep.subr.bf16.mxu0 %v1999
    %2937 = vmatpush1.bf16.msra.mxu0 %v1998
    %2938 = vmatprep.subr.bf16.mxu0 %v2007
    %2939 = vmatpush1.bf16.msra.mxu0 %v2006
    %2940 = vmatprep.subr.bf16.mxu0 %v2015
    %2941 = vmatpush1.bf16.msra.mxu0 %v2014
    %2942 = vmatprep.subr.bf16.mxu0 %v2023
    %2943 = vmatpush1.bf16.msra.mxu0 %v2022
    %2944 = vmatprep.subr.bf16.mxu0 %v2031
    %2945 = vmatpush1.bf16.msra.mxu0 %v2030
    %2946 = vmatprep.subr.bf16.mxu0 %v2039
    %2947 = vmatpush1.bf16.msra.mxu0 %v2038
    %2948 = vmatprep.subr.bf16.mxu0 %v2047
    %2949 = vmatpush1.bf16.msra.mxu0 %v2046
    %2950 = vmatprep.subr.bf16.mxu0 %v2055
    %2951 = vmatpush1.bf16.msra.mxu0 %v2054
    %2952 = vmatprep.subr.bf16.mxu0 %v2063
    %2953 = vmatpush1.bf16.msra.mxu0 %v2062
    %2954 = vmatprep.subr.bf16.mxu0 %v2071
    %2955 = vmatpush1.bf16.msra.mxu0 %v2070
    %2956 = vmatprep.subr.bf16.mxu0 %v2079
    %2957 = vmatpush1.bf16.msra.mxu0 %v2078
    %2958 = vmatprep.subr.bf16.mxu0 %v2087
    %2959 = vmatpush1.bf16.msra.mxu0 %v2086
    %2960 = vmatprep.subr.bf16.mxu0 %v2095
    %2961 = vmatpush1.bf16.msra.mxu0 %v2094
    %2962 = vmatprep.subr.bf16.mxu0 %v2103
    %2963 = vmatpush1.bf16.msra.mxu0 %v2102
    %2964 = vmatprep.subr.bf16.mxu0 %v2111
    %2965 = vmatpush1.bf16.msra.mxu0 %v2110
    %2966 = vmatprep.subr.bf16.mxu0 %v2119
    %2967 = vmatpush1.bf16.msra.mxu0 %v2118
    %2968 = vmatprep.mubr.bf16.mxu0 %v126
    %2969 = vmatmul.mubr.bf16.gmra.mrb[0].mxu0 %v125
    %v2970 = vpop.f32.mrb[0].mxu0
    %v2971 = vadd.f32 %v2930, %v2970
    %v2972 = vpop.f32.mrb[0].mxu0
    %v2973 = vadd.f32 %v2932, %v2972
    %v2974 = vpop.f32.mrb[0].mxu0
    %v2975 = vpop.f32.mrb[0].mxu0
    %2976 = vdwg.mxu0
    %2977 = vmatprep.subr.bf16.mxu0 %v2127
    %2978 = vmatpush1.bf16.msra.mxu0 %v2126
    %2979 = vmatprep.subr.bf16.mxu0 0
    %2980 = vmatpush1.bf16.msra.mxu0 0
    %2981 = vmatprep.subr.bf16.mxu0 0
    %2982 = vmatpush1.bf16.msra.mxu0 0
    %2983 = vmatprep.subr.bf16.mxu0 0
    %2984 = vmatpush1.bf16.msra.mxu0 0
    %2985 = vmatprep.subr.bf16.mxu0 0
    %2986 = vmatpush1.bf16.msra.mxu0 0
    %2987 = vmatprep.subr.bf16.mxu0 0
    %2988 = vmatpush1.bf16.msra.mxu0 0
    %2989 = vmatprep.subr.bf16.mxu0 0
    %2990 = vmatpush1.bf16.msra.mxu0 0
    %2991 = vmatprep.subr.bf16.mxu0 0
    %2992 = vmatpush1.bf16.msra.mxu0 0
    %2993 = vmatprep.subr.bf16.mxu0 0
    %2994 = vmatpush1.bf16.msra.mxu0 0
    %2995 = vmatprep.subr.bf16.mxu0 0
    %2996 = vmatpush1.bf16.msra.mxu0 0
    %2997 = vmatprep.subr.bf16.mxu0 0
    %2998 = vmatpush1.bf16.msra.mxu0 0
    %2999 = vmatprep.subr.bf16.mxu0 0
    %3000 = vmatpush1.bf16.msra.mxu0 0
    %3001 = vmatprep.subr.bf16.mxu0 0
    %3002 = vmatpush1.bf16.msra.mxu0 0
    %3003 = vmatprep.subr.bf16.mxu0 0
    %3004 = vmatpush1.bf16.msra.mxu0 0
    %3005 = vmatprep.subr.bf16.mxu0 0
    %3006 = vmatpush1.bf16.msra.mxu0 0
    %3007 = vmatprep.subr.bf16.mxu0 0
    %3008 = vmatpush1.bf16.msra.mxu0 0
    %3009 = vmatprep.mubr.bf16.mxu0 0
    %3010 = vmatmul.mubr.bf16.gmra.mrb[0].mxu0 %v2524
    %v3011 = vpop.f32.mrb[0].mxu0
    %v3012 = vadd.f32 %v2971, %v3011
    %v3013 = vpop.f32.mrb[0].mxu0
    %v3014 = vadd.f32 %v2973, %v3013
    %v3015 = vpop.f32.mrb[0].mxu0
    %v3016 = vpop.f32.mrb[0].mxu0
    %3017 = vdwg.mxu0
    %3018 = vmatprep.subr.bf16.mxu0 %v1745
    %3019 = vmatpush1.bf16.msra.mxu0 %v1744
    %3020 = vmatprep.subr.bf16.mxu0 %v1753
    %3021 = vmatpush1.bf16.msra.mxu0 %v1752
    %3022 = vmatprep.subr.bf16.mxu0 %v1761
    %3023 = vmatpush1.bf16.msra.mxu0 %v1760
    %3024 = vmatprep.subr.bf16.mxu0 %v1769
    %3025 = vmatpush1.bf16.msra.mxu0 %v1768
    %3026 = vmatprep.subr.bf16.mxu0 %v1777
    %3027 = vmatpush1.bf16.msra.mxu0 %v1776
    %3028 = vmatprep.subr.bf16.mxu0 %v1785
    %3029 = vmatpush1.bf16.msra.mxu0 %v1784
    %3030 = vmatprep.subr.bf16.mxu0 %v1793
    %3031 = vmatpush1.bf16.msra.mxu0 %v1792
    %3032 = vmatprep.subr.bf16.mxu0 %v1801
    %3033 = vmatpush1.bf16.msra.mxu0 %v1800
    %3034 = vmatprep.subr.bf16.mxu0 %v1809
    %3035 = vmatpush1.bf16.msra.mxu0 %v1808
    %3036 = vmatprep.subr.bf16.mxu0 %v1817
    %3037 = vmatpush1.bf16.msra.mxu0 %v1816
    %3038 = vmatprep.subr.bf16.mxu0 %v1825
    %3039 = vmatpush1.bf16.msra.mxu0 %v1824
    %3040 = vmatprep.subr.bf16.mxu0 %v1833
    %3041 = vmatpush1.bf16.msra.mxu0 %v1832
    %3042 = vmatprep.subr.bf16.mxu0 %v1841
    %3043 = vmatpush1.bf16.msra.mxu0 %v1840
    %3044 = vmatprep.subr.bf16.mxu0 %v1849
    %3045 = vmatpush1.bf16.msra.mxu0 %v1848
    %3046 = vmatprep.subr.bf16.mxu0 %v1857
    %3047 = vmatpush1.bf16.msra.mxu0 %v1856
    %3048 = vmatprep.subr.bf16.mxu0 %v1865
    %3049 = vmatpush1.bf16.msra.mxu0 %v1864
    %3050 = vmatprep.mubr.bf16.mxu0 %v122
    %3051 = vmatmul.mubr.bf16.gmra.mrb[0].mxu0 %v121
    %v3052 = vpop.f32.mrb[0].mxu0
    %v3053 = vadd.f32 %v549, %v3052
    %v3054 = vpop.f32.mrb[0].mxu0
    %v3055 = vadd.f32 %v553, %v3054
    %v3056 = vpop.f32.mrb[0].mxu0
    %v3057 = vpop.f32.mrb[0].mxu0
    %3058 = vdwg.mxu0
    %3059 = vmatprep.subr.bf16.mxu0 %v1873
    %3060 = vmatpush1.bf16.msra.mxu0 %v1872
    %3061 = vmatprep.subr.bf16.mxu0 %v1881
    %3062 = vmatpush1.bf16.msra.mxu0 %v1880
    %3063 = vmatprep.subr.bf16.mxu0 %v1889
    %3064 = vmatpush1.bf16.msra.mxu0 %v1888
    %3065 = vmatprep.subr.bf16.mxu0 %v1897
    %3066 = vmatpush1.bf16.msra.mxu0 %v1896
    %3067 = vmatprep.subr.bf16.mxu0 %v1905
    %3068 = vmatpush1.bf16.msra.mxu0 %v1904
    %3069 = vmatprep.subr.bf16.mxu0 %v1913
    %3070 = vmatpush1.bf16.msra.mxu0 %v1912
    %3071 = vmatprep.subr.bf16.mxu0 %v1921
    %3072 = vmatpush1.bf16.msra.mxu0 %v1920
    %3073 = vmatprep.subr.bf16.mxu0 %v1929
    %3074 = vmatpush1.bf16.msra.mxu0 %v1928
    %3075 = vmatprep.subr.bf16.mxu0 %v1937
    %3076 = vmatpush1.bf16.msra.mxu0 %v1936
    %3077 = vmatprep.subr.bf16.mxu0 %v1945
    %3078 = vmatpush1.bf16.msra.mxu0 %v1944
    %3079 = vmatprep.subr.bf16.mxu0 %v1953
    %3080 = vmatpush1.bf16.msra.mxu0 %v1952
    %3081 = vmatprep.subr.bf16.mxu0 %v1961
    %3082 = vmatpush1.bf16.msra.mxu0 %v1960
    %3083 = vmatprep.subr.bf16.mxu0 %v1969
    %3084 = vmatpush1.bf16.msra.mxu0 %v1968
    %3085 = vmatprep.subr.bf16.mxu0 %v1977
    %3086 = vmatpush1.bf16.msra.mxu0 %v1976
    %3087 = vmatprep.subr.bf16.mxu0 %v1985
    %3088 = vmatpush1.bf16.msra.mxu0 %v1984
    %3089 = vmatprep.subr.bf16.mxu0 %v1993
    %3090 = vmatpush1.bf16.msra.mxu0 %v1992
    %3091 = vmatprep.mubr.bf16.mxu0 %v124
    %3092 = vmatmul.mubr.bf16.gmra.mrb[0].mxu0 %v123
    %v3093 = vpop.f32.mrb[0].mxu0
    %v3094 = vadd.f32 %v3053, %v3093
    %v3095 = vpop.f32.mrb[0].mxu0
    %v3096 = vadd.f32 %v3055, %v3095
    %v3097 = vpop.f32.mrb[0].mxu0
    %v3098 = vpop.f32.mrb[0].mxu0
    %3099 = vdwg.mxu0
    %3100 = vmatprep.subr.bf16.mxu0 %v2001
    %3101 = vmatpush1.bf16.msra.mxu0 %v2000
    %3102 = vmatprep.subr.bf16.mxu0 %v2009
    %3103 = vmatpush1.bf16.msra.mxu0 %v2008
    %3104 = vmatprep.subr.bf16.mxu0 %v2017
    %3105 = vmatpush1.bf16.msra.mxu0 %v2016
    %3106 = vmatprep.subr.bf16.mxu0 %v2025
    %3107 = vmatpush1.bf16.msra.mxu0 %v2024
    %3108 = vmatprep.subr.bf16.mxu0 %v2033
    %3109 = vmatpush1.bf16.msra.mxu0 %v2032
    %3110 = vmatprep.subr.bf16.mxu0 %v2041
    %3111 = vmatpush1.bf16.msra.mxu0 %v2040
    %3112 = vmatprep.subr.bf16.mxu0 %v2049
    %3113 = vmatpush1.bf16.msra.mxu0 %v2048
    %3114 = vmatprep.subr.bf16.mxu0 %v2057
    %3115 = vmatpush1.bf16.msra.mxu0 %v2056
    %3116 = vmatprep.subr.bf16.mxu0 %v2065
    %3117 = vmatpush1.bf16.msra.mxu0 %v2064
    %3118 = vmatprep.subr.bf16.mxu0 %v2073
    %3119 = vmatpush1.bf16.msra.mxu0 %v2072
    %3120 = vmatprep.subr.bf16.mxu0 %v2081
    %3121 = vmatpush1.bf16.msra.mxu0 %v2080
    %3122 = vmatprep.subr.bf16.mxu0 %v2089
    %3123 = vmatpush1.bf16.msra.mxu0 %v2088
    %3124 = vmatprep.subr.bf16.mxu0 %v2097
    %3125 = vmatpush1.bf16.msra.mxu0 %v2096
    %3126 = vmatprep.subr.bf16.mxu0 %v2105
    %3127 = vmatpush1.bf16.msra.mxu0 %v2104
    %3128 = vmatprep.subr.bf16.mxu0 %v2113
    %3129 = vmatpush1.bf16.msra.mxu0 %v2112
    %3130 = vmatprep.subr.bf16.mxu0 %v2121
    %3131 = vmatpush1.bf16.msra.mxu0 %v2120
    %3132 = vmatprep.mubr.bf16.mxu0 %v126
    %3133 = vmatmul.mubr.bf16.gmra.mrb[0].mxu0 %v125
    %v3134 = vpop.f32.mrb[0].mxu0
    %v3135 = vadd.f32 %v3094, %v3134
    %v3136 = vpop.f32.mrb[0].mxu0
    %v3137 = vadd.f32 %v3096, %v3136
    %v3138 = vpop.f32.mrb[0].mxu0
    %v3139 = vpop.f32.mrb[0].mxu0
    %3140 = vdwg.mxu0
    %3141 = vmatprep.subr.bf16.mxu0 %v2129
    %3142 = vmatpush1.bf16.msra.mxu0 %v2128
    %3143 = vmatprep.subr.bf16.mxu0 0
    %3144 = vmatpush1.bf16.msra.mxu0 0
    %3145 = vmatprep.subr.bf16.mxu0 0
    %3146 = vmatpush1.bf16.msra.mxu0 0
    %3147 = vmatprep.subr.bf16.mxu0 0
    %3148 = vmatpush1.bf16.msra.mxu0 0
    %3149 = vmatprep.subr.bf16.mxu0 0
    %3150 = vmatpush1.bf16.msra.mxu0 0
    %3151 = vmatprep.subr.bf16.mxu0 0
    %3152 = vmatpush1.bf16.msra.mxu0 0
    %3153 = vmatprep.subr.bf16.mxu0 0
    %3154 = vmatpush1.bf16.msra.mxu0 0
    %3155 = vmatprep.subr.bf16.mxu0 0
    %3156 = vmatpush1.bf16.msra.mxu0 0
    %3157 = vmatprep.subr.bf16.mxu0 0
    %3158 = vmatpush1.bf16.msra.mxu0 0
    %3159 = vmatprep.subr.bf16.mxu0 0
    %3160 = vmatpush1.bf16.msra.mxu0 0
    %3161 = vmatprep.subr.bf16.mxu0 0
    %3162 = vmatpush1.bf16.msra.mxu0 0
    %3163 = vmatprep.subr.bf16.mxu0 0
    %3164 = vmatpush1.bf16.msra.mxu0 0
    %3165 = vmatprep.subr.bf16.mxu0 0
    %3166 = vmatpush1.bf16.msra.mxu0 0
    %3167 = vmatprep.subr.bf16.mxu0 0
    %3168 = vmatpush1.bf16.msra.mxu0 0
    %3169 = vmatprep.subr.bf16.mxu0 0
    %3170 = vmatpush1.bf16.msra.mxu0 0
    %3171 = vmatprep.subr.bf16.mxu0 0
    %3172 = vmatpush1.bf16.msra.mxu0 0
    %3173 = vmatprep.mubr.bf16.mxu0 0
    %3174 = vmatmul.mubr.bf16.gmra.mrb[0].mxu0 %v2524
    %v3175 = vpop.f32.mrb[0].mxu0
    %v3176 = vadd.f32 %v3135, %v3175
    %v3177 = vpop.f32.mrb[0].mxu0
    %v3178 = vadd.f32 %v3137, %v3177
    %v3179 = vpop.f32.mrb[0].mxu0
    %v3180 = vpop.f32.mrb[0].mxu0
    %3181 = vdwg.mxu0
    %v3182 = vmax.f32 %v2684, 0.0
    %v3183 = vmax.f32 %v2686, 0.0
    %v3184 = vmax.f32 %v2848, 0.0
    %v3185 = vmax.f32 %v2850, 0.0
    %v3186 = vmax.f32 %v3012, 0.0
    %v3187 = vmax.f32 %v3014, 0.0
    %v3188 = vmax.f32 %v3176, 0.0
    %v3189 = vmax.f32 %v3178, 0.0
    %v3190 = vpack.c.bf16 %v3182, %v3182
    %v3191 = vpack.c.bf16 %v3183, %v3183
    %v3192 = vpack.c.bf16 %v3184, %v3184
    %v3193 = vpack.c.bf16 %v3185, %v3185
    %v3194 = vpack.c.bf16 %v3186, %v3186
    %v3195 = vpack.c.bf16 %v3187, %v3187
    %v3196 = vpack.c.bf16 %v3188, %v3188
    %v3197 = vpack.c.bf16 %v3189, %v3189
    %v3198 = vld [vmem:[#allocation7] sm:$0xf]
    %v3199 = vld [vmem:[#allocation7 + $0x4] sm:$0xf]
    %v3200 = vld [vmem:[#allocation7 + $0x8] sm:$0xf]
    %v3201 = vld [vmem:[#allocation7 + $0xc] sm:$0xf]
    %v3202 = vld [vmem:[#allocation7 + $0x10] sm:$0xf]
    %v3203 = vld [vmem:[#allocation7 + $0x14] sm:$0xf]
    %v3204 = vld [vmem:[#allocation7 + $0x18] sm:$0xf]
    %v3205 = vld [vmem:[#allocation7 + $0x1c] sm:$0xf]
    %v3206 = vld [vmem:[#allocation7 + $0x20] sm:$0xf]
    %v3207 = vld [vmem:[#allocation7 + $0x24] sm:$0xf]
    %v3208 = vld [vmem:[#allocation7 + $0x28] sm:$0xf]
    %v3209 = vld [vmem:[#allocation7 + $0x2c] sm:$0xf]
    %v3210 = vld [vmem:[#allocation7 + $0x30] sm:$0xf]
    %v3211 = vld [vmem:[#allocation7 + $0x34] sm:$0xf]
    %v3212 = vld [vmem:[#allocation7 + $0x38] sm:$0xf]
    %v3213 = vld [vmem:[#allocation7 + $0x3c] sm:$0xf]
    %v3214 = vld [vmem:[#allocation7 + $0x40] sm:$0xf]
    %v3215 = vld [vmem:[#allocation7 + $0x44] sm:$0xf]
    %v3216 = vld [vmem:[#allocation7 + $0x48] sm:$0xf]
    %v3217 = vld [vmem:[#allocation7 + $0x4c] sm:$0xf]
    %v3218 = vld [vmem:[#allocation7 + $0x50] sm:$0xf]
    %v3219 = vld [vmem:[#allocation7 + $0x54] sm:$0xf]
    %v3220 = vld [vmem:[#allocation7 + $0x58] sm:$0xf]
    %v3221 = vld [vmem:[#allocation7 + $0x5c] sm:$0xf]
    %v3222 = vld [vmem:[#allocation7 + $0x60] sm:$0xf]
    %v3223 = vld [vmem:[#allocation7 + $0x64] sm:$0xf]
    %v3224 = vld [vmem:[#allocation7 + $0x68] sm:$0xf]
    %v3225 = vld [vmem:[#allocation7 + $0x6c] sm:$0xf]
    %v3226 = vld [vmem:[#allocation7 + $0x70] sm:$0xf]
    %v3227 = vld [vmem:[#allocation7 + $0x74] sm:$0xf]
    %v3228 = vld [vmem:[#allocation7 + $0x78] sm:$0xf]
    %v3229 = vld [vmem:[#allocation7 + $0x7c] sm:$0xf]
    %v3230 = vld [vmem:[#allocation7 + $0x80] sm:$0xf]
    %v3231 = vld [vmem:[#allocation7 + $0x84] sm:$0xf]
    %v3232 = vld [vmem:[#allocation7 + $0x88] sm:$0xf]
    %v3233 = vld [vmem:[#allocation7 + $0x8c] sm:$0xf]
    %v3234 = vld [vmem:[#allocation7 + $0x90] sm:$0xf]
    %v3235 = vld [vmem:[#allocation7 + $0x94] sm:$0xf]
    %v3236 = vld [vmem:[#allocation7 + $0x98] sm:$0xf]
    %v3237 = vld [vmem:[#allocation7 + $0x9c] sm:$0xf]
    %v3238 = vld [vmem:[#allocation7 + $0xa0] sm:$0xf]
    %v3239 = vld [vmem:[#allocation7 + $0xa4] sm:$0xf]
    %v3240 = vld [vmem:[#allocation7 + $0xa8] sm:$0xf]
    %v3241 = vld [vmem:[#allocation7 + $0xac] sm:$0xf]
    %v3242 = vld [vmem:[#allocation7 + $0xb0] sm:$0xf]
    %v3243 = vld [vmem:[#allocation7 + $0xb4] sm:$0xf]
    %v3244 = vld [vmem:[#allocation7 + $0xb8] sm:$0xf]
    %v3245 = vld [vmem:[#allocation7 + $0xbc] sm:$0xf]
    %v3246 = vld [vmem:[#allocation7 + $0xc0] sm:$0xf]
    %v3247 = vld [vmem:[#allocation7 + $0xc4] sm:$0xf]
    %v3248 = vld [vmem:[#allocation7 + $0xc8] sm:$0xf]
    %v3249 = vld [vmem:[#allocation7 + $0xcc] sm:$0xf]
    %v3250 = vld [vmem:[#allocation7 + $0xd0] sm:$0xf]
    %v3251 = vld [vmem:[#allocation7 + $0xd4] sm:$0xf]
    %v3252 = vld [vmem:[#allocation7 + $0xd8] sm:$0xf]
    %v3253 = vld [vmem:[#allocation7 + $0xdc] sm:$0xf]
    %v3254 = vld [vmem:[#allocation7 + $0xe0] sm:$0xf]
    %v3255 = vld [vmem:[#allocation7 + $0xe4] sm:$0xf]
    %v3256 = vld [vmem:[#allocation7 + $0xe8] sm:$0xf]
    %v3257 = vld [vmem:[#allocation7 + $0xec] sm:$0xf]
    %v3258 = vld [vmem:[#allocation7 + $0xf0] sm:$0xf]
    %v3259 = vld [vmem:[#allocation7 + $0xf4] sm:$0xf]
    %v3260 = vld [vmem:[#allocation7 + $0xf8] sm:$0xf]
    %v3261 = vld [vmem:[#allocation7 + $0xfc] sm:$0xf]
    %v3262 = vld [vmem:[#allocation7 + $0x100] sm:$0xf]
    %v3263 = vld [vmem:[#allocation7 + $0x104] sm:$0xf]
    %v3264 = vld [vmem:[#allocation7 + $0x108] sm:$0xf]
    %v3265 = vld [vmem:[#allocation7 + $0x10c] sm:$0xf]
    %v3266 = vld [vmem:[#allocation7 + $0x110] sm:$0xf]
    %v3267 = vld [vmem:[#allocation7 + $0x114] sm:$0xf]
    %v3268 = vld [vmem:[#allocation7 + $0x118] sm:$0xf]
    %v3269 = vld [vmem:[#allocation7 + $0x11c] sm:$0xf]
    %v3270 = vld [vmem:[#allocation7 + $0x120] sm:$0xf]
    %v3271 = vld [vmem:[#allocation7 + $0x124] sm:$0xf]
    %v3272 = vld [vmem:[#allocation7 + $0x128] sm:$0xf]
    %v3273 = vld [vmem:[#allocation7 + $0x12c] sm:$0xf]
    %v3274 = vld [vmem:[#allocation7 + $0x130] sm:$0xf]
    %v3275 = vld [vmem:[#allocation7 + $0x134] sm:$0xf]
    %v3276 = vld [vmem:[#allocation7 + $0x138] sm:$0xf]
    %v3277 = vld [vmem:[#allocation7 + $0x13c] sm:$0xf]
    %v3278 = vld [vmem:[#allocation7 + $0x140] sm:$0xf]
    %v3279 = vld [vmem:[#allocation7 + $0x144] sm:$0xf]
    %v3280 = vld [vmem:[#allocation7 + $0x148] sm:$0xf]
    %v3281 = vld [vmem:[#allocation7 + $0x14c] sm:$0xf]
    %v3282 = vld [vmem:[#allocation7 + $0x150] sm:$0xf]
    %v3283 = vld [vmem:[#allocation7 + $0x154] sm:$0xf]
    %v3284 = vld [vmem:[#allocation7 + $0x158] sm:$0xf]
    %v3285 = vld [vmem:[#allocation7 + $0x15c] sm:$0xf]
    %v3286 = vld [vmem:[#allocation7 + $0x160] sm:$0xf]
    %v3287 = vld [vmem:[#allocation7 + $0x164] sm:$0xf]
    %v3288 = vld [vmem:[#allocation7 + $0x168] sm:$0xf]
    %v3289 = vld [vmem:[#allocation7 + $0x16c] sm:$0xf]
    %v3290 = vld [vmem:[#allocation7 + $0x170] sm:$0xf]
    %v3291 = vld [vmem:[#allocation7 + $0x174] sm:$0xf]
    %v3292 = vld [vmem:[#allocation7 + $0x178] sm:$0xf]
    %v3293 = vld [vmem:[#allocation7 + $0x17c] sm:$0xf]
    %v3294 = vld [vmem:[#allocation7 + $0x180] sm:$0xf]
    %v3295 = vld [vmem:[#allocation7 + $0x184] sm:$0xf]
    %v3296 = vld [vmem:[#allocation7 + $0x188] sm:$0xf]
    %v3297 = vld [vmem:[#allocation7 + $0x18c] sm:$0xf]
    %v3298 = vld [vmem:[#allocation7 + $0x190] sm:$0xf]
    %v3299 = vld [vmem:[#allocation7 + $0x194] sm:$0xf]
    %v3300 = vld [vmem:[#allocation7 + $0x198] sm:$0xf]
    %v3301 = vld [vmem:[#allocation7 + $0x19c] sm:$0xf]
    %v3302 = vld [vmem:[#allocation7 + $0x1a0] sm:$0xf]
    %v3303 = vld [vmem:[#allocation7 + $0x1a4] sm:$0xf]
    %v3304 = vld [vmem:[#allocation7 + $0x1a8] sm:$0xf]
    %v3305 = vld [vmem:[#allocation7 + $0x1ac] sm:$0xf]
    %v3306 = vld [vmem:[#allocation7 + $0x1b0] sm:$0xf]
    %v3307 = vld [vmem:[#allocation7 + $0x1b4] sm:$0xf]
    %v3308 = vld [vmem:[#allocation7 + $0x1b8] sm:$0xf]
    %v3309 = vld [vmem:[#allocation7 + $0x1bc] sm:$0xf]
    %v3310 = vld [vmem:[#allocation7 + $0x1c0] sm:$0xf]
    %v3311 = vld [vmem:[#allocation7 + $0x1c4] sm:$0xf]
    %v3312 = vld [vmem:[#allocation7 + $0x1c8] sm:$0xf]
    %v3313 = vld [vmem:[#allocation7 + $0x1cc] sm:$0xf]
    %v3314 = vld [vmem:[#allocation7 + $0x1d0] sm:$0xf]
    %v3315 = vld [vmem:[#allocation7 + $0x1d4] sm:$0xf]
    %v3316 = vld [vmem:[#allocation7 + $0x1d8] sm:$0xf]
    %v3317 = vld [vmem:[#allocation7 + $0x1dc] sm:$0xf]
    %v3318 = vld [vmem:[#allocation7 + $0x1e0] sm:$0xf]
    %v3319 = vld [vmem:[#allocation7 + $0x1e4] sm:$0xf]
    %v3320 = vld [vmem:[#allocation7 + $0x1e8] sm:$0xf]
    %v3321 = vld [vmem:[#allocation7 + $0x1ec] sm:$0xf]
    %v3322 = vld [vmem:[#allocation7 + $0x1f0] sm:$0xf]
    %v3323 = vld [vmem:[#allocation7 + $0x1f4] sm:$0xf]
    %v3324 = vld [vmem:[#allocation7 + $0x1f8] sm:$0xf]
    %v3325 = vld [vmem:[#allocation7 + $0x1fc] sm:$0xf]
    %v3326 = vld [vmem:[#allocation9] sm:$0x1]
    %v3328 = vlaneseq
    %v3329 = vshrl.u32 %v3328, 7
    %v3330 = vsub.s32 0, %v3329
    %v3331 = vrot.slane %v3326, %v3330
    %v3461 = vunpack.c.l.b16 %v3198
    %v3462 = vunpack.c.l.b16 %v3199
    %v3463 = vunpack.c.l.b16 %v3200
    %v3464 = vunpack.c.l.b16 %v3201
    %v3465 = vunpack.c.l.b16 %v3202
    %v3466 = vunpack.c.l.b16 %v3203
    %v3467 = vunpack.c.l.b16 %v3204
    %v3468 = vunpack.c.l.b16 %v3205
    %v3469 = vunpack.c.l.b16 %v3206
    %v3470 = vunpack.c.l.b16 %v3207
    %v3471 = vunpack.c.l.b16 %v3208
    %v3472 = vunpack.c.l.b16 %v3209
    %v3473 = vunpack.c.l.b16 %v3210
    %v3474 = vunpack.c.l.b16 %v3211
    %v3475 = vunpack.c.l.b16 %v3212
    %v3476 = vunpack.c.l.b16 %v3213
    %v3477 = vunpack.c.l.b16 %v3214
    %v3478 = vunpack.c.l.b16 %v3215
    %v3479 = vunpack.c.l.b16 %v3216
    %v3480 = vunpack.c.l.b16 %v3217
    %v3481 = vunpack.c.l.b16 %v3218
    %v3482 = vunpack.c.l.b16 %v3219
    %v3483 = vunpack.c.l.b16 %v3220
    %v3484 = vunpack.c.l.b16 %v3221
    %v3485 = vunpack.c.l.b16 %v3222
    %v3486 = vunpack.c.l.b16 %v3223
    %v3487 = vunpack.c.l.b16 %v3224
    %v3488 = vunpack.c.l.b16 %v3225
    %v3489 = vunpack.c.l.b16 %v3226
    %v3490 = vunpack.c.l.b16 %v3227
    %v3491 = vunpack.c.l.b16 %v3228
    %v3492 = vunpack.c.l.b16 %v3229
    %v3493 = vunpack.c.l.b16 %v3230
    %v3494 = vunpack.c.l.b16 %v3231
    %v3495 = vunpack.c.l.b16 %v3232
    %v3496 = vunpack.c.l.b16 %v3233
    %v3497 = vunpack.c.l.b16 %v3234
    %v3498 = vunpack.c.l.b16 %v3235
    %v3499 = vunpack.c.l.b16 %v3236
    %v3500 = vunpack.c.l.b16 %v3237
    %v3501 = vunpack.c.l.b16 %v3238
    %v3502 = vunpack.c.l.b16 %v3239
    %v3503 = vunpack.c.l.b16 %v3240
    %v3504 = vunpack.c.l.b16 %v3241
    %v3505 = vunpack.c.l.b16 %v3242
    %v3506 = vunpack.c.l.b16 %v3243
    %v3507 = vunpack.c.l.b16 %v3244
    %v3508 = vunpack.c.l.b16 %v3245
    %v3509 = vunpack.c.l.b16 %v3246
    %v3510 = vunpack.c.l.b16 %v3247
    %v3511 = vunpack.c.l.b16 %v3248
    %v3512 = vunpack.c.l.b16 %v3249
    %v3513 = vunpack.c.l.b16 %v3250
    %v3514 = vunpack.c.l.b16 %v3251
    %v3515 = vunpack.c.l.b16 %v3252
    %v3516 = vunpack.c.l.b16 %v3253
    %v3517 = vunpack.c.l.b16 %v3254
    %v3518 = vunpack.c.l.b16 %v3255
    %v3519 = vunpack.c.l.b16 %v3256
    %v3520 = vunpack.c.l.b16 %v3257
    %v3521 = vunpack.c.l.b16 %v3258
    %v3522 = vunpack.c.l.b16 %v3259
    %v3523 = vunpack.c.l.b16 %v3260
    %v3524 = vunpack.c.l.b16 %v3261
    %v3525 = vunpack.c.l.b16 %v3262
    %v3526 = vunpack.c.l.b16 %v3263
    %v3527 = vunpack.c.l.b16 %v3264
    %v3528 = vunpack.c.l.b16 %v3265
    %v3529 = vunpack.c.l.b16 %v3266
    %v3530 = vunpack.c.l.b16 %v3267
    %v3531 = vunpack.c.l.b16 %v3268
    %v3532 = vunpack.c.l.b16 %v3269
    %v3533 = vunpack.c.l.b16 %v3270
    %v3534 = vunpack.c.l.b16 %v3271
    %v3535 = vunpack.c.l.b16 %v3272
    %v3536 = vunpack.c.l.b16 %v3273
    %v3537 = vunpack.c.l.b16 %v3274
    %v3538 = vunpack.c.l.b16 %v3275
    %v3539 = vunpack.c.l.b16 %v3276
    %v3540 = vunpack.c.l.b16 %v3277
    %v3541 = vunpack.c.l.b16 %v3278
    %v3542 = vunpack.c.l.b16 %v3279
    %v3543 = vunpack.c.l.b16 %v3280
    %v3544 = vunpack.c.l.b16 %v3281
    %v3545 = vunpack.c.l.b16 %v3282
    %v3546 = vunpack.c.l.b16 %v3283
    %v3547 = vunpack.c.l.b16 %v3284
    %v3548 = vunpack.c.l.b16 %v3285
    %v3549 = vunpack.c.l.b16 %v3286
    %v3550 = vunpack.c.l.b16 %v3287
    %v3551 = vunpack.c.l.b16 %v3288
    %v3552 = vunpack.c.l.b16 %v3289
    %v3553 = vunpack.c.l.b16 %v3290
    %v3554 = vunpack.c.l.b16 %v3291
    %v3555 = vunpack.c.l.b16 %v3292
    %v3556 = vunpack.c.l.b16 %v3293
    %v3557 = vunpack.c.l.b16 %v3294
    %v3558 = vunpack.c.l.b16 %v3295
    %v3559 = vunpack.c.l.b16 %v3296
    %v3560 = vunpack.c.l.b16 %v3297
    %v3561 = vunpack.c.l.b16 %v3298
    %v3562 = vunpack.c.l.b16 %v3299
    %v3563 = vunpack.c.l.b16 %v3300
    %v3564 = vunpack.c.l.b16 %v3301
    %v3565 = vunpack.c.l.b16 %v3302
    %v3566 = vunpack.c.l.b16 %v3303
    %v3567 = vunpack.c.l.b16 %v3304
    %v3568 = vunpack.c.l.b16 %v3305
    %v3569 = vunpack.c.l.b16 %v3306
    %v3570 = vunpack.c.l.b16 %v3307
    %v3571 = vunpack.c.l.b16 %v3308
    %v3572 = vunpack.c.l.b16 %v3309
    %v3573 = vunpack.c.l.b16 %v3310
    %v3574 = vunpack.c.l.b16 %v3311
    %v3575 = vunpack.c.l.b16 %v3312
    %v3576 = vunpack.c.l.b16 %v3313
    %v3577 = vunpack.c.l.b16 %v3314
    %v3578 = vunpack.c.l.b16 %v3315
    %v3579 = vunpack.c.l.b16 %v3316
    %v3580 = vunpack.c.l.b16 %v3317
    %v3581 = vunpack.c.l.b16 %v3318
    %v3582 = vunpack.c.l.b16 %v3319
    %v3583 = vunpack.c.l.b16 %v3320
    %v3584 = vunpack.c.l.b16 %v3321
    %v3585 = vunpack.c.l.b16 %v3322
    %v3586 = vunpack.c.l.b16 %v3323
    %v3587 = vunpack.c.l.b16 %v3324
    %v3588 = vunpack.c.l.b16 %v3325
    %v3589 = vpack.c.b16 %v3462, %v3461
    %v3590 = vpack.c.b16 %v3464, %v3463
    %v3591 = vpack.c.b16 %v3466, %v3465
    %v3592 = vpack.c.b16 %v3468, %v3467
    %v3593 = vpack.c.b16 %v3470, %v3469
    %v3594 = vpack.c.b16 %v3472, %v3471
    %v3595 = vpack.c.b16 %v3474, %v3473
    %v3596 = vpack.c.b16 %v3476, %v3475
    %v3597 = vpack.c.b16 %v3478, %v3477
    %v3598 = vpack.c.b16 %v3480, %v3479
    %v3599 = vpack.c.b16 %v3482, %v3481
    %v3600 = vpack.c.b16 %v3484, %v3483
    %v3601 = vpack.c.b16 %v3486, %v3485
    %v3602 = vpack.c.b16 %v3488, %v3487
    %v3603 = vpack.c.b16 %v3490, %v3489
    %v3604 = vpack.c.b16 %v3492, %v3491
    %v3605 = vpack.c.b16 %v3494, %v3493
    %v3606 = vpack.c.b16 %v3496, %v3495
    %v3607 = vpack.c.b16 %v3498, %v3497
    %v3608 = vpack.c.b16 %v3500, %v3499
    %v3609 = vpack.c.b16 %v3502, %v3501
    %v3610 = vpack.c.b16 %v3504, %v3503
    %v3611 = vpack.c.b16 %v3506, %v3505
    %v3612 = vpack.c.b16 %v3508, %v3507
    %v3613 = vpack.c.b16 %v3510, %v3509
    %v3614 = vpack.c.b16 %v3512, %v3511
    %v3615 = vpack.c.b16 %v3514, %v3513
    %v3616 = vpack.c.b16 %v3516, %v3515
    %v3617 = vpack.c.b16 %v3518, %v3517
    %v3618 = vpack.c.b16 %v3520, %v3519
    %v3619 = vpack.c.b16 %v3522, %v3521
    %v3620 = vpack.c.b16 %v3524, %v3523
    %v3621 = vpack.c.b16 %v3526, %v3525
    %v3622 = vpack.c.b16 %v3528, %v3527
    %v3623 = vpack.c.b16 %v3530, %v3529
    %v3624 = vpack.c.b16 %v3532, %v3531
    %v3625 = vpack.c.b16 %v3534, %v3533
    %v3626 = vpack.c.b16 %v3536, %v3535
    %v3627 = vpack.c.b16 %v3538, %v3537
    %v3628 = vpack.c.b16 %v3540, %v3539
    %v3629 = vpack.c.b16 %v3542, %v3541
    %v3630 = vpack.c.b16 %v3544, %v3543
    %v3631 = vpack.c.b16 %v3546, %v3545
    %v3632 = vpack.c.b16 %v3548, %v3547
    %v3633 = vpack.c.b16 %v3550, %v3549
    %v3634 = vpack.c.b16 %v3552, %v3551
    %v3635 = vpack.c.b16 %v3554, %v3553
    %v3636 = vpack.c.b16 %v3556, %v3555
    %v3637 = vpack.c.b16 %v3558, %v3557
    %v3638 = vpack.c.b16 %v3560, %v3559
    %v3639 = vpack.c.b16 %v3562, %v3561
    %v3640 = vpack.c.b16 %v3564, %v3563
    %v3641 = vpack.c.b16 %v3566, %v3565
    %v3642 = vpack.c.b16 %v3568, %v3567
    %v3643 = vpack.c.b16 %v3570, %v3569
    %v3644 = vpack.c.b16 %v3572, %v3571
    %v3645 = vpack.c.b16 %v3574, %v3573
    %v3646 = vpack.c.b16 %v3576, %v3575
    %v3647 = vpack.c.b16 %v3578, %v3577
    %v3648 = vpack.c.b16 %v3580, %v3579
    %v3649 = vpack.c.b16 %v3582, %v3581
    %v3650 = vpack.c.b16 %v3584, %v3583
    %v3651 = vpack.c.b16 %v3586, %v3585
    %v3652 = vpack.c.b16 %v3588, %v3587
    %3717 = vmatprep.subr.bf16.mxu0 0
    %3718 = vmatpush1.bf16.msra.mxu0 %v3589
    %3719 = vmatprep.subr.bf16.mxu0 0
    %3720 = vmatpush1.bf16.msra.mxu0 %v3590
    %3721 = vmatprep.subr.bf16.mxu0 0
    %3722 = vmatpush1.bf16.msra.mxu0 %v3591
    %3723 = vmatprep.subr.bf16.mxu0 0
    %3724 = vmatpush1.bf16.msra.mxu0 %v3592
    %3725 = vmatprep.subr.bf16.mxu0 0
    %3726 = vmatpush1.bf16.msra.mxu0 %v3593
    %3727 = vmatprep.subr.bf16.mxu0 0
    %3728 = vmatpush1.bf16.msra.mxu0 %v3594
    %3729 = vmatprep.subr.bf16.mxu0 0
    %3730 = vmatpush1.bf16.msra.mxu0 %v3595
    %3731 = vmatprep.subr.bf16.mxu0 0
    %3732 = vmatpush1.bf16.msra.mxu0 %v3596
    %3733 = vmatprep.subr.bf16.mxu0 0
    %3734 = vmatpush1.bf16.msra.mxu0 %v3597
    %3735 = vmatprep.subr.bf16.mxu0 0
    %3736 = vmatpush1.bf16.msra.mxu0 %v3598
    %3737 = vmatprep.subr.bf16.mxu0 0
    %3738 = vmatpush1.bf16.msra.mxu0 %v3599
    %3739 = vmatprep.subr.bf16.mxu0 0
    %3740 = vmatpush1.bf16.msra.mxu0 %v3600
    %3741 = vmatprep.subr.bf16.mxu0 0
    %3742 = vmatpush1.bf16.msra.mxu0 %v3601
    %3743 = vmatprep.subr.bf16.mxu0 0
    %3744 = vmatpush1.bf16.msra.mxu0 %v3602
    %3745 = vmatprep.subr.bf16.mxu0 0
    %3746 = vmatpush1.bf16.msra.mxu0 %v3603
    %3747 = vmatprep.subr.bf16.mxu0 0
    %3748 = vmatpush1.bf16.msra.mxu0 %v3604
    %3749 = vmatprep.mubr.bf16.mxu0 %v3191
    %3750 = vmatmul.mubr.bf16.gmra.mrb[0].mxu0 %v3190
    %v3751 = vpop.f32.mrb[0].mxu0
    %v3752 = vadd.f32 %v3331, %v3751
    %v3753 = vpop.f32.mrb[0].mxu0
    %v3754 = vpop.f32.mrb[0].mxu0
    %v3755 = vpop.f32.mrb[0].mxu0
    %3756 = vdwg.mxu0
    %3757 = vmatprep.subr.bf16.mxu0 0
    %3758 = vmatpush1.bf16.msra.mxu0 %v3605
    %3759 = vmatprep.subr.bf16.mxu0 0
    %3760 = vmatpush1.bf16.msra.mxu0 %v3606
    %3761 = vmatprep.subr.bf16.mxu0 0
    %3762 = vmatpush1.bf16.msra.mxu0 %v3607
    %3763 = vmatprep.subr.bf16.mxu0 0
    %3764 = vmatpush1.bf16.msra.mxu0 %v3608
    %3765 = vmatprep.subr.bf16.mxu0 0
    %3766 = vmatpush1.bf16.msra.mxu0 %v3609
    %3767 = vmatprep.subr.bf16.mxu0 0
    %3768 = vmatpush1.bf16.msra.mxu0 %v3610
    %3769 = vmatprep.subr.bf16.mxu0 0
    %3770 = vmatpush1.bf16.msra.mxu0 %v3611
    %3771 = vmatprep.subr.bf16.mxu0 0
    %3772 = vmatpush1.bf16.msra.mxu0 %v3612
    %3773 = vmatprep.subr.bf16.mxu0 0
    %3774 = vmatpush1.bf16.msra.mxu0 %v3613
    %3775 = vmatprep.subr.bf16.mxu0 0
    %3776 = vmatpush1.bf16.msra.mxu0 %v3614
    %3777 = vmatprep.subr.bf16.mxu0 0
    %3778 = vmatpush1.bf16.msra.mxu0 %v3615
    %3779 = vmatprep.subr.bf16.mxu0 0
    %3780 = vmatpush1.bf16.msra.mxu0 %v3616
    %3781 = vmatprep.subr.bf16.mxu0 0
    %3782 = vmatpush1.bf16.msra.mxu0 %v3617
    %3783 = vmatprep.subr.bf16.mxu0 0
    %3784 = vmatpush1.bf16.msra.mxu0 %v3618
    %3785 = vmatprep.subr.bf16.mxu0 0
    %3786 = vmatpush1.bf16.msra.mxu0 %v3619
    %3787 = vmatprep.subr.bf16.mxu0 0
    %3788 = vmatpush1.bf16.msra.mxu0 %v3620
    %3789 = vmatprep.mubr.bf16.mxu0 %v3193
    %3790 = vmatmul.mubr.bf16.gmra.mrb[0].mxu0 %v3192
    %v3791 = vpop.f32.mrb[0].mxu0
    %v3792 = vadd.f32 %v3752, %v3791
    %v3793 = vpop.f32.mrb[0].mxu0
    %v3794 = vpop.f32.mrb[0].mxu0
    %v3795 = vpop.f32.mrb[0].mxu0
    %3796 = vdwg.mxu0
    %3797 = vmatprep.subr.bf16.mxu0 0
    %3798 = vmatpush1.bf16.msra.mxu0 %v3621
    %3799 = vmatprep.subr.bf16.mxu0 0
    %3800 = vmatpush1.bf16.msra.mxu0 %v3622
    %3801 = vmatprep.subr.bf16.mxu0 0
    %3802 = vmatpush1.bf16.msra.mxu0 %v3623
    %3803 = vmatprep.subr.bf16.mxu0 0
    %3804 = vmatpush1.bf16.msra.mxu0 %v3624
    %3805 = vmatprep.subr.bf16.mxu0 0
    %3806 = vmatpush1.bf16.msra.mxu0 %v3625
    %3807 = vmatprep.subr.bf16.mxu0 0
    %3808 = vmatpush1.bf16.msra.mxu0 %v3626
    %3809 = vmatprep.subr.bf16.mxu0 0
    %3810 = vmatpush1.bf16.msra.mxu0 %v3627
    %3811 = vmatprep.subr.bf16.mxu0 0
    %3812 = vmatpush1.bf16.msra.mxu0 %v3628
    %3813 = vmatprep.subr.bf16.mxu0 0
    %3814 = vmatpush1.bf16.msra.mxu0 %v3629
    %3815 = vmatprep.subr.bf16.mxu0 0
    %3816 = vmatpush1.bf16.msra.mxu0 %v3630
    %3817 = vmatprep.subr.bf16.mxu0 0
    %3818 = vmatpush1.bf16.msra.mxu0 %v3631
    %3819 = vmatprep.subr.bf16.mxu0 0
    %3820 = vmatpush1.bf16.msra.mxu0 %v3632
    %3821 = vmatprep.subr.bf16.mxu0 0
    %3822 = vmatpush1.bf16.msra.mxu0 %v3633
    %3823 = vmatprep.subr.bf16.mxu0 0
    %3824 = vmatpush1.bf16.msra.mxu0 %v3634
    %3825 = vmatprep.subr.bf16.mxu0 0
    %3826 = vmatpush1.bf16.msra.mxu0 %v3635
    %3827 = vmatprep.subr.bf16.mxu0 0
    %3828 = vmatpush1.bf16.msra.mxu0 %v3636
    %3829 = vmatprep.mubr.bf16.mxu0 %v3195
    %3830 = vmatmul.mubr.bf16.gmra.mrb[0].mxu0 %v3194
    %v3831 = vpop.f32.mrb[0].mxu0
    %v3832 = vadd.f32 %v3792, %v3831
    %v3833 = vpop.f32.mrb[0].mxu0
    %v3834 = vpop.f32.mrb[0].mxu0
    %v3835 = vpop.f32.mrb[0].mxu0
    %3836 = vdwg.mxu0
    %3837 = vmatprep.subr.bf16.mxu0 0
    %3838 = vmatpush1.bf16.msra.mxu0 %v3637
    %3839 = vmatprep.subr.bf16.mxu0 0
    %3840 = vmatpush1.bf16.msra.mxu0 %v3638
    %3841 = vmatprep.subr.bf16.mxu0 0
    %3842 = vmatpush1.bf16.msra.mxu0 %v3639
    %3843 = vmatprep.subr.bf16.mxu0 0
    %3844 = vmatpush1.bf16.msra.mxu0 %v3640
    %3845 = vmatprep.subr.bf16.mxu0 0
    %3846 = vmatpush1.bf16.msra.mxu0 %v3641
    %3847 = vmatprep.subr.bf16.mxu0 0
    %3848 = vmatpush1.bf16.msra.mxu0 %v3642
    %3849 = vmatprep.subr.bf16.mxu0 0
    %3850 = vmatpush1.bf16.msra.mxu0 %v3643
    %3851 = vmatprep.subr.bf16.mxu0 0
    %3852 = vmatpush1.bf16.msra.mxu0 %v3644
    %3853 = vmatprep.subr.bf16.mxu0 0
    %3854 = vmatpush1.bf16.msra.mxu0 %v3645
    %3855 = vmatprep.subr.bf16.mxu0 0
    %3856 = vmatpush1.bf16.msra.mxu0 %v3646
    %3857 = vmatprep.subr.bf16.mxu0 0
    %3858 = vmatpush1.bf16.msra.mxu0 %v3647
    %3859 = vmatprep.subr.bf16.mxu0 0
    %3860 = vmatpush1.bf16.msra.mxu0 %v3648
    %3861 = vmatprep.subr.bf16.mxu0 0
    %3862 = vmatpush1.bf16.msra.mxu0 %v3649
    %3863 = vmatprep.subr.bf16.mxu0 0
    %3864 = vmatpush1.bf16.msra.mxu0 %v3650
    %3865 = vmatprep.subr.bf16.mxu0 0
    %3866 = vmatpush1.bf16.msra.mxu0 %v3651
    %3867 = vmatprep.subr.bf16.mxu0 0
    %3868 = vmatpush1.bf16.msra.mxu0 %v3652
    %3869 = vmatprep.mubr.bf16.mxu0 %v3197
    %3870 = vmatmul.mubr.bf16.gmra.mrb[0].mxu0 %v3196
    %v3871 = vpop.f32.mrb[0].mxu0
    %v3872 = vadd.f32 %v3832, %v3871
    %v3873 = vpop.f32.mrb[0].mxu0
    %v3874 = vpop.f32.mrb[0].mxu0
    %v3875 = vpop.f32.mrb[0].mxu0
    %3876 = vdwg.mxu0
    %v3877 = vmax.f32 %v3872, 0.0
    %v3878 = vpack.c.bf16 %v3877, %v3877
    %v3879 = vld [vmem:[#allocation10] sm:$0xf]
    %v3880 = vld [vmem:[#allocation10 + $0x4] sm:$0xf]
    %v3881 = vld [vmem:[#allocation10 + $0x8] sm:$0xf]
    %v3882 = vld [vmem:[#allocation10 + $0xc] sm:$0xf]
    %v3883 = vld [vmem:[#allocation10 + $0x10] sm:$0xf]
    %v3884 = vld [vmem:[#allocation10 + $0x14] sm:$0xf]
    %v3885 = vld [vmem:[#allocation10 + $0x18] sm:$0xf]
    %v3886 = vld [vmem:[#allocation10 + $0x1c] sm:$0xf]
    %v3887 = vld [vmem:[#allocation10 + $0x20] sm:$0xf]
    %v3888 = vld [vmem:[#allocation10 + $0x24] sm:$0xf]
    %v3889 = vld [vmem:[#allocation10 + $0x28] sm:$0xf]
    %v3890 = vld [vmem:[#allocation10 + $0x2c] sm:$0xf]
    %v3891 = vld [vmem:[#allocation10 + $0x30] sm:$0xf]
    %v3892 = vld [vmem:[#allocation10 + $0x34] sm:$0xf]
    %v3893 = vld [vmem:[#allocation10 + $0x38] sm:$0xf]
    %v3894 = vld [vmem:[#allocation10 + $0x3c] sm:$0xf]
    %v3895 = vld [vmem:[#allocation12] sm:$0x1]
    %v3897 = vlaneseq
    %v3898 = vshrl.u32 %v3897, 7
    %v3899 = vsub.s32 0, %v3898
    %v3900 = vrot.slane %v3895, %v3899
    %v3918 = vunpack.c.l.b16 %v3879
    %v3919 = vunpack.c.l.b16 %v3880
    %v3920 = vunpack.c.l.b16 %v3881
    %v3921 = vunpack.c.l.b16 %v3882
    %v3922 = vunpack.c.l.b16 %v3883
    %v3923 = vunpack.c.l.b16 %v3884
    %v3924 = vunpack.c.l.b16 %v3885
    %v3925 = vunpack.c.l.b16 %v3886
    %v3926 = vunpack.c.l.b16 %v3887
    %v3927 = vunpack.c.l.b16 %v3888
    %v3928 = vunpack.c.l.b16 %v3889
    %v3929 = vunpack.c.l.b16 %v3890
    %v3930 = vunpack.c.l.b16 %v3891
    %v3931 = vunpack.c.l.b16 %v3892
    %v3932 = vunpack.c.l.b16 %v3893
    %v3933 = vunpack.c.l.b16 %v3894
    %v3934 = vpack.c.b16 %v3919, %v3918
    %v3935 = vpack.c.b16 %v3921, %v3920
    %v3936 = vpack.c.b16 %v3923, %v3922
    %v3937 = vpack.c.b16 %v3925, %v3924
    %v3938 = vpack.c.b16 %v3927, %v3926
    %v3939 = vpack.c.b16 %v3929, %v3928
    %v3940 = vpack.c.b16 %v3931, %v3930
    %v3941 = vpack.c.b16 %v3933, %v3932
    %3950 = vmatprep.subr.bf16.mxu0 0
    %3951 = vmatpush1.bf16.msra.mxu0 %v3934
    %3952 = vmatprep.subr.bf16.mxu0 0
    %3953 = vmatpush1.bf16.msra.mxu0 %v3935
    %3954 = vmatprep.subr.bf16.mxu0 0
    %3955 = vmatpush1.bf16.msra.mxu0 %v3936
    %3956 = vmatprep.subr.bf16.mxu0 0
    %3957 = vmatpush1.bf16.msra.mxu0 %v3937
    %3958 = vmatprep.subr.bf16.mxu0 0
    %3959 = vmatpush1.bf16.msra.mxu0 %v3938
    %3960 = vmatprep.subr.bf16.mxu0 0
    %3961 = vmatpush1.bf16.msra.mxu0 %v3939
    %3962 = vmatprep.subr.bf16.mxu0 0
    %3963 = vmatpush1.bf16.msra.mxu0 %v3940
    %3964 = vmatprep.subr.bf16.mxu0 0
    %3965 = vmatpush1.bf16.msra.mxu0 %v3941
    %3966 = vmatprep.subr.bf16.mxu0 0
    %3967 = vmatpush1.bf16.msra.mxu0 0
    %3968 = vmatprep.subr.bf16.mxu0 0
    %3969 = vmatpush1.bf16.msra.mxu0 0
    %3970 = vmatprep.subr.bf16.mxu0 0
    %3971 = vmatpush1.bf16.msra.mxu0 0
    %3972 = vmatprep.subr.bf16.mxu0 0
    %3973 = vmatpush1.bf16.msra.mxu0 0
    %3974 = vmatprep.subr.bf16.mxu0 0
    %3975 = vmatpush1.bf16.msra.mxu0 0
    %3976 = vmatprep.subr.bf16.mxu0 0
    %3977 = vmatpush1.bf16.msra.mxu0 0
    %3978 = vmatprep.subr.bf16.mxu0 0
    %3979 = vmatpush1.bf16.msra.mxu0 0
    %3980 = vmatprep.subr.bf16.mxu0 0
    %3981 = vmatpush1.bf16.msra.mxu0 0
    %3982 = vmatprep.mubr.bf16.mxu0 0
    %3983 = vmatmul.mubr.bf16.gmra.mrb[0].mxu0 %v3878
    %v3984 = vpop.f32.mrb[0].mxu0
    %v3985 = vadd.f32 %v3900, %v3984
    %v3986 = vpop.f32.mrb[0].mxu0
    %v3987 = vpop.f32.mrb[0].mxu0
    %v3988 = vpop.f32.mrb[0].mxu0
    %3989 = vdwg.mxu0
    %v3990 = vpack.c.bf16 %v3985, %v3985
    %3991 = vst [vmem:[%s7] sm:$0xf] %v3990
    // Predicated region
    $region58: #{mnist_forward.1} parent=1 // pred_check
      _
    $region59: #{mnist_forward.1} parent=1 // pred_check_branch
      %3993 = sbr.rel (0) target = $region61
    $region60: #{mnist_forward.1} parent=1 // pred_region
      _
    $region61: #{mnist_forward.1} parent=1 // pred_fallthru
      _
    // Predicated region
    $region62: #{mnist_forward.1} parent=1 // pred_check
      _
    $region63: #{mnist_forward.1} parent=1 // pred_check_branch
      %3995 = sbr.rel (0) target = $region65
    $region64: #{mnist_forward.1} parent=1 // pred_region
      _
    $region65: #{mnist_forward.1} parent=1 // pred_fallthru
      _
    %3996 = vsyncpa [#allocation3], 1
    %3997 = vsyncpa [#allocation5], 1
    %3998 = vsyncpa [#allocation8], 1
    %3999 = vsyncpa [#allocation11], 1

</llo_original>
